<compile_context>
chip_gen: v7x
topology: tpu7x:2x2x1
jax: 0.10.0
libtpu: 0.0.40
codegen_flags: <defaults>
</compile_context>

<pallas_src>
import functools

import jax
import jax.numpy as jnp
import numpy as np
from jax import lax
from jax.experimental import pallas as pl
from jax.experimental.pallas import tpu as pltpu


def make_mhsa_kernel(C, num_heads, head_dim, TQ):
    nh, hd = num_heads, head_dim

    def kernel(x_ref, wqkv_ref, wout_ref, bias_ref, o_ref, qkv_ref):
        # x_ref:    (1, C, N)   full sequence (channels-first, N lane-dense); resident per b
        # wqkv_ref: (3C, C)     1x1-conv QKV weight, softmax scale pre-folded into Q rows
        # wout_ref: (C, C)      1x1-conv unify weight, lane-dense
        # bias_ref: (C, 1)
        # o_ref:    (1, C, TQ)  this grid step's output slab
        # qkv_ref:  (3C, N)     VMEM scratch: full QKV projection for the current batch
        qi = pl.program_id(1)

        # --- QKV projection, once per batch (review fix #1: no per-slab recompute) ---
        @pl.when(qi == 0)
        def _():
            qkv_ref[...] = jnp.dot(
                wqkv_ref[...], x_ref[0],
                preferred_element_type=jnp.float32).astype(qkv_ref.dtype)

        q_start = pl.multiple_of(qi * TQ, TQ)

        # Query slab (scale already in the weight) and residual slab, both sliced from
        # resident blocks (review fix #4: no duplicate xq input stream / DMA).
        q = qkv_ref[pl.ds(0, C), pl.ds(q_start, TQ)]          # (C, TQ)
        xq = x_ref[0, :, pl.ds(q_start, TQ)]                  # (C, TQ)

        # Static unroll over heads (nh small here).  For realistic nh (>=8) / large N,
        # switch to lax.fori_loop + pl.ds head slices into qkv_ref and a (C, TQ) head
        # scratch so only one (TQ, N) score tile stays live.
        head_outs = []
        for h in range(nh):
            lo = h * hd
            q_h = q[lo:lo + hd]                               # (hd, TQ)
            k_h = qkv_ref[C + lo:C + lo + hd, :]              # (hd, N)
            v_h = qkv_ref[2 * C + lo:2 * C + lo + hd, :]      # (hd, N)

            # Scores (TQ, N): contract the hd axis of both operands directly
            # (review fix #3: no explicit q transpose, keeps the XLU free).
            s = lax.dot_general(q_h, k_h, (((0,), (0,)), ((), ())),
                                preferred_element_type=jnp.float32)
            s = s - jnp.max(s, axis=-1, keepdims=True)
            p = jnp.exp(s)
            # Softmax denominator; reciprocal on the EUP (approx=False keeps 1e-4 tol).
            p = p * pl.reciprocal(jnp.sum(p, axis=-1, keepdims=True), approx=False)

            # PV matmul contracting the key (last) axis of both operands -> (hd, TQ).
            o_h = lax.dot_general(v_h, p.astype(v_h.dtype), (((1,), (1,)), ((), ())),
                                  preferred_element_type=jnp.float32)
            head_outs.append(o_h)

        # Concatenate heads along sublanes (hd 8-aligned -> cheap vreg placement) and
        # run ONE lane-dense (C, C) unify matmul (review fix #2: no K=hd matmuls, no
        # lane-sparse per-head weight), then bias + residual.
        o_all = jnp.concatenate(head_outs, axis=0)            # (C, TQ), f32
        y = jnp.dot(wout_ref[...], o_all, preferred_element_type=jnp.float32)
        y = y + bias_ref[...] + xq.astype(jnp.float32)
        o_ref[0] = y.astype(o_ref.dtype)

    return kernel


@functools.partial(jax.jit, static_argnames=("num_heads", "use_bf16_operands"))
def mhsa_forward(x_nchw, w_qkv, w_unify, b_unify, *, num_heads,
                 use_bf16_operands=False):
    B, C, H, W = x_nchw.shape
    N = H * W
    assert C % num_heads == 0
    head_dim = C // num_heads
    scale = float(head_dim) ** (-0.5)

    # Channels-first (B, C, N): pure reshape of NCHW (no HBM transpose), N on the lane
    # axis, 1x1 convs become plain matmuls over the channel axis.
    x_cn = x_nchw.reshape(B, C, N)
    w_qkv2 = w_qkv.reshape(3 * C, C)
    # Fold the softmax scale into the Q rows of the QKV weight (free at prep time).
    w_qkv2 = jnp.concatenate([w_qkv2[:C] * scale, w_qkv2[C:]], axis=0)
    w_out = w_unify.reshape(C, C)
    b_out = b_unify.reshape(C, 1)

    # Optional bf16 operands for the MXU (f32 accumulation kept); off by default since
    # it would break the 1e-4 reference tolerance.
    attn_dtype = jnp.bfloat16 if use_bf16_operands else x_nchw.dtype

    # --- Query-tile size ---------------------------------------------------------
    # With the QKV projection hoisted out of the slab loop, the per-slab VMEM scaling
    # is just the (TQ, N) score tile, so take the whole sequence for small/medium N
    # (amortizes the ~0.35us/step grid overhead) and otherwise the largest 128-multiple
    # divisor.  Unaligned N falls back to TQ = N (legal full-extent block).
    if N <= 1024 or N % 128 != 0:
        TQ = N
    else:
        TQ = next(t for t in (512, 256, 128) if N % t == 0)
    n_q = N // TQ

    kernel = make_mhsa_kernel(C, num_heads, head_dim, TQ)

    itemsize = jnp.dtype(x_nchw.dtype).itemsize
    attn_itemsize = jnp.dtype(attn_dtype).itemsize
    # Explicit VMEM budget (review: re-derive for v7x's 64 MiB physical / 32 MiB
    # default scoped limit); only raise the limit when the estimate needs it.
    vmem_est = (
        2 * C * N * itemsize                    # double-buffered x block
        + 3 * C * N * attn_itemsize             # QKV scratch
        + 2 * C * TQ * itemsize                 # double-buffered output block
        + (3 * C * C + C * C + C) * itemsize    # weights + bias
        + 3 * TQ * N * 4                        # score / prob tiles (+ slack)
        + 2 * C * TQ * 4                        # concatenated heads + unify acc
    )
    vmem_limit = None
    if vmem_est > 30 * (1 << 20):
        vmem_limit = int(min(vmem_est * 5 // 4, 96 * (1 << 20)))

    cost = pl.CostEstimate(
        flops=B * (2 * N * C * 3 * C + 4 * N * N * C + 2 * N * C * C),
        transcendentals=B * num_heads * N * N,
        bytes_accessed=(2 * B * C * N + 4 * C * C + C) * itemsize,
    )

    out_cn = pl.pallas_call(
        kernel,
        out_shape=jax.ShapeDtypeStruct((B, C, N), x_nchw.dtype),
        grid=(B, n_q),
        in_specs=[
            pl.BlockSpec((1, C, N), lambda b, qi: (b, 0, 0)),   # full seq; resident per b
            pl.BlockSpec((3 * C, C), lambda b, qi: (0, 0)),
            pl.BlockSpec((C, C), lambda b, qi: (0, 0)),
            pl.BlockSpec((C, 1), lambda b, qi: (0, 0)),
        ],
        out_specs=pl.BlockSpec((1, C, TQ), lambda b, qi: (b, 0, qi)),
        scratch_shapes=[pltpu.VMEM((3 * C, N), attn_dtype)],    # per-batch QKV scratch
        # b parallel (>= 2 blocks -> both v7x TensorCores); qi MUST be arbitrary so the
        # per-batch QKV scratch is reused sequentially across its slabs.
        compiler_params=pltpu.CompilerParams(
            dimension_semantics=("parallel", "arbitrary"),
            vmem_limit_bytes=vmem_limit),
        cost_estimate=cost,
    )(x_cn, w_qkv2, w_out, b_out)

    return out_cn.reshape(B, C, H, W)


def mhsa_reference(x, w_qkv, w_unify, b_unify, num_heads):
    """Pure-JAX reference matching the PyTorch module semantics exactly."""
    B, C, H, W = x.shape
    N = H * W
    hd = C // num_heads
    scale = float(hd) ** (-0.5)
    qkv = jnp.einsum("oc,bchw->bohw", w_qkv.reshape(3 * C, C), x)
    qkv = qkv.reshape(B, 3, num_heads, hd, N)
    q, k, v = qkv[:, 0], qkv[:, 1], qkv[:, 2]
    q = jnp.transpose(q, (0, 1, 3, 2))                          # (B, h, N, hd)
    attn = jax.nn.softmax(jnp.einsum("bhnd,bhdm->bhnm", q, k) * scale, axis=-1)
    out = jnp.einsum("bhdm,bhnm->bhdn", v, attn)                # (B, h, hd, N)
    out = out.reshape(B, C, H, W)
    out = (jnp.einsum("oc,bchw->bohw", w_unify.reshape(C, C), out)
           + b_unify.reshape(1, C, 1, 1))
    return out + x


if __name__ == "__main__":
    B, C, H, W = 2, 32, 16, 16          # N = 256 (lane-aligned), head_dim = 8
    num_heads = 4

    key = jax.random.PRNGKey(0)
    kx, kq, ku, kb = jax.random.split(key, 4)
    x = jax.random.normal(kx, (B, C, H, W), dtype=jnp.float32)
    w_qkv = jax.random.normal(kq, (3 * C, C, 1, 1), dtype=jnp.float32) * 0.1
    w_unify = jax.random.normal(ku, (C, C, 1, 1), dtype=jnp.float32) * 0.1
    b_unify = jax.random.normal(kb, (C,), dtype=jnp.float32) * 0.1

    out = mhsa_forward(x, w_qkv, w_unify, b_unify, num_heads=num_heads)
    out = jax.block_until_ready(out)

    ref = mhsa_reference(x, w_qkv, w_unify, b_unify, num_heads)
    np.testing.assert_allclose(np.asarray(out), np.asarray(ref),
                               rtol=1e-4, atol=1e-4)
    print("KERNEL_OK")
</pallas_src>

<mosaic_0001>
module attributes {stable_mosaic.version = 11 : i64} {
  func.func @kernel(%arg0: i32, %arg1: i32, %arg2: memref<1x32x256xf32, #tpu.memory_space<vmem>>, %arg3: memref<96x32xf32, #tpu.memory_space<vmem>>, %arg4: memref<32x32xf32, #tpu.memory_space<vmem>>, %arg5: memref<32x1xf32, #tpu.memory_space<vmem>>, %arg6: memref<1x32x256xf32, #tpu.memory_space<vmem>>, %arg7: memref<96x256xf32, #tpu.memory_space<vmem>>) attributes {dimension_semantics = [#tpu.dimension_semantics<parallel>, #tpu.dimension_semantics<arbitrary>], iteration_bounds = array<i64: 2, 1>, scalar_prefetch = 0 : i64, scratch_operands = 1 : i64, tpu.core_type = #tpu.core_type<tc>, window_params = [{transform_indices = @transform_0, window_bounds = array<i64: 1, 32, 256>}, {pipeline_mode = #tpu.pipeline_mode<synchronous>, transform_indices = @transform_1, window_bounds = array<i64: 96, 32>}, {pipeline_mode = #tpu.pipeline_mode<synchronous>, transform_indices = @transform_2, window_bounds = array<i64: 32, 32>}, {pipeline_mode = #tpu.pipeline_mode<synchronous>, transform_indices = @transform_3, window_bounds = array<i64: 32, 1>}, {transform_indices = @transform_4, window_bounds = array<i64: 1, 32, 256>}]} {
    %c0_i32 = arith.constant 0 : i32
    %0 = arith.cmpi eq, %arg1, %c0_i32 : i32
    %1 = arith.extui %0 : i1 to i32
    %c0_i32_0 = arith.constant 0 : i32
    %2 = arith.cmpi ne, %1, %c0_i32_0 : i32
    scf.if %2 {
      %c0_34 = arith.constant 0 : index
      %c0_35 = arith.constant 0 : index
      %80 = vector.load %arg3[%c0_34, %c0_35] : memref<96x32xf32, #tpu.memory_space<vmem>>, vector<96x32xf32>
      %c0_36 = arith.constant 0 : index
      %c0_37 = arith.constant 0 : index
      %c0_38 = arith.constant 0 : index
      %81 = vector.load %arg2[%c0_36, %c0_37, %c0_38] : memref<1x32x256xf32, #tpu.memory_space<vmem>>, vector<1x32x256xf32>
      %82 = vector.shape_cast %81 : vector<1x32x256xf32> to vector<32x256xf32>
      %cst_39 = arith.constant dense<0.000000e+00> : vector<96x256xf32>
      %83 = tpu.matmul %80, %82, %cst_39 {dimension_numbers = #tpu.dot_dimension_numbers<[1], [0], [0], [1], [0, 0, 1, 1], [], []>} : vector<96x32xf32>, vector<32x256xf32>, vector<96x256xf32> -> vector<96x256xf32>
      %c0_40 = arith.constant 0 : index
      %c0_41 = arith.constant 0 : index
      %84 = vector.load %arg7[%c0_40, %c0_41] : memref<96x256xf32, #tpu.memory_space<vmem>>, vector<96x256xf32>
      tpu.vector_store %arg7[%c0_40, %c0_41], %83 {strides = array<i32>} : memref<96x256xf32, #tpu.memory_space<vmem>>, vector<96x256xf32>,
    } else {
    }
    %c256_i32 = arith.constant 256 : i32
    %3 = arith.muli %arg1, %c256_i32 : i32
    %4 = tpu.assume_multiple %3, 256 : i32
    %c0 = arith.constant 0 : index
    %5 = arith.index_cast %4 : i32 to index
    %6 = vector.load %arg7[%c0, %5] : memref<96x256xf32, #tpu.memory_space<vmem>>, vector<32x256xf32>
    %c0_1 = arith.constant 0 : index
    %c0_2 = arith.constant 0 : index
    %7 = arith.index_cast %4 : i32 to index
    %8 = vector.load %arg2[%c0_1, %c0_2, %7] : memref<1x32x256xf32, #tpu.memory_space<vmem>>, vector<1x32x256xf32>
    %9 = vector.shape_cast %8 : vector<1x32x256xf32> to vector<32x256xf32>
    %10 = vector.extract_strided_slice %6 {offsets = [0, 0], sizes = [8, 256], strides = [1, 1]} : vector<32x256xf32> to vector<8x256xf32>
    %c32 = arith.constant 32 : index
    %c0_3 = arith.constant 0 : index
    %11 = vector.load %arg7[%c32, %c0_3] : memref<96x256xf32, #tpu.memory_space<vmem>>, vector<8x256xf32>
    %c64 = arith.constant 64 : index
    %c0_4 = arith.constant 0 : index
    %12 = vector.load %arg7[%c64, %c0_4] : memref<96x256xf32, #tpu.memory_space<vmem>>, vector<8x256xf32>
    %cst = arith.constant dense<0.000000e+00> : vector<256x256xf32>
    %13 = tpu.matmul %10, %11, %cst {dimension_numbers = #tpu.dot_dimension_numbers<[0], [0], [1], [1], [0, 1, 1, 1], [], []>} : vector<8x256xf32>, vector<8x256xf32>, vector<256x256xf32> -> vector<256x256xf32>
    %cst_5 = arith.constant dense<0xFF800000> : vector<256xf32>
    %14 = vector.multi_reduction <maximumf>, %13, %cst_5 [1] : vector<256x256xf32> to vector<256xf32>
    %15 = vector.shape_cast %14 : vector<256xf32> to vector<256x1xf32>
    %16 = vector.broadcast %15 : vector<256x1xf32> to vector<256x256xf32>
    %17 = arith.subf %13, %16 : vector<256x256xf32>
    %18 = math.exp %17 : vector<256x256xf32>
    %cst_6 = arith.constant dense<0.000000e+00> : vector<256xf32>
    %19 = vector.multi_reduction <add>, %18, %cst_6 [1] : vector<256x256xf32> to vector<256xf32>
    %20 = vector.shape_cast %19 : vector<256xf32> to vector<256x1xf32>
    %21 = tpu.reciprocal %20 : vector<256x1xf32> -> vector<256x1xf32>
    %22 = vector.broadcast %21 : vector<256x1xf32> to vector<256x256xf32>
    %23 = arith.mulf %18, %22 : vector<256x256xf32>
    %cst_7 = arith.constant dense<0.000000e+00> : vector<8x256xf32>
    %24 = tpu.matmul %12, %23, %cst_7 {dimension_numbers = #tpu.dot_dimension_numbers<[1], [1], [0], [0], [0, 0, 1, 0], [], []>} : vector<8x256xf32>, vector<256x256xf32>, vector<8x256xf32> -> vector<8x256xf32>
    %25 = vector.extract_strided_slice %6 {offsets = [8, 0], sizes = [8, 256], strides = [1, 1]} : vector<32x256xf32> to vector<8x256xf32>
    %c40 = arith.constant 40 : index
    %c0_8 = arith.constant 0 : index
    %26 = vector.load %arg7[%c40, %c0_8] : memref<96x256xf32, #tpu.memory_space<vmem>>, vector<8x256xf32>
    %c72 = arith.constant 72 : index
    %c0_9 = arith.constant 0 : index
    %27 = vector.load %arg7[%c72, %c0_9] : memref<96x256xf32, #tpu.memory_space<vmem>>, vector<8x256xf32>
    %cst_10 = arith.constant dense<0.000000e+00> : vector<256x256xf32>
    %28 = tpu.matmul %25, %26, %cst_10 {dimension_numbers = #tpu.dot_dimension_numbers<[0], [0], [1], [1], [0, 1, 1, 1], [], []>} : vector<8x256xf32>, vector<8x256xf32>, vector<256x256xf32> -> vector<256x256xf32>
    %cst_11 = arith.constant dense<0xFF800000> : vector<256xf32>
    %29 = vector.multi_reduction <maximumf>, %28, %cst_11 [1] : vector<256x256xf32> to vector<256xf32>
    %30 = vector.shape_cast %29 : vector<256xf32> to vector<256x1xf32>
    %31 = vector.broadcast %30 : vector<256x1xf32> to vector<256x256xf32>
    %32 = arith.subf %28, %31 : vector<256x256xf32>
    %33 = math.exp %32 : vector<256x256xf32>
    %cst_12 = arith.constant dense<0.000000e+00> : vector<256xf32>
    %34 = vector.multi_reduction <add>, %33, %cst_12 [1] : vector<256x256xf32> to vector<256xf32>
    %35 = vector.shape_cast %34 : vector<256xf32> to vector<256x1xf32>
    %36 = tpu.reciprocal %35 : vector<256x1xf32> -> vector<256x1xf32>
    %37 = vector.broadcast %36 : vector<256x1xf32> to vector<256x256xf32>
    %38 = arith.mulf %33, %37 : vector<256x256xf32>
    %cst_13 = arith.constant dense<0.000000e+00> : vector<8x256xf32>
    %39 = tpu.matmul %27, %38, %cst_13 {dimension_numbers = #tpu.dot_dimension_numbers<[1], [1], [0], [0], [0, 0, 1, 0], [], []>} : vector<8x256xf32>, vector<256x256xf32>, vector<8x256xf32> -> vector<8x256xf32>
    %40 = vector.extract_strided_slice %6 {offsets = [16, 0], sizes = [8, 256], strides = [1, 1]} : vector<32x256xf32> to vector<8x256xf32>
    %c48 = arith.constant 48 : index
    %c0_14 = arith.constant 0 : index
    %41 = vector.load %arg7[%c48, %c0_14] : memref<96x256xf32, #tpu.memory_space<vmem>>, vector<8x256xf32>
    %c80 = arith.constant 80 : index
    %c0_15 = arith.constant 0 : index
    %42 = vector.load %arg7[%c80, %c0_15] : memref<96x256xf32, #tpu.memory_space<vmem>>, vector<8x256xf32>
    %cst_16 = arith.constant dense<0.000000e+00> : vector<256x256xf32>
    %43 = tpu.matmul %40, %41, %cst_16 {dimension_numbers = #tpu.dot_dimension_numbers<[0], [0], [1], [1], [0, 1, 1, 1], [], []>} : vector<8x256xf32>, vector<8x256xf32>, vector<256x256xf32> -> vector<256x256xf32>
    %cst_17 = arith.constant dense<0xFF800000> : vector<256xf32>
    %44 = vector.multi_reduction <maximumf>, %43, %cst_17 [1] : vector<256x256xf32> to vector<256xf32>
    %45 = vector.shape_cast %44 : vector<256xf32> to vector<256x1xf32>
    %46 = vector.broadcast %45 : vector<256x1xf32> to vector<256x256xf32>
    %47 = arith.subf %43, %46 : vector<256x256xf32>
    %48 = math.exp %47 : vector<256x256xf32>
    %cst_18 = arith.constant dense<0.000000e+00> : vector<256xf32>
    %49 = vector.multi_reduction <add>, %48, %cst_18 [1] : vector<256x256xf32> to vector<256xf32>
    %50 = vector.shape_cast %49 : vector<256xf32> to vector<256x1xf32>
    %51 = tpu.reciprocal %50 : vector<256x1xf32> -> vector<256x1xf32>
    %52 = vector.broadcast %51 : vector<256x1xf32> to vector<256x256xf32>
    %53 = arith.mulf %48, %52 : vector<256x256xf32>
    %cst_19 = arith.constant dense<0.000000e+00> : vector<8x256xf32>
    %54 = tpu.matmul %42, %53, %cst_19 {dimension_numbers = #tpu.dot_dimension_numbers<[1], [1], [0], [0], [0, 0, 1, 0], [], []>} : vector<8x256xf32>, vector<256x256xf32>, vector<8x256xf32> -> vector<8x256xf32>
    %55 = vector.extract_strided_slice %6 {offsets = [24, 0], sizes = [8, 256], strides = [1, 1]} : vector<32x256xf32> to vector<8x256xf32>
    %c56 = arith.constant 56 : index
    %c0_20 = arith.constant 0 : index
    %56 = vector.load %arg7[%c56, %c0_20] : memref<96x256xf32, #tpu.memory_space<vmem>>, vector<8x256xf32>
    %c88 = arith.constant 88 : index
    %c0_21 = arith.constant 0 : index
    %57 = vector.load %arg7[%c88, %c0_21] : memref<96x256xf32, #tpu.memory_space<vmem>>, vector<8x256xf32>
    %cst_22 = arith.constant dense<0.000000e+00> : vector<256x256xf32>
    %58 = tpu.matmul %55, %56, %cst_22 {dimension_numbers = #tpu.dot_dimension_numbers<[0], [0], [1], [1], [0, 1, 1, 1], [], []>} : vector<8x256xf32>, vector<8x256xf32>, vector<256x256xf32> -> vector<256x256xf32>
    %cst_23 = arith.constant dense<0xFF800000> : vector<256xf32>
    %59 = vector.multi_reduction <maximumf>, %58, %cst_23 [1] : vector<256x256xf32> to vector<256xf32>
    %60 = vector.shape_cast %59 : vector<256xf32> to vector<256x1xf32>
    %61 = vector.broadcast %60 : vector<256x1xf32> to vector<256x256xf32>
    %62 = arith.subf %58, %61 : vector<256x256xf32>
    %63 = math.exp %62 : vector<256x256xf32>
    %cst_24 = arith.constant dense<0.000000e+00> : vector<256xf32>
    %64 = vector.multi_reduction <add>, %63, %cst_24 [1] : vector<256x256xf32> to vector<256xf32>
    %65 = vector.shape_cast %64 : vector<256xf32> to vector<256x1xf32>
    %66 = tpu.reciprocal %65 : vector<256x1xf32> -> vector<256x1xf32>
    %67 = vector.broadcast %66 : vector<256x1xf32> to vector<256x256xf32>
    %68 = arith.mulf %63, %67 : vector<256x256xf32>
    %cst_25 = arith.constant dense<0.000000e+00> : vector<8x256xf32>
    %69 = tpu.matmul %57, %68, %cst_25 {dimension_numbers = #tpu.dot_dimension_numbers<[1], [1], [0], [0], [0, 0, 1, 0], [], []>} : vector<8x256xf32>, vector<256x256xf32>, vector<8x256xf32> -> vector<8x256xf32>
    %70 = tpu.concatenate %24, %39, %54, %69 in 0 : vector<8x256xf32>, vector<8x256xf32>, vector<8x256xf32>, vector<8x256xf32> -> vector<32x256xf32>
    %c0_26 = arith.constant 0 : index
    %c0_27 = arith.constant 0 : index
    %71 = vector.load %arg4[%c0_26, %c0_27] : memref<32x32xf32, #tpu.memory_space<vmem>>, vector<32x32xf32>
    %cst_28 = arith.constant dense<0.000000e+00> : vector<32x256xf32>
    %72 = tpu.matmul %71, %70, %cst_28 {dimension_numbers = #tpu.dot_dimension_numbers<[1], [0], [0], [1], [0, 0, 1, 1], [], []>} : vector<32x32xf32>, vector<32x256xf32>, vector<32x256xf32> -> vector<32x256xf32>
    %c0_29 = arith.constant 0 : index
    %c0_30 = arith.constant 0 : index
    %73 = vector.load %arg5[%c0_29, %c0_30] : memref<32x1xf32, #tpu.memory_space<vmem>>, vector<32x1xf32>
    %74 = vector.broadcast %73 : vector<32x1xf32> to vector<32x256xf32>
    %75 = arith.addf %72, %74 : vector<32x256xf32>
    %76 = arith.addf %75, %9 : vector<32x256xf32>
    %c0_31 = arith.constant 0 : index
    %c0_32 = arith.constant 0 : index
    %c0_33 = arith.constant 0 : index
    %77 = vector.load %arg6[%c0_31, %c0_32, %c0_33] : memref<1x32x256xf32, #tpu.memory_space<vmem>>, vector<1x32x256xf32>
    %78 = vector.shape_cast %77 : vector<1x32x256xf32> to vector<32x256xf32>
    %79 = vector.shape_cast %76 : vector<32x256xf32> to vector<1x32x256xf32>
    tpu.vector_store %arg6[%c0_31, %c0_32, %c0_33], %79 {strides = array<i32>} : memref<1x32x256xf32, #tpu.memory_space<vmem>>, vector<1x32x256xf32>,
    return
  }
  func.func @transform_0(%arg0: i32, %arg1: i32) -> (i32, i32, i32) {
    %c0_i32 = arith.constant 0 : i32
    %c0_i32_0 = arith.constant 0 : i32
    %c0_i32_1 = arith.constant 0 : i32
    return %arg0, %c0_i32, %c0_i32_0 : i32, i32, i32
  }
  func.func @transform_1(%arg0: i32, %arg1: i32) -> (i32, i32) {
    %c0_i32 = arith.constant 0 : i32
    %c0_i32_0 = arith.constant 0 : i32
    %c0_i32_1 = arith.constant 0 : i32
    return %c0_i32, %c0_i32_0 : i32, i32
  }
  func.func @transform_2(%arg0: i32, %arg1: i32) -> (i32, i32) {
    %c0_i32 = arith.constant 0 : i32
    %c0_i32_0 = arith.constant 0 : i32
    %c0_i32_1 = arith.constant 0 : i32
    return %c0_i32, %c0_i32_0 : i32, i32
  }
  func.func @transform_3(%arg0: i32, %arg1: i32) -> (i32, i32) {
    %c0_i32 = arith.constant 0 : i32
    %c0_i32_0 = arith.constant 0 : i32
    %c0_i32_1 = arith.constant 0 : i32
    return %c0_i32, %c0_i32_0 : i32, i32
  }
  func.func @transform_4(%arg0: i32, %arg1: i32) -> (i32, i32, i32) {
    %c0_i32 = arith.constant 0 : i32
    %c0_i32_0 = arith.constant 0 : i32
    return %arg0, %c0_i32, %arg1 : i32, i32, i32
  }
}

</mosaic_0001>

<llo_original>
// kernel: mhsa_forward.1
$region0: #{mhsa_forward.1}
  #allocation0 [shape = 'u32[]', space=smem, size = 0x4, offset = 0x4, fixed_abs, tag = 'smem constant byte address 0x4 - core index']
  #allocation1 [shape = 'u32[144,128]{1,0:T(1,128)}', space=vmem, size = 0x12000, scoped, tag = 'internal scratch']
  #allocation2 [shape = 'f32[96,256]{1,0:T(8,128)}', space=vmem, size = 0x18000, scoped, tag = 'scratch operand']
  %s0 = inlined_call_operand.vmem [shape: f32[2,32,256], index: 0, kind: input, shape index: {}]
  %s1 = inlined_call_operand.vmem [shape: f32[96,32], index: 1, kind: input, shape index: {}]
  %s2 = inlined_call_operand.vmem [shape: f32[32,32], index: 2, kind: input, shape index: {}]
  %s3 = inlined_call_operand.vmem [shape: f32[32,1], index: 3, kind: input, shape index: {}]
  %s4 = inlined_call_operand.vmem [shape: f32[2,32,256], index: 4, kind: output, shape index: {}]
  %s5 = sld [smem:[#allocation0]]
  $region53: #{mhsa_forward.1} parent=0
    _
  %s7 = ssub.s32 1, %s5
  %s8 = scalar_select 0, %s7, %s5
  loop: start=0, step=1, limit=4
  $region2: #{mhsa_forward.1} parent=0 // loop_pre_header
    _
  $region3: #{mhsa_forward.1} parent=0 // loop_header
    %s10 = sphi 0, %s14
    %p11 = scmp.ge.s32.totalorder %s10, 4
    %s17 = sphi 0, %s29
    %s18 = sphi 0, %s25
    %s19 = sphi 0, %s17
    %s20 = sphi 0, %s18
    %s21 = sphi 0, %s19
    %s22 = sphi 0, %s20
    %s32 = sphi 0, %s34
    %s35 = sphi 0, %s32
    %s36 = sphi 0, %s35
    %s52 = sphi 0, %s36
    %s56 = sphi 0, %s56
    %s58 = sphi 0, %s56
    %s59 = sphi 0, %s58
    %s73 = sphi 0, %s59
    %s77 = sphi 0, %s77
    %s79 = sphi 0, %s77
    %s80 = sphi 0, %s79
    %s94 = sphi 0, %s80
    %s98 = sphi 0, %s98
    %s100 = sphi 0, %s98
    %s101 = sphi 0, %s100
    %s115 = sphi 0, %s101
    %s123 = sphi 0, %s125
    %s126 = sphi 0, %s123
    %s127 = sphi 0, %s126
    %s143 = sphi 0, %s127
  $region4: #{mhsa_forward.1} parent=0 // loop_header_branch
    %13 = sbr.rel (%p11) target = $region8
  $region5: #{mhsa_forward.1} parent=0 // loop_body
    %s15 = ssub.s32 %s10, 1
    %s16 = ssub.s32 %s10, 2
    %s23 = sadd.s32 1, %s18
    %p24 = scmp.ge.s32.totalorder %s23, 1
    %s25 = scalar_select %p24, 0, %s23
    %s26 = sadd.s32 1, %s17
    %s27 = scalar_select %p24, %s26, %s17
    %p28 = scmp.ge.s32.totalorder %s27, 2
    %s29 = scalar_select %p28, 0, %s27
    %s30 = ssub.s32 %s17, %s29
    %p31 = scmp.eq.s32.totalorder %s30, 0
    %s33 = sadd.s32 %s32, 1
    %s34 = scalar_select %p31, %s32, %s33
    %p37 = pneg %p31
    %p38 = scmp.eq.s32.totalorder %s10, 1
    %p39 = por %p37, %p38
    %p40 = scmp.ne.s32.totalorder %s32, %s35
    %p41 = scmp.eq.s32.totalorder %s10, 0
    %p42 = por %p40, %p41
    %p43 = scmp.ne.s32.totalorder %s32, %s35
    %p44 = scmp.eq.s32.totalorder %s15, 1
    %p45 = por %p43, %p44
    %p46 = scmp.ne.s32.totalorder %s35, %s36
    %p47 = scmp.eq.s32.totalorder %s15, 0
    %p48 = por %p46, %p47
    %p49 = scmp.ne.s32.totalorder %s35, %s36
    %p50 = scmp.eq.s32.totalorder %s16, 1
    %p51 = por %p49, %p50
    %p53 = scmp.ne.s32.totalorder %s36, %s52
    %p54 = scmp.eq.s32.totalorder %s16, 0
    %p55 = por %p53, %p54
    %s57 = sadd.s32 %s56, 1
    %p60 = scmp.eq.s32.totalorder %s10, 1
    %p61 = scmp.ne.s32.totalorder %s56, %s58
    %p62 = scmp.eq.s32.totalorder %s10, 0
    %p63 = por %p61, %p62
    %p64 = scmp.ne.s32.totalorder %s56, %s58
    %p65 = scmp.eq.s32.totalorder %s15, 1
    %p66 = por %p64, %p65
    %p67 = scmp.ne.s32.totalorder %s58, %s59
    %p68 = scmp.eq.s32.totalorder %s15, 0
    %p69 = por %p67, %p68
    %p70 = scmp.ne.s32.totalorder %s58, %s59
    %p71 = scmp.eq.s32.totalorder %s16, 1
    %p72 = por %p70, %p71
    %p74 = scmp.ne.s32.totalorder %s59, %s73
    %p75 = scmp.eq.s32.totalorder %s16, 0
    %p76 = por %p74, %p75
    %s78 = sadd.s32 %s77, 1
    %p81 = scmp.eq.s32.totalorder %s10, 1
    %p82 = scmp.ne.s32.totalorder %s77, %s79
    %p83 = scmp.eq.s32.totalorder %s10, 0
    %p84 = por %p82, %p83
    %p85 = scmp.ne.s32.totalorder %s77, %s79
    %p86 = scmp.eq.s32.totalorder %s15, 1
    %p87 = por %p85, %p86
    %p88 = scmp.ne.s32.totalorder %s79, %s80
    %p89 = scmp.eq.s32.totalorder %s15, 0
    %p90 = por %p88, %p89
    %p91 = scmp.ne.s32.totalorder %s79, %s80
    %p92 = scmp.eq.s32.totalorder %s16, 1
    %p93 = por %p91, %p92
    %p95 = scmp.ne.s32.totalorder %s80, %s94
    %p96 = scmp.eq.s32.totalorder %s16, 0
    %p97 = por %p95, %p96
    %s99 = sadd.s32 %s98, 1
    %p102 = scmp.eq.s32.totalorder %s10, 1
    %p103 = scmp.ne.s32.totalorder %s98, %s100
    %p104 = scmp.eq.s32.totalorder %s10, 0
    %p105 = por %p103, %p104
    %p106 = scmp.ne.s32.totalorder %s98, %s100
    %p107 = scmp.eq.s32.totalorder %s15, 1
    %p108 = por %p106, %p107
    %p109 = scmp.ne.s32.totalorder %s100, %s101
    %p110 = scmp.eq.s32.totalorder %s15, 0
    %p111 = por %p109, %p110
    %p112 = scmp.ne.s32.totalorder %s100, %s101
    %p113 = scmp.eq.s32.totalorder %s16, 1
    %p114 = por %p112, %p113
    %p116 = scmp.ne.s32.totalorder %s101, %s115
    %p117 = scmp.eq.s32.totalorder %s16, 0
    %p118 = por %p116, %p117
    %s119 = ssub.s32 %s17, %s29
    %s120 = ssub.s32 %s18, %s25
    %s121 = sor.u32 %s119, %s120
    %p122 = scmp.eq.s32.totalorder %s121, 0
    %s124 = sadd.s32 %s123, 1
    %s125 = scalar_select %p122, %s123, %s124
    %p128 = pneg %p122
    %p129 = scmp.eq.s32.totalorder %s10, 1
    %p130 = por %p128, %p129
    %p131 = scmp.ne.s32.totalorder %s123, %s126
    %p132 = scmp.eq.s32.totalorder %s10, 0
    %p133 = por %p131, %p132
    %p134 = scmp.ne.s32.totalorder %s123, %s126
    %p135 = scmp.eq.s32.totalorder %s15, 1
    %p136 = por %p134, %p135
    %p137 = scmp.ne.s32.totalorder %s126, %s127
    %p138 = scmp.eq.s32.totalorder %s15, 0
    %p139 = por %p137, %p138
    %p140 = scmp.ne.s32.totalorder %s126, %s127
    %p141 = scmp.eq.s32.totalorder %s16, 1
    %p142 = por %p140, %p141
    %p144 = scmp.ne.s32.totalorder %s127, %s143
    %p145 = scmp.eq.s32.totalorder %s16, 0
    %p146 = por %p144, %p145
    %p147 = scmp.le.s32.totalorder 1, %s10
    %p148 = scmp.lt.s32.totalorder %s10, 3
    %p149 = pnand %p147, %p148
    %p150 = pneg %p149
    // Predicated region
    $region9: #{mhsa_forward.1} parent=5 // pred_check
      _
    $region10: #{mhsa_forward.1} parent=5 // pred_check_branch
      %152 = sbr.rel (%p149) target = $region12
    $region11: #{mhsa_forward.1} parent=5 // pred_region
      %s153 = ssub.s32 %s10, 1
      // Predicated region
      $region13: #{mhsa_forward.1} parent=11 // pred_check
        %p154 = pneg %p69
      $region14: #{mhsa_forward.1} parent=11 // pred_check_branch
        %156 = sbr.rel (%p154) target = $region16
      $region15: #{mhsa_forward.1} parent=11 // pred_region
        _
      $region16: #{mhsa_forward.1} parent=11 // pred_fallthru
        _
      // Predicated region
      $region17: #{mhsa_forward.1} parent=11 // pred_check
        %p157 = pneg %p90
      $region18: #{mhsa_forward.1} parent=11 // pred_check_branch
        %159 = sbr.rel (%p157) target = $region20
      $region19: #{mhsa_forward.1} parent=11 // pred_region
        _
      $region20: #{mhsa_forward.1} parent=11 // pred_fallthru
        _
      // Predicated region
      $region21: #{mhsa_forward.1} parent=11 // pred_check
        %p160 = pneg %p111
      $region22: #{mhsa_forward.1} parent=11 // pred_check_branch
        %162 = sbr.rel (%p160) target = $region24
      $region23: #{mhsa_forward.1} parent=11 // pred_region
        _
      $region24: #{mhsa_forward.1} parent=11 // pred_fallthru
        _
    $region12: #{mhsa_forward.1} parent=5 // pred_fallthru
      _
    %p163 = scmp.lt.s32.totalorder %s10, 2
    // Predicated region
    $region25: #{mhsa_forward.1} parent=5 // pred_check
      %p164 = pneg %p163
    $region26: #{mhsa_forward.1} parent=5 // pred_check_branch
      %166 = sbr.rel (%p164) target = $region28
    $region27: #{mhsa_forward.1} parent=5 // pred_region
      // Predicated region
      $region29: #{mhsa_forward.1} parent=27 // pred_check
        %p167 = pneg %p42
      $region30: #{mhsa_forward.1} parent=27 // pred_check_branch
        %169 = sbr.rel (%p167) target = $region32
      $region31: #{mhsa_forward.1} parent=27 // pred_region
        %p170 = scmp.lt.s32.totalorder %s17, 1
        %s171 = scalar_select %p170, %s17, 1
        %s172 = smul.addr %s171, 8
        %s173 = smul.addr %s172, 8
        %s174 = scalar_lea.vmem %s0, %s173
      $region32: #{mhsa_forward.1} parent=27 // pred_fallthru
        _
    $region28: #{mhsa_forward.1} parent=5 // pred_fallthru
      _
    %p175 = scmp.le.s32.totalorder 1, %s10
    %p176 = scmp.lt.s32.totalorder %s10, 3
    %p177 = pnand %p175, %p176
    %p178 = pneg %p177
    // Predicated region
    $region33: #{mhsa_forward.1} parent=5 // pred_check
      _
    $region34: #{mhsa_forward.1} parent=5 // pred_check_branch
      %180 = sbr.rel (%p177) target = $region36
    $region35: #{mhsa_forward.1} parent=5 // pred_region
      %s181 = ssub.s32 %s10, 1
      %p182 = scmp.lt.s32.totalorder %s19, 1
      %s183 = scalar_select %p182, %s19, 1
      %s184 = smul.addr %s183, 8
      %s185 = smul.addr %s184, 8
      %s186 = scalar_lea.vmem %s0, %s185
      %p187 = pneg %p48
      %p188 = pneg %p45
      %p189 = pneg %p69
      %p190 = pneg %p66
      %p191 = pneg %p90
      %p192 = pneg %p87
      %p193 = pneg %p111
      %p194 = pneg %p108
      %p195 = pneg %p139
      %p196 = pneg %p136
      %s197 = smul.u32 2, %s20
      %p198 = scmp.lt.s32.totalorder %s19, 1
      %s199 = scalar_select %p198, %s19, 1
      %p200 = scmp.lt.s32.totalorder %s197, 1
      %s201 = scalar_select %p200, %s197, 1
      %s202 = smul.addr %s199, 8
      %s203 = sadd.s32 %s201, %s202
      %s204 = smul.addr %s203, 8
      %s205 = scalar_lea.vmem %s4, %s204
      %p206 = scmp.lt.s32.totalorder %s19, 1
      %s207 = scalar_select %p206, %s19, 1
      %s208 = smul.addr %s207, 8
      %s209 = smul.addr %s208, 8
      %s210 = scalar_lea.vmem %s0, %s209
      %s211 = smul.u32 2, %s20
      %p212 = scmp.lt.s32.totalorder %s19, 1
      %s213 = scalar_select %p212, %s19, 1
      %p214 = scmp.lt.s32.totalorder %s211, 1
      %s215 = scalar_select %p214, %s211, 1
      %s216 = smul.addr %s213, 8
      %s217 = sadd.s32 %s215, %s216
      %s218 = smul.addr %s217, 8
      %s219 = scalar_lea.vmem %s4, %s218
      %s220 = smul.u32 2, %s20
      %p221 = scmp.eq.s32.totalorder %s20, 0
      // Predicated region
      $region37: #{mhsa_forward.1} parent=35 // pred_check
        %p222 = pneg %p221
      $region38: #{mhsa_forward.1} parent=35 // pred_check_branch
        %224 = sbr.rel (%p222) target = $region40
      $region39: #{mhsa_forward.1} parent=35 // pred_region
        %v225 = vld [vmem:[%s1] sm:$0xff]
        %v226 = vld [vmem:[%s1 + $0x8] sm:$0xff]
        %v227 = vld [vmem:[%s1 + $0x10] sm:$0xff]
        %v228 = vld [vmem:[%s1 + $0x18] sm:$0xff]
        %v229 = vld [vmem:[%s1 + $0x20] sm:$0xff]
        %v230 = vld [vmem:[%s1 + $0x28] sm:$0xff]
        %v231 = vld [vmem:[%s1 + $0x30] sm:$0xff]
        %v232 = vld [vmem:[%s1 + $0x38] sm:$0xff]
        %v233 = vld [vmem:[%s1 + $0x40] sm:$0xff]
        %v234 = vld [vmem:[%s1 + $0x48] sm:$0xff]
        %v235 = vld [vmem:[%s1 + $0x50] sm:$0xff]
        %v236 = vld [vmem:[%s1 + $0x58] sm:$0xff]
        %v237 = vld [vmem:[%s210] sm:$0xff]
        %v238 = vld [vmem:[%s210 + $0x8] sm:$0xff]
        %v239 = vld [vmem:[%s210 + $0x10] sm:$0xff]
        %v240 = vld [vmem:[%s210 + $0x18] sm:$0xff]
        %v241 = vld [vmem:[%s210 + $0x20] sm:$0xff]
        %v242 = vld [vmem:[%s210 + $0x28] sm:$0xff]
        %v243 = vld [vmem:[%s210 + $0x30] sm:$0xff]
        %v244 = vld [vmem:[%s210 + $0x38] sm:$0xff]
        %vm245 = vcmask 261120
        %v247 = vsel %vm245, %v225, 0
        %v250 = vsel %vm245, %v226, 0
        %v253 = vsel %vm245, %v227, 0
        %v256 = vsel %vm245, %v228, 0
        %v259 = vsel %vm245, %v229, 0
        %v262 = vsel %vm245, %v230, 0
        %v265 = vsel %vm245, %v231, 0
        %v268 = vsel %vm245, %v232, 0
        %v271 = vsel %vm245, %v233, 0
        %v274 = vsel %vm245, %v234, 0
        %v277 = vsel %vm245, %v235, 0
        %v280 = vsel %vm245, %v236, 0
        %282 = vmatprep.subr.mxu0 %v238
        %283 = vmatpush1.msra.mxu0 %v237
        %284 = vmatprep.subr.mxu0 %v240
        %285 = vmatpush1.msra.mxu0 %v239
        %286 = vmatprep.subr.mxu0 %v242
        %287 = vmatpush1.msra.mxu0 %v241
        %288 = vmatprep.subr.mxu0 %v244
        %289 = vmatpush1.msra.mxu0 %v243
        %290 = vmatprep.subr.mxu0 0.0
        %291 = vmatpush1.msra.mxu0 0.0
        %292 = vmatprep.subr.mxu0 0.0
        %293 = vmatpush1.msra.mxu0 0.0
        %294 = vmatprep.subr.mxu0 0.0
        %295 = vmatpush1.msra.mxu0 0.0
        %296 = vmatprep.subr.mxu0 0.0
        %297 = vmatpush1.msra.mxu0 0.0
        %298 = vmatprep.subr.mxu0 0.0
        %299 = vmatpush1.msra.mxu0 0.0
        %300 = vmatprep.subr.mxu0 0.0
        %301 = vmatpush1.msra.mxu0 0.0
        %302 = vmatprep.subr.mxu0 0.0
        %303 = vmatpush1.msra.mxu0 0.0
        %304 = vmatprep.subr.mxu0 0.0
        %305 = vmatpush1.msra.mxu0 0.0
        %306 = vmatprep.subr.mxu0 0.0
        %307 = vmatpush1.msra.mxu0 0.0
        %308 = vmatprep.subr.mxu0 0.0
        %309 = vmatpush1.msra.mxu0 0.0
        %310 = vmatprep.subr.mxu0 0.0
        %311 = vmatpush1.msra.mxu0 0.0
        %312 = vmatprep.subr.mxu0 0.0
        %313 = vmatpush1.msra.mxu0 0.0
        %314 = vmatprep.subr.mxu0 0.0
        %315 = vmatpush1.msra.mxu0 0.0
        %316 = vmatprep.subr.mxu0 0.0
        %317 = vmatpush1.msra.mxu0 0.0
        %318 = vmatprep.subr.mxu0 0.0
        %319 = vmatpush1.msra.mxu0 0.0
        %320 = vmatprep.subr.mxu0 0.0
        %321 = vmatpush1.msra.mxu0 0.0
        %322 = vmatprep.subr.mxu0 0.0
        %323 = vmatpush1.msra.mxu0 0.0
        %324 = vmatprep.subr.mxu0 0.0
        %325 = vmatpush1.msra.mxu0 0.0
        %326 = vmatprep.subr.mxu0 0.0
        %327 = vmatpush1.msra.mxu0 0.0
        %328 = vmatprep.subr.mxu0 0.0
        %329 = vmatpush1.msra.mxu0 0.0
        %330 = vmatprep.subr.mxu0 0.0
        %331 = vmatpush1.msra.mxu0 0.0
        %332 = vmatprep.subr.mxu0 0.0
        %333 = vmatpush1.msra.mxu0 0.0
        %334 = vmatprep.subr.mxu0 0.0
        %335 = vmatpush1.msra.mxu0 0.0
        %336 = vmatprep.subr.mxu0 0.0
        %337 = vmatpush1.msra.mxu0 0.0
        %338 = vmatprep.subr.mxu0 0.0
        %339 = vmatpush1.msra.mxu0 0.0
        %340 = vmatprep.subr.mxu0 0.0
        %341 = vmatpush1.msra.mxu0 0.0
        %342 = vmatprep.subr.mxu0 0.0
        %343 = vmatpush1.msra.mxu0 0.0
        %344 = vmatprep.subr.mxu0 0.0
        %345 = vmatpush1.msra.mxu0 0.0
        %346 = vmatprep.mubr.f32.mxu0 0.0
        %347 = vmatmul.mubr.f32.gmra.mrb[0].mxu0 %v247
        %v348 = vpop.f32.mrb[0].mxu0
        %v349 = vadd.f32 0.0, %v348
        %v350 = vpop.f32.mrb[0].mxu0
        %v351 = vadd.f32 0.0, %v350
        %352 = vmatprep.mubr.f32.mxu0 0.0
        %353 = vmatmul.mubr.f32.gmra.mrb[0].mxu0 %v250
        %v354 = vpop.f32.mrb[0].mxu0
        %v355 = vadd.f32 0.0, %v354
        %v356 = vpop.f32.mrb[0].mxu0
        %v357 = vadd.f32 0.0, %v356
        %358 = vmatprep.mubr.f32.mxu0 0.0
        %359 = vmatmul.mubr.f32.gmra.mrb[0].mxu0 %v253
        %v360 = vpop.f32.mrb[0].mxu0
        %v361 = vadd.f32 0.0, %v360
        %v362 = vpop.f32.mrb[0].mxu0
        %v363 = vadd.f32 0.0, %v362
        %364 = vmatprep.mubr.f32.mxu0 0.0
        %365 = vmatmul.mubr.f32.gmra.mrb[0].mxu0 %v256
        %v366 = vpop.f32.mrb[0].mxu0
        %v367 = vadd.f32 0.0, %v366
        %v368 = vpop.f32.mrb[0].mxu0
        %v369 = vadd.f32 0.0, %v368
        %370 = vmatprep.mubr.f32.mxu0 0.0
        %371 = vmatmul.mubr.f32.gmra.mrb[0].mxu0 %v259
        %v372 = vpop.f32.mrb[0].mxu0
        %v373 = vadd.f32 0.0, %v372
        %v374 = vpop.f32.mrb[0].mxu0
        %v375 = vadd.f32 0.0, %v374
        %376 = vmatprep.mubr.f32.mxu0 0.0
        %377 = vmatmul.mubr.f32.gmra.mrb[0].mxu0 %v262
        %v378 = vpop.f32.mrb[0].mxu0
        %v379 = vadd.f32 0.0, %v378
        %v380 = vpop.f32.mrb[0].mxu0
        %v381 = vadd.f32 0.0, %v380
        %382 = vmatprep.mubr.f32.mxu0 0.0
        %383 = vmatmul.mubr.f32.gmra.mrb[0].mxu0 %v265
        %v384 = vpop.f32.mrb[0].mxu0
        %v385 = vadd.f32 0.0, %v384
        %v386 = vpop.f32.mrb[0].mxu0
        %v387 = vadd.f32 0.0, %v386
        %388 = vmatprep.mubr.f32.mxu0 0.0
        %389 = vmatmul.mubr.f32.gmra.mrb[0].mxu0 %v268
        %v390 = vpop.f32.mrb[0].mxu0
        %v391 = vadd.f32 0.0, %v390
        %v392 = vpop.f32.mrb[0].mxu0
        %v393 = vadd.f32 0.0, %v392
        %394 = vmatprep.mubr.f32.mxu0 0.0
        %395 = vmatmul.mubr.f32.gmra.mrb[0].mxu0 %v271
        %v396 = vpop.f32.mrb[0].mxu0
        %v397 = vadd.f32 0.0, %v396
        %v398 = vpop.f32.mrb[0].mxu0
        %v399 = vadd.f32 0.0, %v398
        %400 = vmatprep.mubr.f32.mxu0 0.0
        %401 = vmatmul.mubr.f32.gmra.mrb[0].mxu0 %v274
        %v402 = vpop.f32.mrb[0].mxu0
        %v403 = vadd.f32 0.0, %v402
        %v404 = vpop.f32.mrb[0].mxu0
        %v405 = vadd.f32 0.0, %v404
        %406 = vmatprep.mubr.f32.mxu0 0.0
        %407 = vmatmul.mubr.f32.gmra.mrb[0].mxu0 %v277
        %v408 = vpop.f32.mrb[0].mxu0
        %v409 = vadd.f32 0.0, %v408
        %v410 = vpop.f32.mrb[0].mxu0
        %v411 = vadd.f32 0.0, %v410
        %412 = vmatprep.mubr.f32.mxu0 0.0
        %413 = vmatmul.mubr.f32.gmra.mrb[0].mxu0 %v280
        %v414 = vpop.f32.mrb[0].mxu0
        %v415 = vadd.f32 0.0, %v414
        %v416 = vpop.f32.mrb[0].mxu0
        %v417 = vadd.f32 0.0, %v416
        %418 = vdwg.mxu0
        %419 = vst [vmem:[#allocation2] sm:$0xff] %v349
        %420 = vst [vmem:[#allocation2 + $0x8] sm:$0xff] %v351
        %421 = vst [vmem:[#allocation2 + $0x10] sm:$0xff] %v355
        %422 = vst [vmem:[#allocation2 + $0x18] sm:$0xff] %v357
        %423 = vst [vmem:[#allocation2 + $0x20] sm:$0xff] %v361
        %424 = vst [vmem:[#allocation2 + $0x28] sm:$0xff] %v363
        %425 = vst [vmem:[#allocation2 + $0x30] sm:$0xff] %v367
        %426 = vst [vmem:[#allocation2 + $0x38] sm:$0xff] %v369
        %427 = vst [vmem:[#allocation2 + $0x40] sm:$0xff] %v373
        %428 = vst [vmem:[#allocation2 + $0x48] sm:$0xff] %v375
        %429 = vst [vmem:[#allocation2 + $0x50] sm:$0xff] %v379
        %430 = vst [vmem:[#allocation2 + $0x58] sm:$0xff] %v381
        %431 = vst [vmem:[#allocation2 + $0x60] sm:$0xff] %v385
        %432 = vst [vmem:[#allocation2 + $0x68] sm:$0xff] %v387
        %433 = vst [vmem:[#allocation2 + $0x70] sm:$0xff] %v391
        %434 = vst [vmem:[#allocation2 + $0x78] sm:$0xff] %v393
        %435 = vst [vmem:[#allocation2 + $0x80] sm:$0xff] %v397
        %436 = vst [vmem:[#allocation2 + $0x88] sm:$0xff] %v399
        %437 = vst [vmem:[#allocation2 + $0x90] sm:$0xff] %v403
        %438 = vst [vmem:[#allocation2 + $0x98] sm:$0xff] %v405
        %439 = vst [vmem:[#allocation2 + $0xa0] sm:$0xff] %v409
        %440 = vst [vmem:[#allocation2 + $0xa8] sm:$0xff] %v411
        %441 = vst [vmem:[#allocation2 + $0xb0] sm:$0xff] %v415
        %442 = vst [vmem:[#allocation2 + $0xb8] sm:$0xff] %v417
      $region40: #{mhsa_forward.1} parent=35 // pred_fallthru
        _
      %s443 = smul.u32 %s20, 256
      %s444 = sshra.s32 %s443, 7
      %s445 = sand.u32 %s443, 127
      %s446 = smul.addr %s444, 8
      %s447 = scalar_lea.vmem [#allocation2], %s446
      %v448 = vld [vmem:[%s447] sm:$0xff]
      %v449 = vld [vmem:[%s447 + $0x8] sm:$0xff]
      %v450 = vld [vmem:[%s447 + $0x10] sm:$0xff]
      %v451 = vld [vmem:[%s447 + $0x18] sm:$0xff]
      %v452 = vld [vmem:[%s447 + $0x20] sm:$0xff]
      %v453 = vld [vmem:[%s447 + $0x28] sm:$0xff]
      %v454 = vld [vmem:[%s447 + $0x30] sm:$0xff]
      %v455 = vld [vmem:[%s447 + $0x38] sm:$0xff]
      %s456 = smul.addr %s444, 8
      %s457 = scalar_lea.vmem %s210, %s456
      %v458 = vld [vmem:[%s457] sm:$0xff]
      %v459 = vld [vmem:[%s457 + $0x8] sm:$0xff]
      %v460 = vld [vmem:[%s457 + $0x10] sm:$0xff]
      %v461 = vld [vmem:[%s457 + $0x18] sm:$0xff]
      %v462 = vld [vmem:[%s457 + $0x20] sm:$0xff]
      %v463 = vld [vmem:[%s457 + $0x28] sm:$0xff]
      %v464 = vld [vmem:[%s457 + $0x30] sm:$0xff]
      %v465 = vld [vmem:[%s457 + $0x38] sm:$0xff]
      %v466 = vld [vmem:[#allocation2 + $0x40] sm:$0xff]
      %v467 = vld [vmem:[#allocation2 + $0x48] sm:$0xff]
      %v468 = vld [vmem:[#allocation2 + $0x80] sm:$0xff]
      %v469 = vld [vmem:[#allocation2 + $0x88] sm:$0xff]
      %470 = vxpose.xlu0.b32.start [1/16] %v448, 128
      %471 = vxpose.xlu0.b32.cont [2/16] 0.0, 128
      %472 = vxpose.xlu0.b32.cont [3/16] 0.0, 128
      %473 = vxpose.xlu0.b32.cont [4/16] 0.0, 128
      %474 = vxpose.xlu0.b32.cont [5/16] 0.0, 128
      %475 = vxpose.xlu0.b32.cont [6/16] 0.0, 128
      %476 = vxpose.xlu0.b32.cont [7/16] 0.0, 128
      %477 = vxpose.xlu0.b32.cont [8/16] 0.0, 128
      %478 = vxpose.xlu0.b32.cont [9/16] 0.0, 128
      %479 = vxpose.xlu0.b32.cont [10/16] 0.0, 128
      %480 = vxpose.xlu0.b32.cont [11/16] 0.0, 128
      %481 = vxpose.xlu0.b32.cont [12/16] 0.0, 128
      %482 = vxpose.xlu0.b32.cont [13/16] 0.0, 128
      %483 = vxpose.xlu0.b32.cont [14/16] 0.0, 128
      %484 = vxpose.xlu0.b32.cont [15/16] 0.0, 128
      %485 = vxpose.xlu0.b32.end [16/16] 0.0, 128
      %v486 = vpop.trf.xlu0
      %v487 = vpop.trf.xlu0
      %v488 = vpop.trf.xlu0
      %v489 = vpop.trf.xlu0
      %v490 = vpop.trf.xlu0
      %v491 = vpop.trf.xlu0
      %v492 = vpop.trf.xlu0
      %v493 = vpop.trf.xlu0
      %v494 = vpop.trf.xlu0
      %v495 = vpop.trf.xlu0
      %v496 = vpop.trf.xlu0
      %v497 = vpop.trf.xlu0
      %v498 = vpop.trf.xlu0
      %v499 = vpop.trf.xlu0
      %v500 = vpop.trf.xlu0
      %v501 = vpop.trf.xlu0
      %502 = vxpose.xlu0.b32.start [1/16] %v449, 128
      %503 = vxpose.xlu0.b32.cont [2/16] 0.0, 128
      %504 = vxpose.xlu0.b32.cont [3/16] 0.0, 128
      %505 = vxpose.xlu0.b32.cont [4/16] 0.0, 128
      %506 = vxpose.xlu0.b32.cont [5/16] 0.0, 128
      %507 = vxpose.xlu0.b32.cont [6/16] 0.0, 128
      %508 = vxpose.xlu0.b32.cont [7/16] 0.0, 128
      %509 = vxpose.xlu0.b32.cont [8/16] 0.0, 128
      %510 = vxpose.xlu0.b32.cont [9/16] 0.0, 128
      %511 = vxpose.xlu0.b32.cont [10/16] 0.0, 128
      %512 = vxpose.xlu0.b32.cont [11/16] 0.0, 128
      %513 = vxpose.xlu0.b32.cont [12/16] 0.0, 128
      %514 = vxpose.xlu0.b32.cont [13/16] 0.0, 128
      %515 = vxpose.xlu0.b32.cont [14/16] 0.0, 128
      %516 = vxpose.xlu0.b32.cont [15/16] 0.0, 128
      %517 = vxpose.xlu0.b32.end [16/16] 0.0, 128
      %v518 = vpop.trf.xlu0
      %v519 = vpop.trf.xlu0
      %v520 = vpop.trf.xlu0
      %v521 = vpop.trf.xlu0
      %v522 = vpop.trf.xlu0
      %v523 = vpop.trf.xlu0
      %v524 = vpop.trf.xlu0
      %v525 = vpop.trf.xlu0
      %v526 = vpop.trf.xlu0
      %v527 = vpop.trf.xlu0
      %v528 = vpop.trf.xlu0
      %v529 = vpop.trf.xlu0
      %v530 = vpop.trf.xlu0
      %v531 = vpop.trf.xlu0
      %v532 = vpop.trf.xlu0
      %v533 = vpop.trf.xlu0
      %vm534 = vcmask 64512
      %v536 = vsel %vm534, %v486, 0
      %v539 = vsel %vm534, %v487, 0
      %v542 = vsel %vm534, %v488, 0
      %v545 = vsel %vm534, %v489, 0
      %v548 = vsel %vm534, %v490, 0
      %v551 = vsel %vm534, %v491, 0
      %v554 = vsel %vm534, %v492, 0
      %v557 = vsel %vm534, %v493, 0
      %v560 = vsel %vm534, %v494, 0
      %v563 = vsel %vm534, %v495, 0
      %v566 = vsel %vm534, %v496, 0
      %v569 = vsel %vm534, %v497, 0
      %v572 = vsel %vm534, %v498, 0
      %v575 = vsel %vm534, %v499, 0
      %v578 = vsel %vm534, %v500, 0
      %v581 = vsel %vm534, %v501, 0
      %v584 = vsel %vm534, %v518, 0
      %v587 = vsel %vm534, %v519, 0
      %v590 = vsel %vm534, %v520, 0
      %v593 = vsel %vm534, %v521, 0
      %v596 = vsel %vm534, %v522, 0
      %v599 = vsel %vm534, %v523, 0
      %v602 = vsel %vm534, %v524, 0
      %v605 = vsel %vm534, %v525, 0
      %v608 = vsel %vm534, %v526, 0
      %v611 = vsel %vm534, %v527, 0
      %v614 = vsel %vm534, %v528, 0
      %v617 = vsel %vm534, %v529, 0
      %v620 = vsel %vm534, %v530, 0
      %v623 = vsel %vm534, %v531, 0
      %v626 = vsel %vm534, %v532, 0
      %v629 = vsel %vm534, %v533, 0
      %631 = vmatprep.subr.mxu0 %v467
      %632 = vmatpush1.msra.mxu0 %v466
      %633 = vmatprep.subr.mxu0 0.0
      %634 = vmatpush1.msra.mxu0 0.0
      %635 = vmatprep.subr.mxu0 0.0
      %636 = vmatpush1.msra.mxu0 0.0
      %637 = vmatprep.subr.mxu0 0.0
      %638 = vmatpush1.msra.mxu0 0.0
      %639 = vmatprep.subr.mxu0 0.0
      %640 = vmatpush1.msra.mxu0 0.0
      %641 = vmatprep.subr.mxu0 0.0
      %642 = vmatpush1.msra.mxu0 0.0
      %643 = vmatprep.subr.mxu0 0.0
      %644 = vmatpush1.msra.mxu0 0.0
      %645 = vmatprep.subr.mxu0 0.0
      %646 = vmatpush1.msra.mxu0 0.0
      %647 = vmatprep.subr.mxu0 0.0
      %648 = vmatpush1.msra.mxu0 0.0
      %649 = vmatprep.subr.mxu0 0.0
      %650 = vmatpush1.msra.mxu0 0.0
      %651 = vmatprep.subr.mxu0 0.0
      %652 = vmatpush1.msra.mxu0 0.0
      %653 = vmatprep.subr.mxu0 0.0
      %654 = vmatpush1.msra.mxu0 0.0
      %655 = vmatprep.subr.mxu0 0.0
      %656 = vmatpush1.msra.mxu0 0.0
      %657 = vmatprep.subr.mxu0 0.0
      %658 = vmatpush1.msra.mxu0 0.0
      %659 = vmatprep.subr.mxu0 0.0
      %660 = vmatpush1.msra.mxu0 0.0
      %661 = vmatprep.subr.mxu0 0.0
      %662 = vmatpush1.msra.mxu0 0.0
      %663 = vmatprep.subr.mxu0 0.0
      %664 = vmatpush1.msra.mxu0 0.0
      %665 = vmatprep.subr.mxu0 0.0
      %666 = vmatpush1.msra.mxu0 0.0
      %667 = vmatprep.subr.mxu0 0.0
      %668 = vmatpush1.msra.mxu0 0.0
      %669 = vmatprep.subr.mxu0 0.0
      %670 = vmatpush1.msra.mxu0 0.0
      %671 = vmatprep.subr.mxu0 0.0
      %672 = vmatpush1.msra.mxu0 0.0
      %673 = vmatprep.subr.mxu0 0.0
      %674 = vmatpush1.msra.mxu0 0.0
      %675 = vmatprep.subr.mxu0 0.0
      %676 = vmatpush1.msra.mxu0 0.0
      %677 = vmatprep.subr.mxu0 0.0
      %678 = vmatpush1.msra.mxu0 0.0
      %679 = vmatprep.subr.mxu0 0.0
      %680 = vmatpush1.msra.mxu0 0.0
      %681 = vmatprep.subr.mxu0 0.0
      %682 = vmatpush1.msra.mxu0 0.0
      %683 = vmatprep.subr.mxu0 0.0
      %684 = vmatpush1.msra.mxu0 0.0
      %685 = vmatprep.subr.mxu0 0.0
      %686 = vmatpush1.msra.mxu0 0.0
      %687 = vmatprep.subr.mxu0 0.0
      %688 = vmatpush1.msra.mxu0 0.0
      %689 = vmatprep.subr.mxu0 0.0
      %690 = vmatpush1.msra.mxu0 0.0
      %691 = vmatprep.subr.mxu0 0.0
      %692 = vmatpush1.msra.mxu0 0.0
      %693 = vmatprep.subr.mxu0 0.0
      %694 = vmatpush1.msra.mxu0 0.0
      %695 = vmatprep.mubr.f32.mxu0 0.0
      %696 = vmatmul.mubr.f32.gmra.mrb[0].mxu0 %v536
      %v697 = vpop.f32.mrb[0].mxu0
      %v698 = vadd.f32 0.0, %v697
      %v699 = vpop.f32.mrb[0].mxu0
      %v700 = vadd.f32 0.0, %v699
      %701 = vmatprep.mubr.f32.mxu0 0.0
      %702 = vmatmul.mubr.f32.gmra.mrb[0].mxu0 %v539
      %v703 = vpop.f32.mrb[0].mxu0
      %v704 = vadd.f32 0.0, %v703
      %v705 = vpop.f32.mrb[0].mxu0
      %v706 = vadd.f32 0.0, %v705
      %707 = vmatprep.mubr.f32.mxu0 0.0
      %708 = vmatmul.mubr.f32.gmra.mrb[0].mxu0 %v542
      %v709 = vpop.f32.mrb[0].mxu0
      %v710 = vadd.f32 0.0, %v709
      %v711 = vpop.f32.mrb[0].mxu0
      %v712 = vadd.f32 0.0, %v711
      %713 = vmatprep.mubr.f32.mxu0 0.0
      %714 = vmatmul.mubr.f32.gmra.mrb[0].mxu0 %v545
      %v715 = vpop.f32.mrb[0].mxu0
      %v716 = vadd.f32 0.0, %v715
      %v717 = vpop.f32.mrb[0].mxu0
      %v718 = vadd.f32 0.0, %v717
      %719 = vmatprep.mubr.f32.mxu0 0.0
      %720 = vmatmul.mubr.f32.gmra.mrb[0].mxu0 %v548
      %v721 = vpop.f32.mrb[0].mxu0
      %v722 = vadd.f32 0.0, %v721
      %v723 = vpop.f32.mrb[0].mxu0
      %v724 = vadd.f32 0.0, %v723
      %725 = vmatprep.mubr.f32.mxu0 0.0
      %726 = vmatmul.mubr.f32.gmra.mrb[0].mxu0 %v551
      %v727 = vpop.f32.mrb[0].mxu0
      %v728 = vadd.f32 0.0, %v727
      %v729 = vpop.f32.mrb[0].mxu0
      %v730 = vadd.f32 0.0, %v729
      %731 = vmatprep.mubr.f32.mxu0 0.0
      %732 = vmatmul.mubr.f32.gmra.mrb[0].mxu0 %v554
      %v733 = vpop.f32.mrb[0].mxu0
      %v734 = vadd.f32 0.0, %v733
      %v735 = vpop.f32.mrb[0].mxu0
      %v736 = vadd.f32 0.0, %v735
      %737 = vmatprep.mubr.f32.mxu0 0.0
      %738 = vmatmul.mubr.f32.gmra.mrb[0].mxu0 %v557
      %v739 = vpop.f32.mrb[0].mxu0
      %v740 = vadd.f32 0.0, %v739
      %v741 = vpop.f32.mrb[0].mxu0
      %v742 = vadd.f32 0.0, %v741
      %743 = vmatprep.mubr.f32.mxu0 0.0
      %744 = vmatmul.mubr.f32.gmra.mrb[0].mxu0 %v560
      %v745 = vpop.f32.mrb[0].mxu0
      %v746 = vadd.f32 0.0, %v745
      %v747 = vpop.f32.mrb[0].mxu0
      %v748 = vadd.f32 0.0, %v747
      %749 = vmatprep.mubr.f32.mxu0 0.0
      %750 = vmatmul.mubr.f32.gmra.mrb[0].mxu0 %v563
      %v751 = vpop.f32.mrb[0].mxu0
      %v752 = vadd.f32 0.0, %v751
      %v753 = vpop.f32.mrb[0].mxu0
      %v754 = vadd.f32 0.0, %v753
      %755 = vmatprep.mubr.f32.mxu0 0.0
      %756 = vmatmul.mubr.f32.gmra.mrb[0].mxu0 %v566
      %v757 = vpop.f32.mrb[0].mxu0
      %v758 = vadd.f32 0.0, %v757
      %v759 = vpop.f32.mrb[0].mxu0
      %v760 = vadd.f32 0.0, %v759
      %761 = vmatprep.mubr.f32.mxu0 0.0
      %762 = vmatmul.mubr.f32.gmra.mrb[0].mxu0 %v569
      %v763 = vpop.f32.mrb[0].mxu0
      %v764 = vadd.f32 0.0, %v763
      %v765 = vpop.f32.mrb[0].mxu0
      %v766 = vadd.f32 0.0, %v765
      %767 = vmatprep.mubr.f32.mxu0 0.0
      %768 = vmatmul.mubr.f32.gmra.mrb[0].mxu0 %v572
      %v769 = vpop.f32.mrb[0].mxu0
      %v770 = vadd.f32 0.0, %v769
      %v771 = vpop.f32.mrb[0].mxu0
      %v772 = vadd.f32 0.0, %v771
      %773 = vmatprep.mubr.f32.mxu0 0.0
      %774 = vmatmul.mubr.f32.gmra.mrb[0].mxu0 %v575
      %v775 = vpop.f32.mrb[0].mxu0
      %v776 = vadd.f32 0.0, %v775
      %v777 = vpop.f32.mrb[0].mxu0
      %v778 = vadd.f32 0.0, %v777
      %779 = vmatprep.mubr.f32.mxu0 0.0
      %780 = vmatmul.mubr.f32.gmra.mrb[0].mxu0 %v578
      %v781 = vpop.f32.mrb[0].mxu0
      %v782 = vadd.f32 0.0, %v781
      %v783 = vpop.f32.mrb[0].mxu0
      %v784 = vadd.f32 0.0, %v783
      %785 = vmatprep.mubr.f32.mxu0 0.0
      %786 = vmatmul.mubr.f32.gmra.mrb[0].mxu0 %v581
      %v787 = vpop.f32.mrb[0].mxu0
      %v788 = vadd.f32 0.0, %v787
      %v789 = vpop.f32.mrb[0].mxu0
      %v790 = vadd.f32 0.0, %v789
      %791 = vmatprep.mubr.f32.mxu0 0.0
      %792 = vmatmul.mubr.f32.gmra.mrb[0].mxu0 %v584
      %v793 = vpop.f32.mrb[0].mxu0
      %v794 = vadd.f32 0.0, %v793
      %v795 = vpop.f32.mrb[0].mxu0
      %v796 = vadd.f32 0.0, %v795
      %797 = vmatprep.mubr.f32.mxu0 0.0
      %798 = vmatmul.mubr.f32.gmra.mrb[0].mxu0 %v587
      %v799 = vpop.f32.mrb[0].mxu0
      %v800 = vadd.f32 0.0, %v799
      %v801 = vpop.f32.mrb[0].mxu0
      %v802 = vadd.f32 0.0, %v801
      %803 = vmatprep.mubr.f32.mxu0 0.0
      %804 = vmatmul.mubr.f32.gmra.mrb[0].mxu0 %v590
      %v805 = vpop.f32.mrb[0].mxu0
      %v806 = vadd.f32 0.0, %v805
      %v807 = vpop.f32.mrb[0].mxu0
      %v808 = vadd.f32 0.0, %v807
      %809 = vmatprep.mubr.f32.mxu0 0.0
      %810 = vmatmul.mubr.f32.gmra.mrb[0].mxu0 %v593
      %v811 = vpop.f32.mrb[0].mxu0
      %v812 = vadd.f32 0.0, %v811
      %v813 = vpop.f32.mrb[0].mxu0
      %v814 = vadd.f32 0.0, %v813
      %815 = vmatprep.mubr.f32.mxu0 0.0
      %816 = vmatmul.mubr.f32.gmra.mrb[0].mxu0 %v596
      %v817 = vpop.f32.mrb[0].mxu0
      %v818 = vadd.f32 0.0, %v817
      %v819 = vpop.f32.mrb[0].mxu0
      %v820 = vadd.f32 0.0, %v819
      %821 = vmatprep.mubr.f32.mxu0 0.0
      %822 = vmatmul.mubr.f32.gmra.mrb[0].mxu0 %v599
      %v823 = vpop.f32.mrb[0].mxu0
      %v824 = vadd.f32 0.0, %v823
      %v825 = vpop.f32.mrb[0].mxu0
      %v826 = vadd.f32 0.0, %v825
      %827 = vmatprep.mubr.f32.mxu0 0.0
      %828 = vmatmul.mubr.f32.gmra.mrb[0].mxu0 %v602
      %v829 = vpop.f32.mrb[0].mxu0
      %v830 = vadd.f32 0.0, %v829
      %v831 = vpop.f32.mrb[0].mxu0
      %v832 = vadd.f32 0.0, %v831
      %833 = vmatprep.mubr.f32.mxu0 0.0
      %834 = vmatmul.mubr.f32.gmra.mrb[0].mxu0 %v605
      %v835 = vpop.f32.mrb[0].mxu0
      %v836 = vadd.f32 0.0, %v835
      %v837 = vpop.f32.mrb[0].mxu0
      %v838 = vadd.f32 0.0, %v837
      %839 = vmatprep.mubr.f32.mxu0 0.0
      %840 = vmatmul.mubr.f32.gmra.mrb[0].mxu0 %v608
      %v841 = vpop.f32.mrb[0].mxu0
      %v842 = vadd.f32 0.0, %v841
      %v843 = vpop.f32.mrb[0].mxu0
      %v844 = vadd.f32 0.0, %v843
      %845 = vmatprep.mubr.f32.mxu0 0.0
      %846 = vmatmul.mubr.f32.gmra.mrb[0].mxu0 %v611
      %v847 = vpop.f32.mrb[0].mxu0
      %v848 = vadd.f32 0.0, %v847
      %v849 = vpop.f32.mrb[0].mxu0
      %v850 = vadd.f32 0.0, %v849
      %851 = vmatprep.mubr.f32.mxu0 0.0
      %852 = vmatmul.mubr.f32.gmra.mrb[0].mxu0 %v614
      %v853 = vpop.f32.mrb[0].mxu0
      %v854 = vadd.f32 0.0, %v853
      %v855 = vpop.f32.mrb[0].mxu0
      %v856 = vadd.f32 0.0, %v855
      %857 = vmatprep.mubr.f32.mxu0 0.0
      %858 = vmatmul.mubr.f32.gmra.mrb[0].mxu0 %v617
      %v859 = vpop.f32.mrb[0].mxu0
      %v860 = vadd.f32 0.0, %v859
      %v861 = vpop.f32.mrb[0].mxu0
      %v862 = vadd.f32 0.0, %v861
      %863 = vmatprep.mubr.f32.mxu0 0.0
      %864 = vmatmul.mubr.f32.gmra.mrb[0].mxu0 %v620
      %v865 = vpop.f32.mrb[0].mxu0
      %v866 = vadd.f32 0.0, %v865
      %v867 = vpop.f32.mrb[0].mxu0
      %v868 = vadd.f32 0.0, %v867
      %869 = vmatprep.mubr.f32.mxu0 0.0
      %870 = vmatmul.mubr.f32.gmra.mrb[0].mxu0 %v623
      %v871 = vpop.f32.mrb[0].mxu0
      %v872 = vadd.f32 0.0, %v871
      %v873 = vpop.f32.mrb[0].mxu0
      %v874 = vadd.f32 0.0, %v873
      %875 = vmatprep.mubr.f32.mxu0 0.0
      %876 = vmatmul.mubr.f32.gmra.mrb[0].mxu0 %v626
      %v877 = vpop.f32.mrb[0].mxu0
      %v878 = vadd.f32 0.0, %v877
      %v879 = vpop.f32.mrb[0].mxu0
      %v880 = vadd.f32 0.0, %v879
      %881 = vmatprep.mubr.f32.mxu0 0.0
      %882 = vmatmul.mubr.f32.gmra.mrb[0].mxu0 %v629
      %v883 = vpop.f32.mrb[0].mxu0
      %v884 = vadd.f32 0.0, %v883
      %v885 = vpop.f32.mrb[0].mxu0
      %v886 = vadd.f32 0.0, %v885
      %887 = vdwg.mxu0
      %v888 = vmax.f32 %v698, %v700
      %889 = vmax.xlane.f32.xlu0 %v888
      %v890 = vpop.xlane.xlu0 %889
      %v891 = vmax.f32 %v704, %v706
      %892 = vmax.xlane.f32.xlu0 %v891
      %v893 = vpop.xlane.xlu0 %892
      %v894 = vmax.f32 %v710, %v712
      %895 = vmax.xlane.f32.xlu0 %v894
      %v896 = vpop.xlane.xlu0 %895
      %v897 = vmax.f32 %v716, %v718
      %898 = vmax.xlane.f32.xlu0 %v897
      %v899 = vpop.xlane.xlu0 %898
      %v900 = vmax.f32 %v722, %v724
      %901 = vmax.xlane.f32.xlu0 %v900
      %v902 = vpop.xlane.xlu0 %901
      %v903 = vmax.f32 %v728, %v730
      %904 = vmax.xlane.f32.xlu0 %v903
      %v905 = vpop.xlane.xlu0 %904
      %v906 = vmax.f32 %v734, %v736
      %907 = vmax.xlane.f32.xlu0 %v906
      %v908 = vpop.xlane.xlu0 %907
      %v909 = vmax.f32 %v740, %v742
      %910 = vmax.xlane.f32.xlu0 %v909
      %v911 = vpop.xlane.xlu0 %910
      %v912 = vmax.f32 %v746, %v748
      %913 = vmax.xlane.f32.xlu0 %v912
      %v914 = vpop.xlane.xlu0 %913
      %v915 = vmax.f32 %v752, %v754
      %916 = vmax.xlane.f32.xlu0 %v915
      %v917 = vpop.xlane.xlu0 %916
      %v918 = vmax.f32 %v758, %v760
      %919 = vmax.xlane.f32.xlu0 %v918
      %v920 = vpop.xlane.xlu0 %919
      %v921 = vmax.f32 %v764, %v766
      %922 = vmax.xlane.f32.xlu0 %v921
      %v923 = vpop.xlane.xlu0 %922
      %v924 = vmax.f32 %v770, %v772
      %925 = vmax.xlane.f32.xlu0 %v924
      %v926 = vpop.xlane.xlu0 %925
      %v927 = vmax.f32 %v776, %v778
      %928 = vmax.xlane.f32.xlu0 %v927
      %v929 = vpop.xlane.xlu0 %928
      %v930 = vmax.f32 %v782, %v784
      %931 = vmax.xlane.f32.xlu0 %v930
      %v932 = vpop.xlane.xlu0 %931
      %v933 = vmax.f32 %v788, %v790
      %934 = vmax.xlane.f32.xlu0 %v933
      %v935 = vpop.xlane.xlu0 %934
      %v936 = vmax.f32 %v794, %v796
      %937 = vmax.xlane.f32.xlu0 %v936
      %v938 = vpop.xlane.xlu0 %937
      %v939 = vmax.f32 %v800, %v802
      %940 = vmax.xlane.f32.xlu0 %v939
      %v941 = vpop.xlane.xlu0 %940
      %v942 = vmax.f32 %v806, %v808
      %943 = vmax.xlane.f32.xlu0 %v942
      %v944 = vpop.xlane.xlu0 %943
      %v945 = vmax.f32 %v812, %v814
      %946 = vmax.xlane.f32.xlu0 %v945
      %v947 = vpop.xlane.xlu0 %946
      %v948 = vmax.f32 %v818, %v820
      %949 = vmax.xlane.f32.xlu0 %v948
      %v950 = vpop.xlane.xlu0 %949
      %v951 = vmax.f32 %v824, %v826
      %952 = vmax.xlane.f32.xlu0 %v951
      %v953 = vpop.xlane.xlu0 %952
      %v954 = vmax.f32 %v830, %v832
      %955 = vmax.xlane.f32.xlu0 %v954
      %v956 = vpop.xlane.xlu0 %955
      %v957 = vmax.f32 %v836, %v838
      %958 = vmax.xlane.f32.xlu0 %v957
      %v959 = vpop.xlane.xlu0 %958
      %v960 = vmax.f32 %v842, %v844
      %961 = vmax.xlane.f32.xlu0 %v960
      %v962 = vpop.xlane.xlu0 %961
      %v963 = vmax.f32 %v848, %v850
      %964 = vmax.xlane.f32.xlu0 %v963
      %v965 = vpop.xlane.xlu0 %964
      %v966 = vmax.f32 %v854, %v856
      %967 = vmax.xlane.f32.xlu0 %v966
      %v968 = vpop.xlane.xlu0 %967
      %v969 = vmax.f32 %v860, %v862
      %970 = vmax.xlane.f32.xlu0 %v969
      %v971 = vpop.xlane.xlu0 %970
      %v972 = vmax.f32 %v866, %v868
      %973 = vmax.xlane.f32.xlu0 %v972
      %v974 = vpop.xlane.xlu0 %973
      %v975 = vmax.f32 %v872, %v874
      %976 = vmax.xlane.f32.xlu0 %v975
      %v977 = vpop.xlane.xlu0 %976
      %v978 = vmax.f32 %v878, %v880
      %979 = vmax.xlane.f32.xlu0 %v978
      %v980 = vpop.xlane.xlu0 %979
      %v981 = vmax.f32 %v884, %v886
      %982 = vmax.xlane.f32.xlu0 %v981
      %v983 = vpop.xlane.xlu0 %982
      %v984 = vsub.f32 %v698, %v890
      %v985 = vsub.f32 %v700, %v890
      %v986 = vsub.f32 %v704, %v893
      %v987 = vsub.f32 %v706, %v893
      %v988 = vsub.f32 %v710, %v896
      %v989 = vsub.f32 %v712, %v896
      %v990 = vsub.f32 %v716, %v899
      %v991 = vsub.f32 %v718, %v899
      %v992 = vsub.f32 %v722, %v902
      %v993 = vsub.f32 %v724, %v902
      %v994 = vsub.f32 %v728, %v905
      %v995 = vsub.f32 %v730, %v905
      %v996 = vsub.f32 %v734, %v908
      %v997 = vsub.f32 %v736, %v908
      %v998 = vsub.f32 %v740, %v911
      %v999 = vsub.f32 %v742, %v911
      %v1000 = vsub.f32 %v746, %v914
      %v1001 = vsub.f32 %v748, %v914
      %v1002 = vsub.f32 %v752, %v917
      %v1003 = vsub.f32 %v754, %v917
      %v1004 = vsub.f32 %v758, %v920
      %v1005 = vsub.f32 %v760, %v920
      %v1006 = vsub.f32 %v764, %v923
      %v1007 = vsub.f32 %v766, %v923
      %v1008 = vsub.f32 %v770, %v926
      %v1009 = vsub.f32 %v772, %v926
      %v1010 = vsub.f32 %v776, %v929
      %v1011 = vsub.f32 %v778, %v929
      %v1012 = vsub.f32 %v782, %v932
      %v1013 = vsub.f32 %v784, %v932
      %v1014 = vsub.f32 %v788, %v935
      %v1015 = vsub.f32 %v790, %v935
      %v1016 = vsub.f32 %v794, %v938
      %v1017 = vsub.f32 %v796, %v938
      %v1018 = vsub.f32 %v800, %v941
      %v1019 = vsub.f32 %v802, %v941
      %v1020 = vsub.f32 %v806, %v944
      %v1021 = vsub.f32 %v808, %v944
      %v1022 = vsub.f32 %v812, %v947
      %v1023 = vsub.f32 %v814, %v947
      %v1024 = vsub.f32 %v818, %v950
      %v1025 = vsub.f32 %v820, %v950
      %v1026 = vsub.f32 %v824, %v953
      %v1027 = vsub.f32 %v826, %v953
      %v1028 = vsub.f32 %v830, %v956
      %v1029 = vsub.f32 %v832, %v956
      %v1030 = vsub.f32 %v836, %v959
      %v1031 = vsub.f32 %v838, %v959
      %v1032 = vsub.f32 %v842, %v962
      %v1033 = vsub.f32 %v844, %v962
      %v1034 = vsub.f32 %v848, %v965
      %v1035 = vsub.f32 %v850, %v965
      %v1036 = vsub.f32 %v854, %v968
      %v1037 = vsub.f32 %v856, %v968
      %v1038 = vsub.f32 %v860, %v971
      %v1039 = vsub.f32 %v862, %v971
      %v1040 = vsub.f32 %v866, %v974
      %v1041 = vsub.f32 %v868, %v974
      %v1042 = vsub.f32 %v872, %v977
      %v1043 = vsub.f32 %v874, %v977
      %v1044 = vsub.f32 %v878, %v980
      %v1045 = vsub.f32 %v880, %v980
      %v1046 = vsub.f32 %v884, %v983
      %v1047 = vsub.f32 %v886, %v983
      %v1048 = vmul.f32 %v984, 1.442695
      %v1049 = vpow.pop %v1048
      %v1050 = vmul.f32 %v985, 1.442695
      %v1051 = vpow.pop %v1050
      %v1052 = vmul.f32 %v986, 1.442695
      %v1053 = vpow.pop %v1052
      %v1054 = vmul.f32 %v987, 1.442695
      %v1055 = vpow.pop %v1054
      %v1056 = vmul.f32 %v988, 1.442695
      %v1057 = vpow.pop %v1056
      %v1058 = vmul.f32 %v989, 1.442695
      %v1059 = vpow.pop %v1058
      %v1060 = vmul.f32 %v990, 1.442695
      %v1061 = vpow.pop %v1060
      %v1062 = vmul.f32 %v991, 1.442695
      %v1063 = vpow.pop %v1062
      %v1064 = vmul.f32 %v992, 1.442695
      %v1065 = vpow.pop %v1064
      %v1066 = vmul.f32 %v993, 1.442695
      %v1067 = vpow.pop %v1066
      %v1068 = vmul.f32 %v994, 1.442695
      %v1069 = vpow.pop %v1068
      %v1070 = vmul.f32 %v995, 1.442695
      %v1071 = vpow.pop %v1070
      %v1072 = vmul.f32 %v996, 1.442695
      %v1073 = vpow.pop %v1072
      %v1074 = vmul.f32 %v997, 1.442695
      %v1075 = vpow.pop %v1074
      %v1076 = vmul.f32 %v998, 1.442695
      %v1077 = vpow.pop %v1076
      %v1078 = vmul.f32 %v999, 1.442695
      %v1079 = vpow.pop %v1078
      %v1080 = vmul.f32 %v1000, 1.442695
      %v1081 = vpow.pop %v1080
      %v1082 = vmul.f32 %v1001, 1.442695
      %v1083 = vpow.pop %v1082
      %v1084 = vmul.f32 %v1002, 1.442695
      %v1085 = vpow.pop %v1084
      %v1086 = vmul.f32 %v1003, 1.442695
      %v1087 = vpow.pop %v1086
      %v1088 = vmul.f32 %v1004, 1.442695
      %v1089 = vpow.pop %v1088
      %v1090 = vmul.f32 %v1005, 1.442695
      %v1091 = vpow.pop %v1090
      %v1092 = vmul.f32 %v1006, 1.442695
      %v1093 = vpow.pop %v1092
      %v1094 = vmul.f32 %v1007, 1.442695
      %v1095 = vpow.pop %v1094
      %v1096 = vmul.f32 %v1008, 1.442695
      %v1097 = vpow.pop %v1096
      %v1098 = vmul.f32 %v1009, 1.442695
      %v1099 = vpow.pop %v1098
      %v1100 = vmul.f32 %v1010, 1.442695
      %v1101 = vpow.pop %v1100
      %v1102 = vmul.f32 %v1011, 1.442695
      %v1103 = vpow.pop %v1102
      %v1104 = vmul.f32 %v1012, 1.442695
      %v1105 = vpow.pop %v1104
      %v1106 = vmul.f32 %v1013, 1.442695
      %v1107 = vpow.pop %v1106
      %v1108 = vmul.f32 %v1014, 1.442695
      %v1109 = vpow.pop %v1108
      %v1110 = vmul.f32 %v1015, 1.442695
      %v1111 = vpow.pop %v1110
      %v1112 = vmul.f32 %v1016, 1.442695
      %v1113 = vpow.pop %v1112
      %v1114 = vmul.f32 %v1017, 1.442695
      %v1115 = vpow.pop %v1114
      %v1116 = vmul.f32 %v1018, 1.442695
      %v1117 = vpow.pop %v1116
      %v1118 = vmul.f32 %v1019, 1.442695
      %v1119 = vpow.pop %v1118
      %v1120 = vmul.f32 %v1020, 1.442695
      %v1121 = vpow.pop %v1120
      %v1122 = vmul.f32 %v1021, 1.442695
      %v1123 = vpow.pop %v1122
      %v1124 = vmul.f32 %v1022, 1.442695
      %v1125 = vpow.pop %v1124
      %v1126 = vmul.f32 %v1023, 1.442695
      %v1127 = vpow.pop %v1126
      %v1128 = vmul.f32 %v1024, 1.442695
      %v1129 = vpow.pop %v1128
      %v1130 = vmul.f32 %v1025, 1.442695
      %v1131 = vpow.pop %v1130
      %v1132 = vmul.f32 %v1026, 1.442695
      %v1133 = vpow.pop %v1132
      %v1134 = vmul.f32 %v1027, 1.442695
      %v1135 = vpow.pop %v1134
      %v1136 = vmul.f32 %v1028, 1.442695
      %v1137 = vpow.pop %v1136
      %v1138 = vmul.f32 %v1029, 1.442695
      %v1139 = vpow.pop %v1138
      %v1140 = vmul.f32 %v1030, 1.442695
      %v1141 = vpow.pop %v1140
      %v1142 = vmul.f32 %v1031, 1.442695
      %v1143 = vpow.pop %v1142
      %v1144 = vmul.f32 %v1032, 1.442695
      %v1145 = vpow.pop %v1144
      %v1146 = vmul.f32 %v1033, 1.442695
      %v1147 = vpow.pop %v1146
      %v1148 = vmul.f32 %v1034, 1.442695
      %v1149 = vpow.pop %v1148
      %v1150 = vmul.f32 %v1035, 1.442695
      %v1151 = vpow.pop %v1150
      %v1152 = vmul.f32 %v1036, 1.442695
      %v1153 = vpow.pop %v1152
      %v1154 = vmul.f32 %v1037, 1.442695
      %v1155 = vpow.pop %v1154
      %v1156 = vmul.f32 %v1038, 1.442695
      %v1157 = vpow.pop %v1156
      %v1158 = vmul.f32 %v1039, 1.442695
      %v1159 = vpow.pop %v1158
      %v1160 = vmul.f32 %v1040, 1.442695
      %v1161 = vpow.pop %v1160
      %v1162 = vmul.f32 %v1041, 1.442695
      %v1163 = vpow.pop %v1162
      %v1164 = vmul.f32 %v1042, 1.442695
      %v1165 = vpow.pop %v1164
      %v1166 = vmul.f32 %v1043, 1.442695
      %v1167 = vpow.pop %v1166
      %v1168 = vmul.f32 %v1044, 1.442695
      %v1169 = vpow.pop %v1168
      %v1170 = vmul.f32 %v1045, 1.442695
      %v1171 = vpow.pop %v1170
      %v1172 = vmul.f32 %v1046, 1.442695
      %v1173 = vpow.pop %v1172
      %v1174 = vmul.f32 %v1047, 1.442695
      %v1175 = vpow.pop %v1174
      %v1176 = vadd.f32 %v1049, %v1051
      %1177 = vadd.xlane.f32.xlu0 %v1176
      %v1178 = vpop.xlane.xlu0 %1177
      %v1179 = vadd.f32 %v1053, %v1055
      %1180 = vadd.xlane.f32.xlu0 %v1179
      %v1181 = vpop.xlane.xlu0 %1180
      %v1182 = vadd.f32 %v1057, %v1059
      %1183 = vadd.xlane.f32.xlu0 %v1182
      %v1184 = vpop.xlane.xlu0 %1183
      %v1185 = vadd.f32 %v1061, %v1063
      %1186 = vadd.xlane.f32.xlu0 %v1185
      %v1187 = vpop.xlane.xlu0 %1186
      %v1188 = vadd.f32 %v1065, %v1067
      %1189 = vadd.xlane.f32.xlu0 %v1188
      %v1190 = vpop.xlane.xlu0 %1189
      %v1191 = vadd.f32 %v1069, %v1071
      %1192 = vadd.xlane.f32.xlu0 %v1191
      %v1193 = vpop.xlane.xlu0 %1192
      %v1194 = vadd.f32 %v1073, %v1075
      %1195 = vadd.xlane.f32.xlu0 %v1194
      %v1196 = vpop.xlane.xlu0 %1195
      %v1197 = vadd.f32 %v1077, %v1079
      %1198 = vadd.xlane.f32.xlu0 %v1197
      %v1199 = vpop.xlane.xlu0 %1198
      %v1200 = vadd.f32 %v1081, %v1083
      %1201 = vadd.xlane.f32.xlu0 %v1200
      %v1202 = vpop.xlane.xlu0 %1201
      %v1203 = vadd.f32 %v1085, %v1087
      %1204 = vadd.xlane.f32.xlu0 %v1203
      %v1205 = vpop.xlane.xlu0 %1204
      %v1206 = vadd.f32 %v1089, %v1091
      %1207 = vadd.xlane.f32.xlu0 %v1206
      %v1208 = vpop.xlane.xlu0 %1207
      %v1209 = vadd.f32 %v1093, %v1095
      %1210 = vadd.xlane.f32.xlu0 %v1209
      %v1211 = vpop.xlane.xlu0 %1210
      %v1212 = vadd.f32 %v1097, %v1099
      %1213 = vadd.xlane.f32.xlu0 %v1212
      %v1214 = vpop.xlane.xlu0 %1213
      %v1215 = vadd.f32 %v1101, %v1103
      %1216 = vadd.xlane.f32.xlu0 %v1215
      %v1217 = vpop.xlane.xlu0 %1216
      %v1218 = vadd.f32 %v1105, %v1107
      %1219 = vadd.xlane.f32.xlu0 %v1218
      %v1220 = vpop.xlane.xlu0 %1219
      %v1221 = vadd.f32 %v1109, %v1111
      %1222 = vadd.xlane.f32.xlu0 %v1221
      %v1223 = vpop.xlane.xlu0 %1222
      %v1224 = vadd.f32 %v1113, %v1115
      %1225 = vadd.xlane.f32.xlu0 %v1224
      %v1226 = vpop.xlane.xlu0 %1225
      %v1227 = vadd.f32 %v1117, %v1119
      %1228 = vadd.xlane.f32.xlu0 %v1227
      %v1229 = vpop.xlane.xlu0 %1228
      %v1230 = vadd.f32 %v1121, %v1123
      %1231 = vadd.xlane.f32.xlu0 %v1230
      %v1232 = vpop.xlane.xlu0 %1231
      %v1233 = vadd.f32 %v1125, %v1127
      %1234 = vadd.xlane.f32.xlu0 %v1233
      %v1235 = vpop.xlane.xlu0 %1234
      %v1236 = vadd.f32 %v1129, %v1131
      %1237 = vadd.xlane.f32.xlu0 %v1236
      %v1238 = vpop.xlane.xlu0 %1237
      %v1239 = vadd.f32 %v1133, %v1135
      %1240 = vadd.xlane.f32.xlu0 %v1239
      %v1241 = vpop.xlane.xlu0 %1240
      %v1242 = vadd.f32 %v1137, %v1139
      %1243 = vadd.xlane.f32.xlu0 %v1242
      %v1244 = vpop.xlane.xlu0 %1243
      %v1245 = vadd.f32 %v1141, %v1143
      %1246 = vadd.xlane.f32.xlu0 %v1245
      %v1247 = vpop.xlane.xlu0 %1246
      %v1248 = vadd.f32 %v1145, %v1147
      %1249 = vadd.xlane.f32.xlu0 %v1248
      %v1250 = vpop.xlane.xlu0 %1249
      %v1251 = vadd.f32 %v1149, %v1151
      %1252 = vadd.xlane.f32.xlu0 %v1251
      %v1253 = vpop.xlane.xlu0 %1252
      %v1254 = vadd.f32 %v1153, %v1155
      %1255 = vadd.xlane.f32.xlu0 %v1254
      %v1256 = vpop.xlane.xlu0 %1255
      %v1257 = vadd.f32 %v1157, %v1159
      %1258 = vadd.xlane.f32.xlu0 %v1257
      %v1259 = vpop.xlane.xlu0 %1258
      %v1260 = vadd.f32 %v1161, %v1163
      %1261 = vadd.xlane.f32.xlu0 %v1260
      %v1262 = vpop.xlane.xlu0 %1261
      %v1263 = vadd.f32 %v1165, %v1167
      %1264 = vadd.xlane.f32.xlu0 %v1263
      %v1265 = vpop.xlane.xlu0 %1264
      %v1266 = vadd.f32 %v1169, %v1171
      %1267 = vadd.xlane.f32.xlu0 %v1266
      %v1268 = vpop.xlane.xlu0 %1267
      %v1269 = vadd.f32 %v1173, %v1175
      %1270 = vadd.xlane.f32.xlu0 %v1269
      %v1271 = vpop.xlane.xlu0 %1270
      %v1272 = vrcp.pop %v1178
      %v1273 = vrcp.pop %v1181
      %v1274 = vrcp.pop %v1184
      %v1275 = vrcp.pop %v1187
      %v1276 = vrcp.pop %v1190
      %v1277 = vrcp.pop %v1193
      %v1278 = vrcp.pop %v1196
      %v1279 = vrcp.pop %v1199
      %v1280 = vrcp.pop %v1202
      %v1281 = vrcp.pop %v1205
      %v1282 = vrcp.pop %v1208
      %v1283 = vrcp.pop %v1211
      %v1284 = vrcp.pop %v1214
      %v1285 = vrcp.pop %v1217
      %v1286 = vrcp.pop %v1220
      %v1287 = vrcp.pop %v1223
      %v1288 = vrcp.pop %v1226
      %v1289 = vrcp.pop %v1229
      %v1290 = vrcp.pop %v1232
      %v1291 = vrcp.pop %v1235
      %v1292 = vrcp.pop %v1238
      %v1293 = vrcp.pop %v1241
      %v1294 = vrcp.pop %v1244
      %v1295 = vrcp.pop %v1247
      %v1296 = vrcp.pop %v1250
      %v1297 = vrcp.pop %v1253
      %v1298 = vrcp.pop %v1256
      %v1299 = vrcp.pop %v1259
      %v1300 = vrcp.pop %v1262
      %v1301 = vrcp.pop %v1265
      %v1302 = vrcp.pop %v1268
      %v1303 = vrcp.pop %v1271
      %v1304 = vmul.f32 %v1049, %v1272
      %v1305 = vmul.f32 %v1051, %v1272
      %v1306 = vmul.f32 %v1053, %v1273
      %v1307 = vmul.f32 %v1055, %v1273
      %v1308 = vmul.f32 %v1057, %v1274
      %v1309 = vmul.f32 %v1059, %v1274
      %v1310 = vmul.f32 %v1061, %v1275
      %v1311 = vmul.f32 %v1063, %v1275
      %v1312 = vmul.f32 %v1065, %v1276
      %v1313 = vmul.f32 %v1067, %v1276
      %v1314 = vmul.f32 %v1069, %v1277
      %v1315 = vmul.f32 %v1071, %v1277
      %v1316 = vmul.f32 %v1073, %v1278
      %v1317 = vmul.f32 %v1075, %v1278
      %v1318 = vmul.f32 %v1077, %v1279
      %v1319 = vmul.f32 %v1079, %v1279
      %v1320 = vmul.f32 %v1081, %v1280
      %v1321 = vmul.f32 %v1083, %v1280
      %v1322 = vmul.f32 %v1085, %v1281
      %v1323 = vmul.f32 %v1087, %v1281
      %v1324 = vmul.f32 %v1089, %v1282
      %v1325 = vmul.f32 %v1091, %v1282
      %v1326 = vmul.f32 %v1093, %v1283
      %v1327 = vmul.f32 %v1095, %v1283
      %v1328 = vmul.f32 %v1097, %v1284
      %v1329 = vmul.f32 %v1099, %v1284
      %v1330 = vmul.f32 %v1101, %v1285
      %v1331 = vmul.f32 %v1103, %v1285
      %v1332 = vmul.f32 %v1105, %v1286
      %v1333 = vmul.f32 %v1107, %v1286
      %v1334 = vmul.f32 %v1109, %v1287
      %v1335 = vmul.f32 %v1111, %v1287
      %v1336 = vmul.f32 %v1113, %v1288
      %v1337 = vmul.f32 %v1115, %v1288
      %v1338 = vmul.f32 %v1117, %v1289
      %v1339 = vmul.f32 %v1119, %v1289
      %v1340 = vmul.f32 %v1121, %v1290
      %v1341 = vmul.f32 %v1123, %v1290
      %v1342 = vmul.f32 %v1125, %v1291
      %v1343 = vmul.f32 %v1127, %v1291
      %v1344 = vmul.f32 %v1129, %v1292
      %v1345 = vmul.f32 %v1131, %v1292
      %v1346 = vmul.f32 %v1133, %v1293
      %v1347 = vmul.f32 %v1135, %v1293
      %v1348 = vmul.f32 %v1137, %v1294
      %v1349 = vmul.f32 %v1139, %v1294
      %v1350 = vmul.f32 %v1141, %v1295
      %v1351 = vmul.f32 %v1143, %v1295
      %v1352 = vmul.f32 %v1145, %v1296
      %v1353 = vmul.f32 %v1147, %v1296
      %v1354 = vmul.f32 %v1149, %v1297
      %v1355 = vmul.f32 %v1151, %v1297
      %v1356 = vmul.f32 %v1153, %v1298
      %v1357 = vmul.f32 %v1155, %v1298
      %v1358 = vmul.f32 %v1157, %v1299
      %v1359 = vmul.f32 %v1159, %v1299
      %v1360 = vmul.f32 %v1161, %v1300
      %v1361 = vmul.f32 %v1163, %v1300
      %v1362 = vmul.f32 %v1165, %v1301
      %v1363 = vmul.f32 %v1167, %v1301
      %v1364 = vmul.f32 %v1169, %v1302
      %v1365 = vmul.f32 %v1171, %v1302
      %v1366 = vmul.f32 %v1173, %v1303
      %v1367 = vmul.f32 %v1175, %v1303
      %1368 = vmatprep.subr.mxu0 %v1305
      %1369 = vmatpush1.xpose.msra.mxu0 %v1304
      %1370 = vmatprep.subr.mxu0 %v1307
      %1371 = vmatpush1.xpose.msra.mxu0 %v1306
      %1372 = vmatprep.subr.mxu0 %v1309
      %1373 = vmatpush1.xpose.msra.mxu0 %v1308
      %1374 = vmatprep.subr.mxu0 %v1311
      %1375 = vmatpush1.xpose.msra.mxu0 %v1310
      %1376 = vmatprep.subr.mxu0 %v1313
      %1377 = vmatpush1.xpose.msra.mxu0 %v1312
      %1378 = vmatprep.subr.mxu0 %v1315
      %1379 = vmatpush1.xpose.msra.mxu0 %v1314
      %1380 = vmatprep.subr.mxu0 %v1317
      %1381 = vmatpush1.xpose.msra.mxu0 %v1316
      %1382 = vmatprep.subr.mxu0 %v1319
      %1383 = vmatpush1.xpose.msra.mxu0 %v1318
      %1384 = vmatprep.subr.mxu0 %v1321
      %1385 = vmatpush1.xpose.msra.mxu0 %v1320
      %1386 = vmatprep.subr.mxu0 %v1323
      %1387 = vmatpush1.xpose.msra.mxu0 %v1322
      %1388 = vmatprep.subr.mxu0 %v1325
      %1389 = vmatpush1.xpose.msra.mxu0 %v1324
      %1390 = vmatprep.subr.mxu0 %v1327
      %1391 = vmatpush1.xpose.msra.mxu0 %v1326
      %1392 = vmatprep.subr.mxu0 %v1329
      %1393 = vmatpush1.xpose.msra.mxu0 %v1328
      %1394 = vmatprep.subr.mxu0 %v1331
      %1395 = vmatpush1.xpose.msra.mxu0 %v1330
      %1396 = vmatprep.subr.mxu0 %v1333
      %1397 = vmatpush1.xpose.msra.mxu0 %v1332
      %1398 = vmatprep.subr.mxu0 %v1335
      %1399 = vmatpush1.xpose.msra.mxu0 %v1334
      %1400 = vmatprep.subr.mxu0 %v1337
      %1401 = vmatpush1.xpose.msra.mxu0 %v1336
      %1402 = vmatprep.subr.mxu0 %v1339
      %1403 = vmatpush1.xpose.msra.mxu0 %v1338
      %1404 = vmatprep.subr.mxu0 %v1341
      %1405 = vmatpush1.xpose.msra.mxu0 %v1340
      %1406 = vmatprep.subr.mxu0 %v1343
      %1407 = vmatpush1.xpose.msra.mxu0 %v1342
      %1408 = vmatprep.subr.mxu0 %v1345
      %1409 = vmatpush1.xpose.msra.mxu0 %v1344
      %1410 = vmatprep.subr.mxu0 %v1347
      %1411 = vmatpush1.xpose.msra.mxu0 %v1346
      %1412 = vmatprep.subr.mxu0 %v1349
      %1413 = vmatpush1.xpose.msra.mxu0 %v1348
      %1414 = vmatprep.subr.mxu0 %v1351
      %1415 = vmatpush1.xpose.msra.mxu0 %v1350
      %1416 = vmatprep.subr.mxu0 %v1353
      %1417 = vmatpush1.xpose.msra.mxu0 %v1352
      %1418 = vmatprep.subr.mxu0 %v1355
      %1419 = vmatpush1.xpose.msra.mxu0 %v1354
      %1420 = vmatprep.subr.mxu0 %v1357
      %1421 = vmatpush1.xpose.msra.mxu0 %v1356
      %1422 = vmatprep.subr.mxu0 %v1359
      %1423 = vmatpush1.xpose.msra.mxu0 %v1358
      %1424 = vmatprep.subr.mxu0 %v1361
      %1425 = vmatpush1.xpose.msra.mxu0 %v1360
      %1426 = vmatprep.subr.mxu0 %v1363
      %1427 = vmatpush1.xpose.msra.mxu0 %v1362
      %1428 = vmatprep.subr.mxu0 %v1365
      %1429 = vmatpush1.xpose.msra.mxu0 %v1364
      %1430 = vmatprep.subr.mxu0 %v1367
      %1431 = vmatpush1.xpose.msra.mxu0 %v1366
      %1432 = vmatprep.mubr.f32.mxu0 %v469
      %1433 = vmatmul.mubr.f32.gmra.mrb[0].mxu0 %v468
      %v1434 = vpop.f32.mrb[0].mxu0
      %v1435 = vadd.f32 0.0, %v1434
      %v1436 = vpop.f32.mrb[0].mxu0
      %v1437 = vadd.f32 0.0, %v1436
      %1438 = vdwg.mxu0
      %v1439 = vld [vmem:[#allocation2 + $0x50] sm:$0xff]
      %v1440 = vld [vmem:[#allocation2 + $0x58] sm:$0xff]
      %v1441 = vld [vmem:[#allocation2 + $0x90] sm:$0xff]
      %v1442 = vld [vmem:[#allocation2 + $0x98] sm:$0xff]
      %1443 = vxpose.xlu0.b32.start [1/16] %v450, 128
      %1444 = vxpose.xlu0.b32.cont [2/16] 0.0, 128
      %1445 = vxpose.xlu0.b32.cont [3/16] 0.0, 128
      %1446 = vxpose.xlu0.b32.cont [4/16] 0.0, 128
      %1447 = vxpose.xlu0.b32.cont [5/16] 0.0, 128
      %1448 = vxpose.xlu0.b32.cont [6/16] 0.0, 128
      %1449 = vxpose.xlu0.b32.cont [7/16] 0.0, 128
      %1450 = vxpose.xlu0.b32.cont [8/16] 0.0, 128
      %1451 = vxpose.xlu0.b32.cont [9/16] 0.0, 128
      %1452 = vxpose.xlu0.b32.cont [10/16] 0.0, 128
      %1453 = vxpose.xlu0.b32.cont [11/16] 0.0, 128
      %1454 = vxpose.xlu0.b32.cont [12/16] 0.0, 128
      %1455 = vxpose.xlu0.b32.cont [13/16] 0.0, 128
      %1456 = vxpose.xlu0.b32.cont [14/16] 0.0, 128
      %1457 = vxpose.xlu0.b32.cont [15/16] 0.0, 128
      %1458 = vxpose.xlu0.b32.end [16/16] 0.0, 128
      %v1459 = vpop.trf.xlu0
      %v1460 = vpop.trf.xlu0
      %v1461 = vpop.trf.xlu0
      %v1462 = vpop.trf.xlu0
      %v1463 = vpop.trf.xlu0
      %v1464 = vpop.trf.xlu0
      %v1465 = vpop.trf.xlu0
      %v1466 = vpop.trf.xlu0
      %v1467 = vpop.trf.xlu0
      %v1468 = vpop.trf.xlu0
      %v1469 = vpop.trf.xlu0
      %v1470 = vpop.trf.xlu0
      %v1471 = vpop.trf.xlu0
      %v1472 = vpop.trf.xlu0
      %v1473 = vpop.trf.xlu0
      %v1474 = vpop.trf.xlu0
      %1475 = vxpose.xlu0.b32.start [1/16] %v451, 128
      %1476 = vxpose.xlu0.b32.cont [2/16] 0.0, 128
      %1477 = vxpose.xlu0.b32.cont [3/16] 0.0, 128
      %1478 = vxpose.xlu0.b32.cont [4/16] 0.0, 128
      %1479 = vxpose.xlu0.b32.cont [5/16] 0.0, 128
      %1480 = vxpose.xlu0.b32.cont [6/16] 0.0, 128
      %1481 = vxpose.xlu0.b32.cont [7/16] 0.0, 128
      %1482 = vxpose.xlu0.b32.cont [8/16] 0.0, 128
      %1483 = vxpose.xlu0.b32.cont [9/16] 0.0, 128
      %1484 = vxpose.xlu0.b32.cont [10/16] 0.0, 128
      %1485 = vxpose.xlu0.b32.cont [11/16] 0.0, 128
      %1486 = vxpose.xlu0.b32.cont [12/16] 0.0, 128
      %1487 = vxpose.xlu0.b32.cont [13/16] 0.0, 128
      %1488 = vxpose.xlu0.b32.cont [14/16] 0.0, 128
      %1489 = vxpose.xlu0.b32.cont [15/16] 0.0, 128
      %1490 = vxpose.xlu0.b32.end [16/16] 0.0, 128
      %v1491 = vpop.trf.xlu0
      %v1492 = vpop.trf.xlu0
      %v1493 = vpop.trf.xlu0
      %v1494 = vpop.trf.xlu0
      %v1495 = vpop.trf.xlu0
      %v1496 = vpop.trf.xlu0
      %v1497 = vpop.trf.xlu0
      %v1498 = vpop.trf.xlu0
      %v1499 = vpop.trf.xlu0
      %v1500 = vpop.trf.xlu0
      %v1501 = vpop.trf.xlu0
      %v1502 = vpop.trf.xlu0
      %v1503 = vpop.trf.xlu0
      %v1504 = vpop.trf.xlu0
      %v1505 = vpop.trf.xlu0
      %v1506 = vpop.trf.xlu0
      %v1508 = vsel %vm534, %v1459, 0
      %v1511 = vsel %vm534, %v1460, 0
      %v1514 = vsel %vm534, %v1461, 0
      %v1517 = vsel %vm534, %v1462, 0
      %v1520 = vsel %vm534, %v1463, 0
      %v1523 = vsel %vm534, %v1464, 0
      %v1526 = vsel %vm534, %v1465, 0
      %v1529 = vsel %vm534, %v1466, 0
      %v1532 = vsel %vm534, %v1467, 0
      %v1535 = vsel %vm534, %v1468, 0
      %v1538 = vsel %vm534, %v1469, 0
      %v1541 = vsel %vm534, %v1470, 0
      %v1544 = vsel %vm534, %v1471, 0
      %v1547 = vsel %vm534, %v1472, 0
      %v1550 = vsel %vm534, %v1473, 0
      %v1553 = vsel %vm534, %v1474, 0
      %v1556 = vsel %vm534, %v1491, 0
      %v1559 = vsel %vm534, %v1492, 0
      %v1562 = vsel %vm534, %v1493, 0
      %v1565 = vsel %vm534, %v1494, 0
      %v1568 = vsel %vm534, %v1495, 0
      %v1571 = vsel %vm534, %v1496, 0
      %v1574 = vsel %vm534, %v1497, 0
      %v1577 = vsel %vm534, %v1498, 0
      %v1580 = vsel %vm534, %v1499, 0
      %v1583 = vsel %vm534, %v1500, 0
      %v1586 = vsel %vm534, %v1501, 0
      %v1589 = vsel %vm534, %v1502, 0
      %v1592 = vsel %vm534, %v1503, 0
      %v1595 = vsel %vm534, %v1504, 0
      %v1598 = vsel %vm534, %v1505, 0
      %v1601 = vsel %vm534, %v1506, 0
      %1603 = vmatprep.subr.mxu0 %v1440
      %1604 = vmatpush1.msra.mxu0 %v1439
      %1605 = vmatprep.subr.mxu0 0.0
      %1606 = vmatpush1.msra.mxu0 0.0
      %1607 = vmatprep.subr.mxu0 0.0
      %1608 = vmatpush1.msra.mxu0 0.0
      %1609 = vmatprep.subr.mxu0 0.0
      %1610 = vmatpush1.msra.mxu0 0.0
      %1611 = vmatprep.subr.mxu0 0.0
      %1612 = vmatpush1.msra.mxu0 0.0
      %1613 = vmatprep.subr.mxu0 0.0
      %1614 = vmatpush1.msra.mxu0 0.0
      %1615 = vmatprep.subr.mxu0 0.0
      %1616 = vmatpush1.msra.mxu0 0.0
      %1617 = vmatprep.subr.mxu0 0.0
      %1618 = vmatpush1.msra.mxu0 0.0
      %1619 = vmatprep.subr.mxu0 0.0
      %1620 = vmatpush1.msra.mxu0 0.0
      %1621 = vmatprep.subr.mxu0 0.0
      %1622 = vmatpush1.msra.mxu0 0.0
      %1623 = vmatprep.subr.mxu0 0.0
      %1624 = vmatpush1.msra.mxu0 0.0
      %1625 = vmatprep.subr.mxu0 0.0
      %1626 = vmatpush1.msra.mxu0 0.0
      %1627 = vmatprep.subr.mxu0 0.0
      %1628 = vmatpush1.msra.mxu0 0.0
      %1629 = vmatprep.subr.mxu0 0.0
      %1630 = vmatpush1.msra.mxu0 0.0
      %1631 = vmatprep.subr.mxu0 0.0
      %1632 = vmatpush1.msra.mxu0 0.0
      %1633 = vmatprep.subr.mxu0 0.0
      %1634 = vmatpush1.msra.mxu0 0.0
      %1635 = vmatprep.subr.mxu0 0.0
      %1636 = vmatpush1.msra.mxu0 0.0
      %1637 = vmatprep.subr.mxu0 0.0
      %1638 = vmatpush1.msra.mxu0 0.0
      %1639 = vmatprep.subr.mxu0 0.0
      %1640 = vmatpush1.msra.mxu0 0.0
      %1641 = vmatprep.subr.mxu0 0.0
      %1642 = vmatpush1.msra.mxu0 0.0
      %1643 = vmatprep.subr.mxu0 0.0
      %1644 = vmatpush1.msra.mxu0 0.0
      %1645 = vmatprep.subr.mxu0 0.0
      %1646 = vmatpush1.msra.mxu0 0.0
      %1647 = vmatprep.subr.mxu0 0.0
      %1648 = vmatpush1.msra.mxu0 0.0
      %1649 = vmatprep.subr.mxu0 0.0
      %1650 = vmatpush1.msra.mxu0 0.0
      %1651 = vmatprep.subr.mxu0 0.0
      %1652 = vmatpush1.msra.mxu0 0.0
      %1653 = vmatprep.subr.mxu0 0.0
      %1654 = vmatpush1.msra.mxu0 0.0
      %1655 = vmatprep.subr.mxu0 0.0
      %1656 = vmatpush1.msra.mxu0 0.0
      %1657 = vmatprep.subr.mxu0 0.0
      %1658 = vmatpush1.msra.mxu0 0.0
      %1659 = vmatprep.subr.mxu0 0.0
      %1660 = vmatpush1.msra.mxu0 0.0
      %1661 = vmatprep.subr.mxu0 0.0
      %1662 = vmatpush1.msra.mxu0 0.0
      %1663 = vmatprep.subr.mxu0 0.0
      %1664 = vmatpush1.msra.mxu0 0.0
      %1665 = vmatprep.subr.mxu0 0.0
      %1666 = vmatpush1.msra.mxu0 0.0
      %1667 = vmatprep.mubr.f32.mxu0 0.0
      %1668 = vmatmul.mubr.f32.gmra.mrb[0].mxu0 %v1508
      %v1669 = vpop.f32.mrb[0].mxu0
      %v1670 = vadd.f32 0.0, %v1669
      %v1671 = vpop.f32.mrb[0].mxu0
      %v1672 = vadd.f32 0.0, %v1671
      %1673 = vmatprep.mubr.f32.mxu0 0.0
      %1674 = vmatmul.mubr.f32.gmra.mrb[0].mxu0 %v1511
      %v1675 = vpop.f32.mrb[0].mxu0
      %v1676 = vadd.f32 0.0, %v1675
      %v1677 = vpop.f32.mrb[0].mxu0
      %v1678 = vadd.f32 0.0, %v1677
      %1679 = vmatprep.mubr.f32.mxu0 0.0
      %1680 = vmatmul.mubr.f32.gmra.mrb[0].mxu0 %v1514
      %v1681 = vpop.f32.mrb[0].mxu0
      %v1682 = vadd.f32 0.0, %v1681
      %v1683 = vpop.f32.mrb[0].mxu0
      %v1684 = vadd.f32 0.0, %v1683
      %1685 = vmatprep.mubr.f32.mxu0 0.0
      %1686 = vmatmul.mubr.f32.gmra.mrb[0].mxu0 %v1517
      %v1687 = vpop.f32.mrb[0].mxu0
      %v1688 = vadd.f32 0.0, %v1687
      %v1689 = vpop.f32.mrb[0].mxu0
      %v1690 = vadd.f32 0.0, %v1689
      %1691 = vmatprep.mubr.f32.mxu0 0.0
      %1692 = vmatmul.mubr.f32.gmra.mrb[0].mxu0 %v1520
      %v1693 = vpop.f32.mrb[0].mxu0
      %v1694 = vadd.f32 0.0, %v1693
      %v1695 = vpop.f32.mrb[0].mxu0
      %v1696 = vadd.f32 0.0, %v1695
      %1697 = vmatprep.mubr.f32.mxu0 0.0
      %1698 = vmatmul.mubr.f32.gmra.mrb[0].mxu0 %v1523
      %v1699 = vpop.f32.mrb[0].mxu0
      %v1700 = vadd.f32 0.0, %v1699
      %v1701 = vpop.f32.mrb[0].mxu0
      %v1702 = vadd.f32 0.0, %v1701
      %1703 = vmatprep.mubr.f32.mxu0 0.0
      %1704 = vmatmul.mubr.f32.gmra.mrb[0].mxu0 %v1526
      %v1705 = vpop.f32.mrb[0].mxu0
      %v1706 = vadd.f32 0.0, %v1705
      %v1707 = vpop.f32.mrb[0].mxu0
      %v1708 = vadd.f32 0.0, %v1707
      %1709 = vmatprep.mubr.f32.mxu0 0.0
      %1710 = vmatmul.mubr.f32.gmra.mrb[0].mxu0 %v1529
      %v1711 = vpop.f32.mrb[0].mxu0
      %v1712 = vadd.f32 0.0, %v1711
      %v1713 = vpop.f32.mrb[0].mxu0
      %v1714 = vadd.f32 0.0, %v1713
      %1715 = vmatprep.mubr.f32.mxu0 0.0
      %1716 = vmatmul.mubr.f32.gmra.mrb[0].mxu0 %v1532
      %v1717 = vpop.f32.mrb[0].mxu0
      %v1718 = vadd.f32 0.0, %v1717
      %v1719 = vpop.f32.mrb[0].mxu0
      %v1720 = vadd.f32 0.0, %v1719
      %1721 = vmatprep.mubr.f32.mxu0 0.0
      %1722 = vmatmul.mubr.f32.gmra.mrb[0].mxu0 %v1535
      %v1723 = vpop.f32.mrb[0].mxu0
      %v1724 = vadd.f32 0.0, %v1723
      %v1725 = vpop.f32.mrb[0].mxu0
      %v1726 = vadd.f32 0.0, %v1725
      %1727 = vmatprep.mubr.f32.mxu0 0.0
      %1728 = vmatmul.mubr.f32.gmra.mrb[0].mxu0 %v1538
      %v1729 = vpop.f32.mrb[0].mxu0
      %v1730 = vadd.f32 0.0, %v1729
      %v1731 = vpop.f32.mrb[0].mxu0
      %v1732 = vadd.f32 0.0, %v1731
      %1733 = vmatprep.mubr.f32.mxu0 0.0
      %1734 = vmatmul.mubr.f32.gmra.mrb[0].mxu0 %v1541
      %v1735 = vpop.f32.mrb[0].mxu0
      %v1736 = vadd.f32 0.0, %v1735
      %v1737 = vpop.f32.mrb[0].mxu0
      %v1738 = vadd.f32 0.0, %v1737
      %1739 = vmatprep.mubr.f32.mxu0 0.0
      %1740 = vmatmul.mubr.f32.gmra.mrb[0].mxu0 %v1544
      %v1741 = vpop.f32.mrb[0].mxu0
      %v1742 = vadd.f32 0.0, %v1741
      %v1743 = vpop.f32.mrb[0].mxu0
      %v1744 = vadd.f32 0.0, %v1743
      %1745 = vmatprep.mubr.f32.mxu0 0.0
      %1746 = vmatmul.mubr.f32.gmra.mrb[0].mxu0 %v1547
      %v1747 = vpop.f32.mrb[0].mxu0
      %v1748 = vadd.f32 0.0, %v1747
      %v1749 = vpop.f32.mrb[0].mxu0
      %v1750 = vadd.f32 0.0, %v1749
      %1751 = vmatprep.mubr.f32.mxu0 0.0
      %1752 = vmatmul.mubr.f32.gmra.mrb[0].mxu0 %v1550
      %v1753 = vpop.f32.mrb[0].mxu0
      %v1754 = vadd.f32 0.0, %v1753
      %v1755 = vpop.f32.mrb[0].mxu0
      %v1756 = vadd.f32 0.0, %v1755
      %1757 = vmatprep.mubr.f32.mxu0 0.0
      %1758 = vmatmul.mubr.f32.gmra.mrb[0].mxu0 %v1553
      %v1759 = vpop.f32.mrb[0].mxu0
      %v1760 = vadd.f32 0.0, %v1759
      %v1761 = vpop.f32.mrb[0].mxu0
      %v1762 = vadd.f32 0.0, %v1761
      %1763 = vmatprep.mubr.f32.mxu0 0.0
      %1764 = vmatmul.mubr.f32.gmra.mrb[0].mxu0 %v1556
      %v1765 = vpop.f32.mrb[0].mxu0
      %v1766 = vadd.f32 0.0, %v1765
      %v1767 = vpop.f32.mrb[0].mxu0
      %v1768 = vadd.f32 0.0, %v1767
      %1769 = vmatprep.mubr.f32.mxu0 0.0
      %1770 = vmatmul.mubr.f32.gmra.mrb[0].mxu0 %v1559
      %v1771 = vpop.f32.mrb[0].mxu0
      %v1772 = vadd.f32 0.0, %v1771
      %v1773 = vpop.f32.mrb[0].mxu0
      %v1774 = vadd.f32 0.0, %v1773
      %1775 = vmatprep.mubr.f32.mxu0 0.0
      %1776 = vmatmul.mubr.f32.gmra.mrb[0].mxu0 %v1562
      %v1777 = vpop.f32.mrb[0].mxu0
      %v1778 = vadd.f32 0.0, %v1777
      %v1779 = vpop.f32.mrb[0].mxu0
      %v1780 = vadd.f32 0.0, %v1779
      %1781 = vmatprep.mubr.f32.mxu0 0.0
      %1782 = vmatmul.mubr.f32.gmra.mrb[0].mxu0 %v1565
      %v1783 = vpop.f32.mrb[0].mxu0
      %v1784 = vadd.f32 0.0, %v1783
      %v1785 = vpop.f32.mrb[0].mxu0
      %v1786 = vadd.f32 0.0, %v1785
      %1787 = vmatprep.mubr.f32.mxu0 0.0
      %1788 = vmatmul.mubr.f32.gmra.mrb[0].mxu0 %v1568
      %v1789 = vpop.f32.mrb[0].mxu0
      %v1790 = vadd.f32 0.0, %v1789
      %v1791 = vpop.f32.mrb[0].mxu0
      %v1792 = vadd.f32 0.0, %v1791
      %1793 = vmatprep.mubr.f32.mxu0 0.0
      %1794 = vmatmul.mubr.f32.gmra.mrb[0].mxu0 %v1571
      %v1795 = vpop.f32.mrb[0].mxu0
      %v1796 = vadd.f32 0.0, %v1795
      %v1797 = vpop.f32.mrb[0].mxu0
      %v1798 = vadd.f32 0.0, %v1797
      %1799 = vmatprep.mubr.f32.mxu0 0.0
      %1800 = vmatmul.mubr.f32.gmra.mrb[0].mxu0 %v1574
      %v1801 = vpop.f32.mrb[0].mxu0
      %v1802 = vadd.f32 0.0, %v1801
      %v1803 = vpop.f32.mrb[0].mxu0
      %v1804 = vadd.f32 0.0, %v1803
      %1805 = vmatprep.mubr.f32.mxu0 0.0
      %1806 = vmatmul.mubr.f32.gmra.mrb[0].mxu0 %v1577
      %v1807 = vpop.f32.mrb[0].mxu0
      %v1808 = vadd.f32 0.0, %v1807
      %v1809 = vpop.f32.mrb[0].mxu0
      %v1810 = vadd.f32 0.0, %v1809
      %1811 = vmatprep.mubr.f32.mxu0 0.0
      %1812 = vmatmul.mubr.f32.gmra.mrb[0].mxu0 %v1580
      %v1813 = vpop.f32.mrb[0].mxu0
      %v1814 = vadd.f32 0.0, %v1813
      %v1815 = vpop.f32.mrb[0].mxu0
      %v1816 = vadd.f32 0.0, %v1815
      %1817 = vmatprep.mubr.f32.mxu0 0.0
      %1818 = vmatmul.mubr.f32.gmra.mrb[0].mxu0 %v1583
      %v1819 = vpop.f32.mrb[0].mxu0
      %v1820 = vadd.f32 0.0, %v1819
      %v1821 = vpop.f32.mrb[0].mxu0
      %v1822 = vadd.f32 0.0, %v1821
      %1823 = vmatprep.mubr.f32.mxu0 0.0
      %1824 = vmatmul.mubr.f32.gmra.mrb[0].mxu0 %v1586
      %v1825 = vpop.f32.mrb[0].mxu0
      %v1826 = vadd.f32 0.0, %v1825
      %v1827 = vpop.f32.mrb[0].mxu0
      %v1828 = vadd.f32 0.0, %v1827
      %1829 = vmatprep.mubr.f32.mxu0 0.0
      %1830 = vmatmul.mubr.f32.gmra.mrb[0].mxu0 %v1589
      %v1831 = vpop.f32.mrb[0].mxu0
      %v1832 = vadd.f32 0.0, %v1831
      %v1833 = vpop.f32.mrb[0].mxu0
      %v1834 = vadd.f32 0.0, %v1833
      %1835 = vmatprep.mubr.f32.mxu0 0.0
      %1836 = vmatmul.mubr.f32.gmra.mrb[0].mxu0 %v1592
      %v1837 = vpop.f32.mrb[0].mxu0
      %v1838 = vadd.f32 0.0, %v1837
      %v1839 = vpop.f32.mrb[0].mxu0
      %v1840 = vadd.f32 0.0, %v1839
      %1841 = vmatprep.mubr.f32.mxu0 0.0
      %1842 = vmatmul.mubr.f32.gmra.mrb[0].mxu0 %v1595
      %v1843 = vpop.f32.mrb[0].mxu0
      %v1844 = vadd.f32 0.0, %v1843
      %v1845 = vpop.f32.mrb[0].mxu0
      %v1846 = vadd.f32 0.0, %v1845
      %1847 = vmatprep.mubr.f32.mxu0 0.0
      %1848 = vmatmul.mubr.f32.gmra.mrb[0].mxu0 %v1598
      %v1849 = vpop.f32.mrb[0].mxu0
      %v1850 = vadd.f32 0.0, %v1849
      %v1851 = vpop.f32.mrb[0].mxu0
      %v1852 = vadd.f32 0.0, %v1851
      %1853 = vmatprep.mubr.f32.mxu0 0.0
      %1854 = vmatmul.mubr.f32.gmra.mrb[0].mxu0 %v1601
      %v1855 = vpop.f32.mrb[0].mxu0
      %v1856 = vadd.f32 0.0, %v1855
      %v1857 = vpop.f32.mrb[0].mxu0
      %v1858 = vadd.f32 0.0, %v1857
      %1859 = vdwg.mxu0
      %v1860 = vmax.f32 %v1670, %v1672
      %1861 = vmax.xlane.f32.xlu0 %v1860
      %v1862 = vpop.xlane.xlu0 %1861
      %v1863 = vmax.f32 %v1676, %v1678
      %1864 = vmax.xlane.f32.xlu0 %v1863
      %v1865 = vpop.xlane.xlu0 %1864
      %v1866 = vmax.f32 %v1682, %v1684
      %1867 = vmax.xlane.f32.xlu0 %v1866
      %v1868 = vpop.xlane.xlu0 %1867
      %v1869 = vmax.f32 %v1688, %v1690
      %1870 = vmax.xlane.f32.xlu0 %v1869
      %v1871 = vpop.xlane.xlu0 %1870
      %v1872 = vmax.f32 %v1694, %v1696
      %1873 = vmax.xlane.f32.xlu0 %v1872
      %v1874 = vpop.xlane.xlu0 %1873
      %v1875 = vmax.f32 %v1700, %v1702
      %1876 = vmax.xlane.f32.xlu0 %v1875
      %v1877 = vpop.xlane.xlu0 %1876
      %v1878 = vmax.f32 %v1706, %v1708
      %1879 = vmax.xlane.f32.xlu0 %v1878
      %v1880 = vpop.xlane.xlu0 %1879
      %v1881 = vmax.f32 %v1712, %v1714
      %1882 = vmax.xlane.f32.xlu0 %v1881
      %v1883 = vpop.xlane.xlu0 %1882
      %v1884 = vmax.f32 %v1718, %v1720
      %1885 = vmax.xlane.f32.xlu0 %v1884
      %v1886 = vpop.xlane.xlu0 %1885
      %v1887 = vmax.f32 %v1724, %v1726
      %1888 = vmax.xlane.f32.xlu0 %v1887
      %v1889 = vpop.xlane.xlu0 %1888
      %v1890 = vmax.f32 %v1730, %v1732
      %1891 = vmax.xlane.f32.xlu0 %v1890
      %v1892 = vpop.xlane.xlu0 %1891
      %v1893 = vmax.f32 %v1736, %v1738
      %1894 = vmax.xlane.f32.xlu0 %v1893
      %v1895 = vpop.xlane.xlu0 %1894
      %v1896 = vmax.f32 %v1742, %v1744
      %1897 = vmax.xlane.f32.xlu0 %v1896
      %v1898 = vpop.xlane.xlu0 %1897
      %v1899 = vmax.f32 %v1748, %v1750
      %1900 = vmax.xlane.f32.xlu0 %v1899
      %v1901 = vpop.xlane.xlu0 %1900
      %v1902 = vmax.f32 %v1754, %v1756
      %1903 = vmax.xlane.f32.xlu0 %v1902
      %v1904 = vpop.xlane.xlu0 %1903
      %v1905 = vmax.f32 %v1760, %v1762
      %1906 = vmax.xlane.f32.xlu0 %v1905
      %v1907 = vpop.xlane.xlu0 %1906
      %v1908 = vmax.f32 %v1766, %v1768
      %1909 = vmax.xlane.f32.xlu0 %v1908
      %v1910 = vpop.xlane.xlu0 %1909
      %v1911 = vmax.f32 %v1772, %v1774
      %1912 = vmax.xlane.f32.xlu0 %v1911
      %v1913 = vpop.xlane.xlu0 %1912
      %v1914 = vmax.f32 %v1778, %v1780
      %1915 = vmax.xlane.f32.xlu0 %v1914
      %v1916 = vpop.xlane.xlu0 %1915
      %v1917 = vmax.f32 %v1784, %v1786
      %1918 = vmax.xlane.f32.xlu0 %v1917
      %v1919 = vpop.xlane.xlu0 %1918
      %v1920 = vmax.f32 %v1790, %v1792
      %1921 = vmax.xlane.f32.xlu0 %v1920
      %v1922 = vpop.xlane.xlu0 %1921
      %v1923 = vmax.f32 %v1796, %v1798
      %1924 = vmax.xlane.f32.xlu0 %v1923
      %v1925 = vpop.xlane.xlu0 %1924
      %v1926 = vmax.f32 %v1802, %v1804
      %1927 = vmax.xlane.f32.xlu0 %v1926
      %v1928 = vpop.xlane.xlu0 %1927
      %v1929 = vmax.f32 %v1808, %v1810
      %1930 = vmax.xlane.f32.xlu0 %v1929
      %v1931 = vpop.xlane.xlu0 %1930
      %v1932 = vmax.f32 %v1814, %v1816
      %1933 = vmax.xlane.f32.xlu0 %v1932
      %v1934 = vpop.xlane.xlu0 %1933
      %v1935 = vmax.f32 %v1820, %v1822
      %1936 = vmax.xlane.f32.xlu0 %v1935
      %v1937 = vpop.xlane.xlu0 %1936
      %v1938 = vmax.f32 %v1826, %v1828
      %1939 = vmax.xlane.f32.xlu0 %v1938
      %v1940 = vpop.xlane.xlu0 %1939
      %v1941 = vmax.f32 %v1832, %v1834
      %1942 = vmax.xlane.f32.xlu0 %v1941
      %v1943 = vpop.xlane.xlu0 %1942
      %v1944 = vmax.f32 %v1838, %v1840
      %1945 = vmax.xlane.f32.xlu0 %v1944
      %v1946 = vpop.xlane.xlu0 %1945
      %v1947 = vmax.f32 %v1844, %v1846
      %1948 = vmax.xlane.f32.xlu0 %v1947
      %v1949 = vpop.xlane.xlu0 %1948
      %v1950 = vmax.f32 %v1850, %v1852
      %1951 = vmax.xlane.f32.xlu0 %v1950
      %v1952 = vpop.xlane.xlu0 %1951
      %v1953 = vmax.f32 %v1856, %v1858
      %1954 = vmax.xlane.f32.xlu0 %v1953
      %v1955 = vpop.xlane.xlu0 %1954
      %v1956 = vsub.f32 %v1670, %v1862
      %v1957 = vsub.f32 %v1672, %v1862
      %v1958 = vsub.f32 %v1676, %v1865
      %v1959 = vsub.f32 %v1678, %v1865
      %v1960 = vsub.f32 %v1682, %v1868
      %v1961 = vsub.f32 %v1684, %v1868
      %v1962 = vsub.f32 %v1688, %v1871
      %v1963 = vsub.f32 %v1690, %v1871
      %v1964 = vsub.f32 %v1694, %v1874
      %v1965 = vsub.f32 %v1696, %v1874
      %v1966 = vsub.f32 %v1700, %v1877
      %v1967 = vsub.f32 %v1702, %v1877
      %v1968 = vsub.f32 %v1706, %v1880
      %v1969 = vsub.f32 %v1708, %v1880
      %v1970 = vsub.f32 %v1712, %v1883
      %v1971 = vsub.f32 %v1714, %v1883
      %v1972 = vsub.f32 %v1718, %v1886
      %v1973 = vsub.f32 %v1720, %v1886
      %v1974 = vsub.f32 %v1724, %v1889
      %v1975 = vsub.f32 %v1726, %v1889
      %v1976 = vsub.f32 %v1730, %v1892
      %v1977 = vsub.f32 %v1732, %v1892
      %v1978 = vsub.f32 %v1736, %v1895
      %v1979 = vsub.f32 %v1738, %v1895
      %v1980 = vsub.f32 %v1742, %v1898
      %v1981 = vsub.f32 %v1744, %v1898
      %v1982 = vsub.f32 %v1748, %v1901
      %v1983 = vsub.f32 %v1750, %v1901
      %v1984 = vsub.f32 %v1754, %v1904
      %v1985 = vsub.f32 %v1756, %v1904
      %v1986 = vsub.f32 %v1760, %v1907
      %v1987 = vsub.f32 %v1762, %v1907
      %v1988 = vsub.f32 %v1766, %v1910
      %v1989 = vsub.f32 %v1768, %v1910
      %v1990 = vsub.f32 %v1772, %v1913
      %v1991 = vsub.f32 %v1774, %v1913
      %v1992 = vsub.f32 %v1778, %v1916
      %v1993 = vsub.f32 %v1780, %v1916
      %v1994 = vsub.f32 %v1784, %v1919
      %v1995 = vsub.f32 %v1786, %v1919
      %v1996 = vsub.f32 %v1790, %v1922
      %v1997 = vsub.f32 %v1792, %v1922
      %v1998 = vsub.f32 %v1796, %v1925
      %v1999 = vsub.f32 %v1798, %v1925
      %v2000 = vsub.f32 %v1802, %v1928
      %v2001 = vsub.f32 %v1804, %v1928
      %v2002 = vsub.f32 %v1808, %v1931
      %v2003 = vsub.f32 %v1810, %v1931
      %v2004 = vsub.f32 %v1814, %v1934
      %v2005 = vsub.f32 %v1816, %v1934
      %v2006 = vsub.f32 %v1820, %v1937
      %v2007 = vsub.f32 %v1822, %v1937
      %v2008 = vsub.f32 %v1826, %v1940
      %v2009 = vsub.f32 %v1828, %v1940
      %v2010 = vsub.f32 %v1832, %v1943
      %v2011 = vsub.f32 %v1834, %v1943
      %v2012 = vsub.f32 %v1838, %v1946
      %v2013 = vsub.f32 %v1840, %v1946
      %v2014 = vsub.f32 %v1844, %v1949
      %v2015 = vsub.f32 %v1846, %v1949
      %v2016 = vsub.f32 %v1850, %v1952
      %v2017 = vsub.f32 %v1852, %v1952
      %v2018 = vsub.f32 %v1856, %v1955
      %v2019 = vsub.f32 %v1858, %v1955
      %v2020 = vmul.f32 %v1956, 1.442695
      %v2021 = vpow.pop %v2020
      %v2022 = vmul.f32 %v1957, 1.442695
      %v2023 = vpow.pop %v2022
      %v2024 = vmul.f32 %v1958, 1.442695
      %v2025 = vpow.pop %v2024
      %v2026 = vmul.f32 %v1959, 1.442695
      %v2027 = vpow.pop %v2026
      %v2028 = vmul.f32 %v1960, 1.442695
      %v2029 = vpow.pop %v2028
      %v2030 = vmul.f32 %v1961, 1.442695
      %v2031 = vpow.pop %v2030
      %v2032 = vmul.f32 %v1962, 1.442695
      %v2033 = vpow.pop %v2032
      %v2034 = vmul.f32 %v1963, 1.442695
      %v2035 = vpow.pop %v2034
      %v2036 = vmul.f32 %v1964, 1.442695
      %v2037 = vpow.pop %v2036
      %v2038 = vmul.f32 %v1965, 1.442695
      %v2039 = vpow.pop %v2038
      %v2040 = vmul.f32 %v1966, 1.442695
      %v2041 = vpow.pop %v2040
      %v2042 = vmul.f32 %v1967, 1.442695
      %v2043 = vpow.pop %v2042
      %v2044 = vmul.f32 %v1968, 1.442695
      %v2045 = vpow.pop %v2044
      %v2046 = vmul.f32 %v1969, 1.442695
      %v2047 = vpow.pop %v2046
      %v2048 = vmul.f32 %v1970, 1.442695
      %v2049 = vpow.pop %v2048
      %v2050 = vmul.f32 %v1971, 1.442695
      %v2051 = vpow.pop %v2050
      %v2052 = vmul.f32 %v1972, 1.442695
      %v2053 = vpow.pop %v2052
      %v2054 = vmul.f32 %v1973, 1.442695
      %v2055 = vpow.pop %v2054
      %v2056 = vmul.f32 %v1974, 1.442695
      %v2057 = vpow.pop %v2056
      %v2058 = vmul.f32 %v1975, 1.442695
      %v2059 = vpow.pop %v2058
      %v2060 = vmul.f32 %v1976, 1.442695
      %v2061 = vpow.pop %v2060
      %v2062 = vmul.f32 %v1977, 1.442695
      %v2063 = vpow.pop %v2062
      %v2064 = vmul.f32 %v1978, 1.442695
      %v2065 = vpow.pop %v2064
      %v2066 = vmul.f32 %v1979, 1.442695
      %v2067 = vpow.pop %v2066
      %v2068 = vmul.f32 %v1980, 1.442695
      %v2069 = vpow.pop %v2068
      %v2070 = vmul.f32 %v1981, 1.442695
      %v2071 = vpow.pop %v2070
      %v2072 = vmul.f32 %v1982, 1.442695
      %v2073 = vpow.pop %v2072
      %v2074 = vmul.f32 %v1983, 1.442695
      %v2075 = vpow.pop %v2074
      %v2076 = vmul.f32 %v1984, 1.442695
      %v2077 = vpow.pop %v2076
      %v2078 = vmul.f32 %v1985, 1.442695
      %v2079 = vpow.pop %v2078
      %v2080 = vmul.f32 %v1986, 1.442695
      %v2081 = vpow.pop %v2080
      %v2082 = vmul.f32 %v1987, 1.442695
      %v2083 = vpow.pop %v2082
      %v2084 = vmul.f32 %v1988, 1.442695
      %v2085 = vpow.pop %v2084
      %v2086 = vmul.f32 %v1989, 1.442695
      %v2087 = vpow.pop %v2086
      %v2088 = vmul.f32 %v1990, 1.442695
      %v2089 = vpow.pop %v2088
      %v2090 = vmul.f32 %v1991, 1.442695
      %v2091 = vpow.pop %v2090
      %v2092 = vmul.f32 %v1992, 1.442695
      %v2093 = vpow.pop %v2092
      %v2094 = vmul.f32 %v1993, 1.442695
      %v2095 = vpow.pop %v2094
      %v2096 = vmul.f32 %v1994, 1.442695
      %v2097 = vpow.pop %v2096
      %v2098 = vmul.f32 %v1995, 1.442695
      %v2099 = vpow.pop %v2098
      %v2100 = vmul.f32 %v1996, 1.442695
      %v2101 = vpow.pop %v2100
      %v2102 = vmul.f32 %v1997, 1.442695
      %v2103 = vpow.pop %v2102
      %v2104 = vmul.f32 %v1998, 1.442695
      %v2105 = vpow.pop %v2104
      %v2106 = vmul.f32 %v1999, 1.442695
      %v2107 = vpow.pop %v2106
      %v2108 = vmul.f32 %v2000, 1.442695
      %v2109 = vpow.pop %v2108
      %v2110 = vmul.f32 %v2001, 1.442695
      %v2111 = vpow.pop %v2110
      %v2112 = vmul.f32 %v2002, 1.442695
      %v2113 = vpow.pop %v2112
      %v2114 = vmul.f32 %v2003, 1.442695
      %v2115 = vpow.pop %v2114
      %v2116 = vmul.f32 %v2004, 1.442695
      %v2117 = vpow.pop %v2116
      %v2118 = vmul.f32 %v2005, 1.442695
      %v2119 = vpow.pop %v2118
      %v2120 = vmul.f32 %v2006, 1.442695
      %v2121 = vpow.pop %v2120
      %v2122 = vmul.f32 %v2007, 1.442695
      %v2123 = vpow.pop %v2122
      %v2124 = vmul.f32 %v2008, 1.442695
      %v2125 = vpow.pop %v2124
      %v2126 = vmul.f32 %v2009, 1.442695
      %v2127 = vpow.pop %v2126
      %v2128 = vmul.f32 %v2010, 1.442695
      %v2129 = vpow.pop %v2128
      %v2130 = vmul.f32 %v2011, 1.442695
      %v2131 = vpow.pop %v2130
      %v2132 = vmul.f32 %v2012, 1.442695
      %v2133 = vpow.pop %v2132
      %v2134 = vmul.f32 %v2013, 1.442695
      %v2135 = vpow.pop %v2134
      %v2136 = vmul.f32 %v2014, 1.442695
      %v2137 = vpow.pop %v2136
      %v2138 = vmul.f32 %v2015, 1.442695
      %v2139 = vpow.pop %v2138
      %v2140 = vmul.f32 %v2016, 1.442695
      %v2141 = vpow.pop %v2140
      %v2142 = vmul.f32 %v2017, 1.442695
      %v2143 = vpow.pop %v2142
      %v2144 = vmul.f32 %v2018, 1.442695
      %v2145 = vpow.pop %v2144
      %v2146 = vmul.f32 %v2019, 1.442695
      %v2147 = vpow.pop %v2146
      %v2148 = vadd.f32 %v2021, %v2023
      %2149 = vadd.xlane.f32.xlu0 %v2148
      %v2150 = vpop.xlane.xlu0 %2149
      %v2151 = vadd.f32 %v2025, %v2027
      %2152 = vadd.xlane.f32.xlu0 %v2151
      %v2153 = vpop.xlane.xlu0 %2152
      %v2154 = vadd.f32 %v2029, %v2031
      %2155 = vadd.xlane.f32.xlu0 %v2154
      %v2156 = vpop.xlane.xlu0 %2155
      %v2157 = vadd.f32 %v2033, %v2035
      %2158 = vadd.xlane.f32.xlu0 %v2157
      %v2159 = vpop.xlane.xlu0 %2158
      %v2160 = vadd.f32 %v2037, %v2039
      %2161 = vadd.xlane.f32.xlu0 %v2160
      %v2162 = vpop.xlane.xlu0 %2161
      %v2163 = vadd.f32 %v2041, %v2043
      %2164 = vadd.xlane.f32.xlu0 %v2163
      %v2165 = vpop.xlane.xlu0 %2164
      %v2166 = vadd.f32 %v2045, %v2047
      %2167 = vadd.xlane.f32.xlu0 %v2166
      %v2168 = vpop.xlane.xlu0 %2167
      %v2169 = vadd.f32 %v2049, %v2051
      %2170 = vadd.xlane.f32.xlu0 %v2169
      %v2171 = vpop.xlane.xlu0 %2170
      %v2172 = vadd.f32 %v2053, %v2055
      %2173 = vadd.xlane.f32.xlu0 %v2172
      %v2174 = vpop.xlane.xlu0 %2173
      %v2175 = vadd.f32 %v2057, %v2059
      %2176 = vadd.xlane.f32.xlu0 %v2175
      %v2177 = vpop.xlane.xlu0 %2176
      %v2178 = vadd.f32 %v2061, %v2063
      %2179 = vadd.xlane.f32.xlu0 %v2178
      %v2180 = vpop.xlane.xlu0 %2179
      %v2181 = vadd.f32 %v2065, %v2067
      %2182 = vadd.xlane.f32.xlu0 %v2181
      %v2183 = vpop.xlane.xlu0 %2182
      %v2184 = vadd.f32 %v2069, %v2071
      %2185 = vadd.xlane.f32.xlu0 %v2184
      %v2186 = vpop.xlane.xlu0 %2185
      %v2187 = vadd.f32 %v2073, %v2075
      %2188 = vadd.xlane.f32.xlu0 %v2187
      %v2189 = vpop.xlane.xlu0 %2188
      %v2190 = vadd.f32 %v2077, %v2079
      %2191 = vadd.xlane.f32.xlu0 %v2190
      %v2192 = vpop.xlane.xlu0 %2191
      %v2193 = vadd.f32 %v2081, %v2083
      %2194 = vadd.xlane.f32.xlu0 %v2193
      %v2195 = vpop.xlane.xlu0 %2194
      %v2196 = vadd.f32 %v2085, %v2087
      %2197 = vadd.xlane.f32.xlu0 %v2196
      %v2198 = vpop.xlane.xlu0 %2197
      %v2199 = vadd.f32 %v2089, %v2091
      %2200 = vadd.xlane.f32.xlu0 %v2199
      %v2201 = vpop.xlane.xlu0 %2200
      %v2202 = vadd.f32 %v2093, %v2095
      %2203 = vadd.xlane.f32.xlu0 %v2202
      %v2204 = vpop.xlane.xlu0 %2203
      %v2205 = vadd.f32 %v2097, %v2099
      %2206 = vadd.xlane.f32.xlu0 %v2205
      %v2207 = vpop.xlane.xlu0 %2206
      %v2208 = vadd.f32 %v2101, %v2103
      %2209 = vadd.xlane.f32.xlu0 %v2208
      %v2210 = vpop.xlane.xlu0 %2209
      %v2211 = vadd.f32 %v2105, %v2107
      %2212 = vadd.xlane.f32.xlu0 %v2211
      %v2213 = vpop.xlane.xlu0 %2212
      %v2214 = vadd.f32 %v2109, %v2111
      %2215 = vadd.xlane.f32.xlu0 %v2214
      %v2216 = vpop.xlane.xlu0 %2215
      %v2217 = vadd.f32 %v2113, %v2115
      %2218 = vadd.xlane.f32.xlu0 %v2217
      %v2219 = vpop.xlane.xlu0 %2218
      %v2220 = vadd.f32 %v2117, %v2119
      %2221 = vadd.xlane.f32.xlu0 %v2220
      %v2222 = vpop.xlane.xlu0 %2221
      %v2223 = vadd.f32 %v2121, %v2123
      %2224 = vadd.xlane.f32.xlu0 %v2223
      %v2225 = vpop.xlane.xlu0 %2224
      %v2226 = vadd.f32 %v2125, %v2127
      %2227 = vadd.xlane.f32.xlu0 %v2226
      %v2228 = vpop.xlane.xlu0 %2227
      %v2229 = vadd.f32 %v2129, %v2131
      %2230 = vadd.xlane.f32.xlu0 %v2229
      %v2231 = vpop.xlane.xlu0 %2230
      %v2232 = vadd.f32 %v2133, %v2135
      %2233 = vadd.xlane.f32.xlu0 %v2232
      %v2234 = vpop.xlane.xlu0 %2233
      %v2235 = vadd.f32 %v2137, %v2139
      %2236 = vadd.xlane.f32.xlu0 %v2235
      %v2237 = vpop.xlane.xlu0 %2236
      %v2238 = vadd.f32 %v2141, %v2143
      %2239 = vadd.xlane.f32.xlu0 %v2238
      %v2240 = vpop.xlane.xlu0 %2239
      %v2241 = vadd.f32 %v2145, %v2147
      %2242 = vadd.xlane.f32.xlu0 %v2241
      %v2243 = vpop.xlane.xlu0 %2242
      %v2244 = vrcp.pop %v2150
      %v2245 = vrcp.pop %v2153
      %v2246 = vrcp.pop %v2156
      %v2247 = vrcp.pop %v2159
      %v2248 = vrcp.pop %v2162
      %v2249 = vrcp.pop %v2165
      %v2250 = vrcp.pop %v2168
      %v2251 = vrcp.pop %v2171
      %v2252 = vrcp.pop %v2174
      %v2253 = vrcp.pop %v2177
      %v2254 = vrcp.pop %v2180
      %v2255 = vrcp.pop %v2183
      %v2256 = vrcp.pop %v2186
      %v2257 = vrcp.pop %v2189
      %v2258 = vrcp.pop %v2192
      %v2259 = vrcp.pop %v2195
      %v2260 = vrcp.pop %v2198
      %v2261 = vrcp.pop %v2201
      %v2262 = vrcp.pop %v2204
      %v2263 = vrcp.pop %v2207
      %v2264 = vrcp.pop %v2210
      %v2265 = vrcp.pop %v2213
      %v2266 = vrcp.pop %v2216
      %v2267 = vrcp.pop %v2219
      %v2268 = vrcp.pop %v2222
      %v2269 = vrcp.pop %v2225
      %v2270 = vrcp.pop %v2228
      %v2271 = vrcp.pop %v2231
      %v2272 = vrcp.pop %v2234
      %v2273 = vrcp.pop %v2237
      %v2274 = vrcp.pop %v2240
      %v2275 = vrcp.pop %v2243
      %v2276 = vmul.f32 %v2021, %v2244
      %v2277 = vmul.f32 %v2023, %v2244
      %v2278 = vmul.f32 %v2025, %v2245
      %v2279 = vmul.f32 %v2027, %v2245
      %v2280 = vmul.f32 %v2029, %v2246
      %v2281 = vmul.f32 %v2031, %v2246
      %v2282 = vmul.f32 %v2033, %v2247
      %v2283 = vmul.f32 %v2035, %v2247
      %v2284 = vmul.f32 %v2037, %v2248
      %v2285 = vmul.f32 %v2039, %v2248
      %v2286 = vmul.f32 %v2041, %v2249
      %v2287 = vmul.f32 %v2043, %v2249
      %v2288 = vmul.f32 %v2045, %v2250
      %v2289 = vmul.f32 %v2047, %v2250
      %v2290 = vmul.f32 %v2049, %v2251
      %v2291 = vmul.f32 %v2051, %v2251
      %v2292 = vmul.f32 %v2053, %v2252
      %v2293 = vmul.f32 %v2055, %v2252
      %v2294 = vmul.f32 %v2057, %v2253
      %v2295 = vmul.f32 %v2059, %v2253
      %v2296 = vmul.f32 %v2061, %v2254
      %v2297 = vmul.f32 %v2063, %v2254
      %v2298 = vmul.f32 %v2065, %v2255
      %v2299 = vmul.f32 %v2067, %v2255
      %v2300 = vmul.f32 %v2069, %v2256
      %v2301 = vmul.f32 %v2071, %v2256
      %v2302 = vmul.f32 %v2073, %v2257
      %v2303 = vmul.f32 %v2075, %v2257
      %v2304 = vmul.f32 %v2077, %v2258
      %v2305 = vmul.f32 %v2079, %v2258
      %v2306 = vmul.f32 %v2081, %v2259
      %v2307 = vmul.f32 %v2083, %v2259
      %v2308 = vmul.f32 %v2085, %v2260
      %v2309 = vmul.f32 %v2087, %v2260
      %v2310 = vmul.f32 %v2089, %v2261
      %v2311 = vmul.f32 %v2091, %v2261
      %v2312 = vmul.f32 %v2093, %v2262
      %v2313 = vmul.f32 %v2095, %v2262
      %v2314 = vmul.f32 %v2097, %v2263
      %v2315 = vmul.f32 %v2099, %v2263
      %v2316 = vmul.f32 %v2101, %v2264
      %v2317 = vmul.f32 %v2103, %v2264
      %v2318 = vmul.f32 %v2105, %v2265
      %v2319 = vmul.f32 %v2107, %v2265
      %v2320 = vmul.f32 %v2109, %v2266
      %v2321 = vmul.f32 %v2111, %v2266
      %v2322 = vmul.f32 %v2113, %v2267
      %v2323 = vmul.f32 %v2115, %v2267
      %v2324 = vmul.f32 %v2117, %v2268
      %v2325 = vmul.f32 %v2119, %v2268
      %v2326 = vmul.f32 %v2121, %v2269
      %v2327 = vmul.f32 %v2123, %v2269
      %v2328 = vmul.f32 %v2125, %v2270
      %v2329 = vmul.f32 %v2127, %v2270
      %v2330 = vmul.f32 %v2129, %v2271
      %v2331 = vmul.f32 %v2131, %v2271
      %v2332 = vmul.f32 %v2133, %v2272
      %v2333 = vmul.f32 %v2135, %v2272
      %v2334 = vmul.f32 %v2137, %v2273
      %v2335 = vmul.f32 %v2139, %v2273
      %v2336 = vmul.f32 %v2141, %v2274
      %v2337 = vmul.f32 %v2143, %v2274
      %v2338 = vmul.f32 %v2145, %v2275
      %v2339 = vmul.f32 %v2147, %v2275
      %2340 = vmatprep.subr.mxu0 %v2277
      %2341 = vmatpush1.xpose.msra.mxu0 %v2276
      %2342 = vmatprep.subr.mxu0 %v2279
      %2343 = vmatpush1.xpose.msra.mxu0 %v2278
      %2344 = vmatprep.subr.mxu0 %v2281
      %2345 = vmatpush1.xpose.msra.mxu0 %v2280
      %2346 = vmatprep.subr.mxu0 %v2283
      %2347 = vmatpush1.xpose.msra.mxu0 %v2282
      %2348 = vmatprep.subr.mxu0 %v2285
      %2349 = vmatpush1.xpose.msra.mxu0 %v2284
      %2350 = vmatprep.subr.mxu0 %v2287
      %2351 = vmatpush1.xpose.msra.mxu0 %v2286
      %2352 = vmatprep.subr.mxu0 %v2289
      %2353 = vmatpush1.xpose.msra.mxu0 %v2288
      %2354 = vmatprep.subr.mxu0 %v2291
      %2355 = vmatpush1.xpose.msra.mxu0 %v2290
      %2356 = vmatprep.subr.mxu0 %v2293
      %2357 = vmatpush1.xpose.msra.mxu0 %v2292
      %2358 = vmatprep.subr.mxu0 %v2295
      %2359 = vmatpush1.xpose.msra.mxu0 %v2294
      %2360 = vmatprep.subr.mxu0 %v2297
      %2361 = vmatpush1.xpose.msra.mxu0 %v2296
      %2362 = vmatprep.subr.mxu0 %v2299
      %2363 = vmatpush1.xpose.msra.mxu0 %v2298
      %2364 = vmatprep.subr.mxu0 %v2301
      %2365 = vmatpush1.xpose.msra.mxu0 %v2300
      %2366 = vmatprep.subr.mxu0 %v2303
      %2367 = vmatpush1.xpose.msra.mxu0 %v2302
      %2368 = vmatprep.subr.mxu0 %v2305
      %2369 = vmatpush1.xpose.msra.mxu0 %v2304
      %2370 = vmatprep.subr.mxu0 %v2307
      %2371 = vmatpush1.xpose.msra.mxu0 %v2306
      %2372 = vmatprep.subr.mxu0 %v2309
      %2373 = vmatpush1.xpose.msra.mxu0 %v2308
      %2374 = vmatprep.subr.mxu0 %v2311
      %2375 = vmatpush1.xpose.msra.mxu0 %v2310
      %2376 = vmatprep.subr.mxu0 %v2313
      %2377 = vmatpush1.xpose.msra.mxu0 %v2312
      %2378 = vmatprep.subr.mxu0 %v2315
      %2379 = vmatpush1.xpose.msra.mxu0 %v2314
      %2380 = vmatprep.subr.mxu0 %v2317
      %2381 = vmatpush1.xpose.msra.mxu0 %v2316
      %2382 = vmatprep.subr.mxu0 %v2319
      %2383 = vmatpush1.xpose.msra.mxu0 %v2318
      %2384 = vmatprep.subr.mxu0 %v2321
      %2385 = vmatpush1.xpose.msra.mxu0 %v2320
      %2386 = vmatprep.subr.mxu0 %v2323
      %2387 = vmatpush1.xpose.msra.mxu0 %v2322
      %2388 = vmatprep.subr.mxu0 %v2325
      %2389 = vmatpush1.xpose.msra.mxu0 %v2324
      %2390 = vmatprep.subr.mxu0 %v2327
      %2391 = vmatpush1.xpose.msra.mxu0 %v2326
      %2392 = vmatprep.subr.mxu0 %v2329
      %2393 = vmatpush1.xpose.msra.mxu0 %v2328
      %2394 = vmatprep.subr.mxu0 %v2331
      %2395 = vmatpush1.xpose.msra.mxu0 %v2330
      %2396 = vmatprep.subr.mxu0 %v2333
      %2397 = vmatpush1.xpose.msra.mxu0 %v2332
      %2398 = vmatprep.subr.mxu0 %v2335
      %2399 = vmatpush1.xpose.msra.mxu0 %v2334
      %2400 = vmatprep.subr.mxu0 %v2337
      %2401 = vmatpush1.xpose.msra.mxu0 %v2336
      %2402 = vmatprep.subr.mxu0 %v2339
      %2403 = vmatpush1.xpose.msra.mxu0 %v2338
      %2404 = vmatprep.mubr.f32.mxu0 %v1442
      %2405 = vmatmul.mubr.f32.gmra.mrb[0].mxu0 %v1441
      %v2406 = vpop.f32.mrb[0].mxu0
      %v2407 = vadd.f32 0.0, %v2406
      %v2408 = vpop.f32.mrb[0].mxu0
      %v2409 = vadd.f32 0.0, %v2408
      %2410 = vdwg.mxu0
      %v2411 = vld [vmem:[#allocation2 + $0x60] sm:$0xff]
      %v2412 = vld [vmem:[#allocation2 + $0x68] sm:$0xff]
      %v2413 = vld [vmem:[#allocation2 + $0xa0] sm:$0xff]
      %v2414 = vld [vmem:[#allocation2 + $0xa8] sm:$0xff]
      %2415 = vxpose.xlu0.b32.start [1/16] %v452, 128
      %2416 = vxpose.xlu0.b32.cont [2/16] 0.0, 128
      %2417 = vxpose.xlu0.b32.cont [3/16] 0.0, 128
      %2418 = vxpose.xlu0.b32.cont [4/16] 0.0, 128
      %2419 = vxpose.xlu0.b32.cont [5/16] 0.0, 128
      %2420 = vxpose.xlu0.b32.cont [6/16] 0.0, 128
      %2421 = vxpose.xlu0.b32.cont [7/16] 0.0, 128
      %2422 = vxpose.xlu0.b32.cont [8/16] 0.0, 128
      %2423 = vxpose.xlu0.b32.cont [9/16] 0.0, 128
      %2424 = vxpose.xlu0.b32.cont [10/16] 0.0, 128
      %2425 = vxpose.xlu0.b32.cont [11/16] 0.0, 128
      %2426 = vxpose.xlu0.b32.cont [12/16] 0.0, 128
      %2427 = vxpose.xlu0.b32.cont [13/16] 0.0, 128
      %2428 = vxpose.xlu0.b32.cont [14/16] 0.0, 128
      %2429 = vxpose.xlu0.b32.cont [15/16] 0.0, 128
      %2430 = vxpose.xlu0.b32.end [16/16] 0.0, 128
      %v2431 = vpop.trf.xlu0
      %v2432 = vpop.trf.xlu0
      %v2433 = vpop.trf.xlu0
      %v2434 = vpop.trf.xlu0
      %v2435 = vpop.trf.xlu0
      %v2436 = vpop.trf.xlu0
      %v2437 = vpop.trf.xlu0
      %v2438 = vpop.trf.xlu0
      %v2439 = vpop.trf.xlu0
      %v2440 = vpop.trf.xlu0
      %v2441 = vpop.trf.xlu0
      %v2442 = vpop.trf.xlu0
      %v2443 = vpop.trf.xlu0
      %v2444 = vpop.trf.xlu0
      %v2445 = vpop.trf.xlu0
      %v2446 = vpop.trf.xlu0
      %2447 = vxpose.xlu0.b32.start [1/16] %v453, 128
      %2448 = vxpose.xlu0.b32.cont [2/16] 0.0, 128
      %2449 = vxpose.xlu0.b32.cont [3/16] 0.0, 128
      %2450 = vxpose.xlu0.b32.cont [4/16] 0.0, 128
      %2451 = vxpose.xlu0.b32.cont [5/16] 0.0, 128
      %2452 = vxpose.xlu0.b32.cont [6/16] 0.0, 128
      %2453 = vxpose.xlu0.b32.cont [7/16] 0.0, 128
      %2454 = vxpose.xlu0.b32.cont [8/16] 0.0, 128
      %2455 = vxpose.xlu0.b32.cont [9/16] 0.0, 128
      %2456 = vxpose.xlu0.b32.cont [10/16] 0.0, 128
      %2457 = vxpose.xlu0.b32.cont [11/16] 0.0, 128
      %2458 = vxpose.xlu0.b32.cont [12/16] 0.0, 128
      %2459 = vxpose.xlu0.b32.cont [13/16] 0.0, 128
      %2460 = vxpose.xlu0.b32.cont [14/16] 0.0, 128
      %2461 = vxpose.xlu0.b32.cont [15/16] 0.0, 128
      %2462 = vxpose.xlu0.b32.end [16/16] 0.0, 128
      %v2463 = vpop.trf.xlu0
      %v2464 = vpop.trf.xlu0
      %v2465 = vpop.trf.xlu0
      %v2466 = vpop.trf.xlu0
      %v2467 = vpop.trf.xlu0
      %v2468 = vpop.trf.xlu0
      %v2469 = vpop.trf.xlu0
      %v2470 = vpop.trf.xlu0
      %v2471 = vpop.trf.xlu0
      %v2472 = vpop.trf.xlu0
      %v2473 = vpop.trf.xlu0
      %v2474 = vpop.trf.xlu0
      %v2475 = vpop.trf.xlu0
      %v2476 = vpop.trf.xlu0
      %v2477 = vpop.trf.xlu0
      %v2478 = vpop.trf.xlu0
      %v2480 = vsel %vm534, %v2431, 0
      %v2483 = vsel %vm534, %v2432, 0
      %v2486 = vsel %vm534, %v2433, 0
      %v2489 = vsel %vm534, %v2434, 0
      %v2492 = vsel %vm534, %v2435, 0
      %v2495 = vsel %vm534, %v2436, 0
      %v2498 = vsel %vm534, %v2437, 0
      %v2501 = vsel %vm534, %v2438, 0
      %v2504 = vsel %vm534, %v2439, 0
      %v2507 = vsel %vm534, %v2440, 0
      %v2510 = vsel %vm534, %v2441, 0
      %v2513 = vsel %vm534, %v2442, 0
      %v2516 = vsel %vm534, %v2443, 0
      %v2519 = vsel %vm534, %v2444, 0
      %v2522 = vsel %vm534, %v2445, 0
      %v2525 = vsel %vm534, %v2446, 0
      %v2528 = vsel %vm534, %v2463, 0
      %v2531 = vsel %vm534, %v2464, 0
      %v2534 = vsel %vm534, %v2465, 0
      %v2537 = vsel %vm534, %v2466, 0
      %v2540 = vsel %vm534, %v2467, 0
      %v2543 = vsel %vm534, %v2468, 0
      %v2546 = vsel %vm534, %v2469, 0
      %v2549 = vsel %vm534, %v2470, 0
      %v2552 = vsel %vm534, %v2471, 0
      %v2555 = vsel %vm534, %v2472, 0
      %v2558 = vsel %vm534, %v2473, 0
      %v2561 = vsel %vm534, %v2474, 0
      %v2564 = vsel %vm534, %v2475, 0
      %v2567 = vsel %vm534, %v2476, 0
      %v2570 = vsel %vm534, %v2477, 0
      %v2573 = vsel %vm534, %v2478, 0
      %2575 = vmatprep.subr.mxu0 %v2412
      %2576 = vmatpush1.msra.mxu0 %v2411
      %2577 = vmatprep.subr.mxu0 0.0
      %2578 = vmatpush1.msra.mxu0 0.0
      %2579 = vmatprep.subr.mxu0 0.0
      %2580 = vmatpush1.msra.mxu0 0.0
      %2581 = vmatprep.subr.mxu0 0.0
      %2582 = vmatpush1.msra.mxu0 0.0
      %2583 = vmatprep.subr.mxu0 0.0
      %2584 = vmatpush1.msra.mxu0 0.0
      %2585 = vmatprep.subr.mxu0 0.0
      %2586 = vmatpush1.msra.mxu0 0.0
      %2587 = vmatprep.subr.mxu0 0.0
      %2588 = vmatpush1.msra.mxu0 0.0
      %2589 = vmatprep.subr.mxu0 0.0
      %2590 = vmatpush1.msra.mxu0 0.0
      %2591 = vmatprep.subr.mxu0 0.0
      %2592 = vmatpush1.msra.mxu0 0.0
      %2593 = vmatprep.subr.mxu0 0.0
      %2594 = vmatpush1.msra.mxu0 0.0
      %2595 = vmatprep.subr.mxu0 0.0
      %2596 = vmatpush1.msra.mxu0 0.0
      %2597 = vmatprep.subr.mxu0 0.0
      %2598 = vmatpush1.msra.mxu0 0.0
      %2599 = vmatprep.subr.mxu0 0.0
      %2600 = vmatpush1.msra.mxu0 0.0
      %2601 = vmatprep.subr.mxu0 0.0
      %2602 = vmatpush1.msra.mxu0 0.0
      %2603 = vmatprep.subr.mxu0 0.0
      %2604 = vmatpush1.msra.mxu0 0.0
      %2605 = vmatprep.subr.mxu0 0.0
      %2606 = vmatpush1.msra.mxu0 0.0
      %2607 = vmatprep.subr.mxu0 0.0
      %2608 = vmatpush1.msra.mxu0 0.0
      %2609 = vmatprep.subr.mxu0 0.0
      %2610 = vmatpush1.msra.mxu0 0.0
      %2611 = vmatprep.subr.mxu0 0.0
      %2612 = vmatpush1.msra.mxu0 0.0
      %2613 = vmatprep.subr.mxu0 0.0
      %2614 = vmatpush1.msra.mxu0 0.0
      %2615 = vmatprep.subr.mxu0 0.0
      %2616 = vmatpush1.msra.mxu0 0.0
      %2617 = vmatprep.subr.mxu0 0.0
      %2618 = vmatpush1.msra.mxu0 0.0
      %2619 = vmatprep.subr.mxu0 0.0
      %2620 = vmatpush1.msra.mxu0 0.0
      %2621 = vmatprep.subr.mxu0 0.0
      %2622 = vmatpush1.msra.mxu0 0.0
      %2623 = vmatprep.subr.mxu0 0.0
      %2624 = vmatpush1.msra.mxu0 0.0
      %2625 = vmatprep.subr.mxu0 0.0
      %2626 = vmatpush1.msra.mxu0 0.0
      %2627 = vmatprep.subr.mxu0 0.0
      %2628 = vmatpush1.msra.mxu0 0.0
      %2629 = vmatprep.subr.mxu0 0.0
      %2630 = vmatpush1.msra.mxu0 0.0
      %2631 = vmatprep.subr.mxu0 0.0
      %2632 = vmatpush1.msra.mxu0 0.0
      %2633 = vmatprep.subr.mxu0 0.0
      %2634 = vmatpush1.msra.mxu0 0.0
      %2635 = vmatprep.subr.mxu0 0.0
      %2636 = vmatpush1.msra.mxu0 0.0
      %2637 = vmatprep.subr.mxu0 0.0
      %2638 = vmatpush1.msra.mxu0 0.0
      %2639 = vmatprep.mubr.f32.mxu0 0.0
      %2640 = vmatmul.mubr.f32.gmra.mrb[0].mxu0 %v2480
      %v2641 = vpop.f32.mrb[0].mxu0
      %v2642 = vadd.f32 0.0, %v2641
      %v2643 = vpop.f32.mrb[0].mxu0
      %v2644 = vadd.f32 0.0, %v2643
      %2645 = vmatprep.mubr.f32.mxu0 0.0
      %2646 = vmatmul.mubr.f32.gmra.mrb[0].mxu0 %v2483
      %v2647 = vpop.f32.mrb[0].mxu0
      %v2648 = vadd.f32 0.0, %v2647
      %v2649 = vpop.f32.mrb[0].mxu0
      %v2650 = vadd.f32 0.0, %v2649
      %2651 = vmatprep.mubr.f32.mxu0 0.0
      %2652 = vmatmul.mubr.f32.gmra.mrb[0].mxu0 %v2486
      %v2653 = vpop.f32.mrb[0].mxu0
      %v2654 = vadd.f32 0.0, %v2653
      %v2655 = vpop.f32.mrb[0].mxu0
      %v2656 = vadd.f32 0.0, %v2655
      %2657 = vmatprep.mubr.f32.mxu0 0.0
      %2658 = vmatmul.mubr.f32.gmra.mrb[0].mxu0 %v2489
      %v2659 = vpop.f32.mrb[0].mxu0
      %v2660 = vadd.f32 0.0, %v2659
      %v2661 = vpop.f32.mrb[0].mxu0
      %v2662 = vadd.f32 0.0, %v2661
      %2663 = vmatprep.mubr.f32.mxu0 0.0
      %2664 = vmatmul.mubr.f32.gmra.mrb[0].mxu0 %v2492
      %v2665 = vpop.f32.mrb[0].mxu0
      %v2666 = vadd.f32 0.0, %v2665
      %v2667 = vpop.f32.mrb[0].mxu0
      %v2668 = vadd.f32 0.0, %v2667
      %2669 = vmatprep.mubr.f32.mxu0 0.0
      %2670 = vmatmul.mubr.f32.gmra.mrb[0].mxu0 %v2495
      %v2671 = vpop.f32.mrb[0].mxu0
      %v2672 = vadd.f32 0.0, %v2671
      %v2673 = vpop.f32.mrb[0].mxu0
      %v2674 = vadd.f32 0.0, %v2673
      %2675 = vmatprep.mubr.f32.mxu0 0.0
      %2676 = vmatmul.mubr.f32.gmra.mrb[0].mxu0 %v2498
      %v2677 = vpop.f32.mrb[0].mxu0
      %v2678 = vadd.f32 0.0, %v2677
      %v2679 = vpop.f32.mrb[0].mxu0
      %v2680 = vadd.f32 0.0, %v2679
      %2681 = vmatprep.mubr.f32.mxu0 0.0
      %2682 = vmatmul.mubr.f32.gmra.mrb[0].mxu0 %v2501
      %v2683 = vpop.f32.mrb[0].mxu0
      %v2684 = vadd.f32 0.0, %v2683
      %v2685 = vpop.f32.mrb[0].mxu0
      %v2686 = vadd.f32 0.0, %v2685
      %2687 = vmatprep.mubr.f32.mxu0 0.0
      %2688 = vmatmul.mubr.f32.gmra.mrb[0].mxu0 %v2504
      %v2689 = vpop.f32.mrb[0].mxu0
      %v2690 = vadd.f32 0.0, %v2689
      %v2691 = vpop.f32.mrb[0].mxu0
      %v2692 = vadd.f32 0.0, %v2691
      %2693 = vmatprep.mubr.f32.mxu0 0.0
      %2694 = vmatmul.mubr.f32.gmra.mrb[0].mxu0 %v2507
      %v2695 = vpop.f32.mrb[0].mxu0
      %v2696 = vadd.f32 0.0, %v2695
      %v2697 = vpop.f32.mrb[0].mxu0
      %v2698 = vadd.f32 0.0, %v2697
      %2699 = vmatprep.mubr.f32.mxu0 0.0
      %2700 = vmatmul.mubr.f32.gmra.mrb[0].mxu0 %v2510
      %v2701 = vpop.f32.mrb[0].mxu0
      %v2702 = vadd.f32 0.0, %v2701
      %v2703 = vpop.f32.mrb[0].mxu0
      %v2704 = vadd.f32 0.0, %v2703
      %2705 = vmatprep.mubr.f32.mxu0 0.0
      %2706 = vmatmul.mubr.f32.gmra.mrb[0].mxu0 %v2513
      %v2707 = vpop.f32.mrb[0].mxu0
      %v2708 = vadd.f32 0.0, %v2707
      %v2709 = vpop.f32.mrb[0].mxu0
      %v2710 = vadd.f32 0.0, %v2709
      %2711 = vmatprep.mubr.f32.mxu0 0.0
      %2712 = vmatmul.mubr.f32.gmra.mrb[0].mxu0 %v2516
      %v2713 = vpop.f32.mrb[0].mxu0
      %v2714 = vadd.f32 0.0, %v2713
      %v2715 = vpop.f32.mrb[0].mxu0
      %v2716 = vadd.f32 0.0, %v2715
      %2717 = vmatprep.mubr.f32.mxu0 0.0
      %2718 = vmatmul.mubr.f32.gmra.mrb[0].mxu0 %v2519
      %v2719 = vpop.f32.mrb[0].mxu0
      %v2720 = vadd.f32 0.0, %v2719
      %v2721 = vpop.f32.mrb[0].mxu0
      %v2722 = vadd.f32 0.0, %v2721
      %2723 = vmatprep.mubr.f32.mxu0 0.0
      %2724 = vmatmul.mubr.f32.gmra.mrb[0].mxu0 %v2522
      %v2725 = vpop.f32.mrb[0].mxu0
      %v2726 = vadd.f32 0.0, %v2725
      %v2727 = vpop.f32.mrb[0].mxu0
      %v2728 = vadd.f32 0.0, %v2727
      %2729 = vmatprep.mubr.f32.mxu0 0.0
      %2730 = vmatmul.mubr.f32.gmra.mrb[0].mxu0 %v2525
      %v2731 = vpop.f32.mrb[0].mxu0
      %v2732 = vadd.f32 0.0, %v2731
      %v2733 = vpop.f32.mrb[0].mxu0
      %v2734 = vadd.f32 0.0, %v2733
      %2735 = vmatprep.mubr.f32.mxu0 0.0
      %2736 = vmatmul.mubr.f32.gmra.mrb[0].mxu0 %v2528
      %v2737 = vpop.f32.mrb[0].mxu0
      %v2738 = vadd.f32 0.0, %v2737
      %v2739 = vpop.f32.mrb[0].mxu0
      %v2740 = vadd.f32 0.0, %v2739
      %2741 = vmatprep.mubr.f32.mxu0 0.0
      %2742 = vmatmul.mubr.f32.gmra.mrb[0].mxu0 %v2531
      %v2743 = vpop.f32.mrb[0].mxu0
      %v2744 = vadd.f32 0.0, %v2743
      %v2745 = vpop.f32.mrb[0].mxu0
      %v2746 = vadd.f32 0.0, %v2745
      %2747 = vmatprep.mubr.f32.mxu0 0.0
      %2748 = vmatmul.mubr.f32.gmra.mrb[0].mxu0 %v2534
      %v2749 = vpop.f32.mrb[0].mxu0
      %v2750 = vadd.f32 0.0, %v2749
      %v2751 = vpop.f32.mrb[0].mxu0
      %v2752 = vadd.f32 0.0, %v2751
      %2753 = vmatprep.mubr.f32.mxu0 0.0
      %2754 = vmatmul.mubr.f32.gmra.mrb[0].mxu0 %v2537
      %v2755 = vpop.f32.mrb[0].mxu0
      %v2756 = vadd.f32 0.0, %v2755
      %v2757 = vpop.f32.mrb[0].mxu0
      %v2758 = vadd.f32 0.0, %v2757
      %2759 = vmatprep.mubr.f32.mxu0 0.0
      %2760 = vmatmul.mubr.f32.gmra.mrb[0].mxu0 %v2540
      %v2761 = vpop.f32.mrb[0].mxu0
      %v2762 = vadd.f32 0.0, %v2761
      %v2763 = vpop.f32.mrb[0].mxu0
      %v2764 = vadd.f32 0.0, %v2763
      %2765 = vmatprep.mubr.f32.mxu0 0.0
      %2766 = vmatmul.mubr.f32.gmra.mrb[0].mxu0 %v2543
      %v2767 = vpop.f32.mrb[0].mxu0
      %v2768 = vadd.f32 0.0, %v2767
      %v2769 = vpop.f32.mrb[0].mxu0
      %v2770 = vadd.f32 0.0, %v2769
      %2771 = vmatprep.mubr.f32.mxu0 0.0
      %2772 = vmatmul.mubr.f32.gmra.mrb[0].mxu0 %v2546
      %v2773 = vpop.f32.mrb[0].mxu0
      %v2774 = vadd.f32 0.0, %v2773
      %v2775 = vpop.f32.mrb[0].mxu0
      %v2776 = vadd.f32 0.0, %v2775
      %2777 = vmatprep.mubr.f32.mxu0 0.0
      %2778 = vmatmul.mubr.f32.gmra.mrb[0].mxu0 %v2549
      %v2779 = vpop.f32.mrb[0].mxu0
      %v2780 = vadd.f32 0.0, %v2779
      %v2781 = vpop.f32.mrb[0].mxu0
      %v2782 = vadd.f32 0.0, %v2781
      %2783 = vmatprep.mubr.f32.mxu0 0.0
      %2784 = vmatmul.mubr.f32.gmra.mrb[0].mxu0 %v2552
      %v2785 = vpop.f32.mrb[0].mxu0
      %v2786 = vadd.f32 0.0, %v2785
      %v2787 = vpop.f32.mrb[0].mxu0
      %v2788 = vadd.f32 0.0, %v2787
      %2789 = vmatprep.mubr.f32.mxu0 0.0
      %2790 = vmatmul.mubr.f32.gmra.mrb[0].mxu0 %v2555
      %v2791 = vpop.f32.mrb[0].mxu0
      %v2792 = vadd.f32 0.0, %v2791
      %v2793 = vpop.f32.mrb[0].mxu0
      %v2794 = vadd.f32 0.0, %v2793
      %2795 = vmatprep.mubr.f32.mxu0 0.0
      %2796 = vmatmul.mubr.f32.gmra.mrb[0].mxu0 %v2558
      %v2797 = vpop.f32.mrb[0].mxu0
      %v2798 = vadd.f32 0.0, %v2797
      %v2799 = vpop.f32.mrb[0].mxu0
      %v2800 = vadd.f32 0.0, %v2799
      %2801 = vmatprep.mubr.f32.mxu0 0.0
      %2802 = vmatmul.mubr.f32.gmra.mrb[0].mxu0 %v2561
      %v2803 = vpop.f32.mrb[0].mxu0
      %v2804 = vadd.f32 0.0, %v2803
      %v2805 = vpop.f32.mrb[0].mxu0
      %v2806 = vadd.f32 0.0, %v2805
      %2807 = vmatprep.mubr.f32.mxu0 0.0
      %2808 = vmatmul.mubr.f32.gmra.mrb[0].mxu0 %v2564
      %v2809 = vpop.f32.mrb[0].mxu0
      %v2810 = vadd.f32 0.0, %v2809
      %v2811 = vpop.f32.mrb[0].mxu0
      %v2812 = vadd.f32 0.0, %v2811
      %2813 = vmatprep.mubr.f32.mxu0 0.0
      %2814 = vmatmul.mubr.f32.gmra.mrb[0].mxu0 %v2567
      %v2815 = vpop.f32.mrb[0].mxu0
      %v2816 = vadd.f32 0.0, %v2815
      %v2817 = vpop.f32.mrb[0].mxu0
      %v2818 = vadd.f32 0.0, %v2817
      %2819 = vmatprep.mubr.f32.mxu0 0.0
      %2820 = vmatmul.mubr.f32.gmra.mrb[0].mxu0 %v2570
      %v2821 = vpop.f32.mrb[0].mxu0
      %v2822 = vadd.f32 0.0, %v2821
      %v2823 = vpop.f32.mrb[0].mxu0
      %v2824 = vadd.f32 0.0, %v2823
      %2825 = vmatprep.mubr.f32.mxu0 0.0
      %2826 = vmatmul.mubr.f32.gmra.mrb[0].mxu0 %v2573
      %v2827 = vpop.f32.mrb[0].mxu0
      %v2828 = vadd.f32 0.0, %v2827
      %v2829 = vpop.f32.mrb[0].mxu0
      %v2830 = vadd.f32 0.0, %v2829
      %2831 = vdwg.mxu0
      %v2832 = vmax.f32 %v2642, %v2644
      %2833 = vmax.xlane.f32.xlu0 %v2832
      %v2834 = vpop.xlane.xlu0 %2833
      %v2835 = vmax.f32 %v2648, %v2650
      %2836 = vmax.xlane.f32.xlu0 %v2835
      %v2837 = vpop.xlane.xlu0 %2836
      %v2838 = vmax.f32 %v2654, %v2656
      %2839 = vmax.xlane.f32.xlu0 %v2838
      %v2840 = vpop.xlane.xlu0 %2839
      %v2841 = vmax.f32 %v2660, %v2662
      %2842 = vmax.xlane.f32.xlu0 %v2841
      %v2843 = vpop.xlane.xlu0 %2842
      %v2844 = vmax.f32 %v2666, %v2668
      %2845 = vmax.xlane.f32.xlu0 %v2844
      %v2846 = vpop.xlane.xlu0 %2845
      %v2847 = vmax.f32 %v2672, %v2674
      %2848 = vmax.xlane.f32.xlu0 %v2847
      %v2849 = vpop.xlane.xlu0 %2848
      %v2850 = vmax.f32 %v2678, %v2680
      %2851 = vmax.xlane.f32.xlu0 %v2850
      %v2852 = vpop.xlane.xlu0 %2851
      %v2853 = vmax.f32 %v2684, %v2686
      %2854 = vmax.xlane.f32.xlu0 %v2853
      %v2855 = vpop.xlane.xlu0 %2854
      %v2856 = vmax.f32 %v2690, %v2692
      %2857 = vmax.xlane.f32.xlu0 %v2856
      %v2858 = vpop.xlane.xlu0 %2857
      %v2859 = vmax.f32 %v2696, %v2698
      %2860 = vmax.xlane.f32.xlu0 %v2859
      %v2861 = vpop.xlane.xlu0 %2860
      %v2862 = vmax.f32 %v2702, %v2704
      %2863 = vmax.xlane.f32.xlu0 %v2862
      %v2864 = vpop.xlane.xlu0 %2863
      %v2865 = vmax.f32 %v2708, %v2710
      %2866 = vmax.xlane.f32.xlu0 %v2865
      %v2867 = vpop.xlane.xlu0 %2866
      %v2868 = vmax.f32 %v2714, %v2716
      %2869 = vmax.xlane.f32.xlu0 %v2868
      %v2870 = vpop.xlane.xlu0 %2869
      %v2871 = vmax.f32 %v2720, %v2722
      %2872 = vmax.xlane.f32.xlu0 %v2871
      %v2873 = vpop.xlane.xlu0 %2872
      %v2874 = vmax.f32 %v2726, %v2728
      %2875 = vmax.xlane.f32.xlu0 %v2874
      %v2876 = vpop.xlane.xlu0 %2875
      %v2877 = vmax.f32 %v2732, %v2734
      %2878 = vmax.xlane.f32.xlu0 %v2877
      %v2879 = vpop.xlane.xlu0 %2878
      %v2880 = vmax.f32 %v2738, %v2740
      %2881 = vmax.xlane.f32.xlu0 %v2880
      %v2882 = vpop.xlane.xlu0 %2881
      %v2883 = vmax.f32 %v2744, %v2746
      %2884 = vmax.xlane.f32.xlu0 %v2883
      %v2885 = vpop.xlane.xlu0 %2884
      %v2886 = vmax.f32 %v2750, %v2752
      %2887 = vmax.xlane.f32.xlu0 %v2886
      %v2888 = vpop.xlane.xlu0 %2887
      %v2889 = vmax.f32 %v2756, %v2758
      %2890 = vmax.xlane.f32.xlu0 %v2889
      %v2891 = vpop.xlane.xlu0 %2890
      %v2892 = vmax.f32 %v2762, %v2764
      %2893 = vmax.xlane.f32.xlu0 %v2892
      %v2894 = vpop.xlane.xlu0 %2893
      %v2895 = vmax.f32 %v2768, %v2770
      %2896 = vmax.xlane.f32.xlu0 %v2895
      %v2897 = vpop.xlane.xlu0 %2896
      %v2898 = vmax.f32 %v2774, %v2776
      %2899 = vmax.xlane.f32.xlu0 %v2898
      %v2900 = vpop.xlane.xlu0 %2899
      %v2901 = vmax.f32 %v2780, %v2782
      %2902 = vmax.xlane.f32.xlu0 %v2901
      %v2903 = vpop.xlane.xlu0 %2902
      %v2904 = vmax.f32 %v2786, %v2788
      %2905 = vmax.xlane.f32.xlu0 %v2904
      %v2906 = vpop.xlane.xlu0 %2905
      %v2907 = vmax.f32 %v2792, %v2794
      %2908 = vmax.xlane.f32.xlu0 %v2907
      %v2909 = vpop.xlane.xlu0 %2908
      %v2910 = vmax.f32 %v2798, %v2800
      %2911 = vmax.xlane.f32.xlu0 %v2910
      %v2912 = vpop.xlane.xlu0 %2911
      %v2913 = vmax.f32 %v2804, %v2806
      %2914 = vmax.xlane.f32.xlu0 %v2913
      %v2915 = vpop.xlane.xlu0 %2914
      %v2916 = vmax.f32 %v2810, %v2812
      %2917 = vmax.xlane.f32.xlu0 %v2916
      %v2918 = vpop.xlane.xlu0 %2917
      %v2919 = vmax.f32 %v2816, %v2818
      %2920 = vmax.xlane.f32.xlu0 %v2919
      %v2921 = vpop.xlane.xlu0 %2920
      %v2922 = vmax.f32 %v2822, %v2824
      %2923 = vmax.xlane.f32.xlu0 %v2922
      %v2924 = vpop.xlane.xlu0 %2923
      %v2925 = vmax.f32 %v2828, %v2830
      %2926 = vmax.xlane.f32.xlu0 %v2925
      %v2927 = vpop.xlane.xlu0 %2926
      %v2928 = vsub.f32 %v2642, %v2834
      %v2929 = vsub.f32 %v2644, %v2834
      %v2930 = vsub.f32 %v2648, %v2837
      %v2931 = vsub.f32 %v2650, %v2837
      %v2932 = vsub.f32 %v2654, %v2840
      %v2933 = vsub.f32 %v2656, %v2840
      %v2934 = vsub.f32 %v2660, %v2843
      %v2935 = vsub.f32 %v2662, %v2843
      %v2936 = vsub.f32 %v2666, %v2846
      %v2937 = vsub.f32 %v2668, %v2846
      %v2938 = vsub.f32 %v2672, %v2849
      %v2939 = vsub.f32 %v2674, %v2849
      %v2940 = vsub.f32 %v2678, %v2852
      %v2941 = vsub.f32 %v2680, %v2852
      %v2942 = vsub.f32 %v2684, %v2855
      %v2943 = vsub.f32 %v2686, %v2855
      %v2944 = vsub.f32 %v2690, %v2858
      %v2945 = vsub.f32 %v2692, %v2858
      %v2946 = vsub.f32 %v2696, %v2861
      %v2947 = vsub.f32 %v2698, %v2861
      %v2948 = vsub.f32 %v2702, %v2864
      %v2949 = vsub.f32 %v2704, %v2864
      %v2950 = vsub.f32 %v2708, %v2867
      %v2951 = vsub.f32 %v2710, %v2867
      %v2952 = vsub.f32 %v2714, %v2870
      %v2953 = vsub.f32 %v2716, %v2870
      %v2954 = vsub.f32 %v2720, %v2873
      %v2955 = vsub.f32 %v2722, %v2873
      %v2956 = vsub.f32 %v2726, %v2876
      %v2957 = vsub.f32 %v2728, %v2876
      %v2958 = vsub.f32 %v2732, %v2879
      %v2959 = vsub.f32 %v2734, %v2879
      %v2960 = vsub.f32 %v2738, %v2882
      %v2961 = vsub.f32 %v2740, %v2882
      %v2962 = vsub.f32 %v2744, %v2885
      %v2963 = vsub.f32 %v2746, %v2885
      %v2964 = vsub.f32 %v2750, %v2888
      %v2965 = vsub.f32 %v2752, %v2888
      %v2966 = vsub.f32 %v2756, %v2891
      %v2967 = vsub.f32 %v2758, %v2891
      %v2968 = vsub.f32 %v2762, %v2894
      %v2969 = vsub.f32 %v2764, %v2894
      %v2970 = vsub.f32 %v2768, %v2897
      %v2971 = vsub.f32 %v2770, %v2897
      %v2972 = vsub.f32 %v2774, %v2900
      %v2973 = vsub.f32 %v2776, %v2900
      %v2974 = vsub.f32 %v2780, %v2903
      %v2975 = vsub.f32 %v2782, %v2903
      %v2976 = vsub.f32 %v2786, %v2906
      %v2977 = vsub.f32 %v2788, %v2906
      %v2978 = vsub.f32 %v2792, %v2909
      %v2979 = vsub.f32 %v2794, %v2909
      %v2980 = vsub.f32 %v2798, %v2912
      %v2981 = vsub.f32 %v2800, %v2912
      %v2982 = vsub.f32 %v2804, %v2915
      %v2983 = vsub.f32 %v2806, %v2915
      %v2984 = vsub.f32 %v2810, %v2918
      %v2985 = vsub.f32 %v2812, %v2918
      %v2986 = vsub.f32 %v2816, %v2921
      %v2987 = vsub.f32 %v2818, %v2921
      %v2988 = vsub.f32 %v2822, %v2924
      %v2989 = vsub.f32 %v2824, %v2924
      %v2990 = vsub.f32 %v2828, %v2927
      %v2991 = vsub.f32 %v2830, %v2927
      %v2992 = vmul.f32 %v2928, 1.442695
      %v2993 = vpow.pop %v2992
      %v2994 = vmul.f32 %v2929, 1.442695
      %v2995 = vpow.pop %v2994
      %v2996 = vmul.f32 %v2930, 1.442695
      %v2997 = vpow.pop %v2996
      %v2998 = vmul.f32 %v2931, 1.442695
      %v2999 = vpow.pop %v2998
      %v3000 = vmul.f32 %v2932, 1.442695
      %v3001 = vpow.pop %v3000
      %v3002 = vmul.f32 %v2933, 1.442695
      %v3003 = vpow.pop %v3002
      %v3004 = vmul.f32 %v2934, 1.442695
      %v3005 = vpow.pop %v3004
      %v3006 = vmul.f32 %v2935, 1.442695
      %v3007 = vpow.pop %v3006
      %v3008 = vmul.f32 %v2936, 1.442695
      %v3009 = vpow.pop %v3008
      %v3010 = vmul.f32 %v2937, 1.442695
      %v3011 = vpow.pop %v3010
      %v3012 = vmul.f32 %v2938, 1.442695
      %v3013 = vpow.pop %v3012
      %v3014 = vmul.f32 %v2939, 1.442695
      %v3015 = vpow.pop %v3014
      %v3016 = vmul.f32 %v2940, 1.442695
      %v3017 = vpow.pop %v3016
      %v3018 = vmul.f32 %v2941, 1.442695
      %v3019 = vpow.pop %v3018
      %v3020 = vmul.f32 %v2942, 1.442695
      %v3021 = vpow.pop %v3020
      %v3022 = vmul.f32 %v2943, 1.442695
      %v3023 = vpow.pop %v3022
      %v3024 = vmul.f32 %v2944, 1.442695
      %v3025 = vpow.pop %v3024
      %v3026 = vmul.f32 %v2945, 1.442695
      %v3027 = vpow.pop %v3026
      %v3028 = vmul.f32 %v2946, 1.442695
      %v3029 = vpow.pop %v3028
      %v3030 = vmul.f32 %v2947, 1.442695
      %v3031 = vpow.pop %v3030
      %v3032 = vmul.f32 %v2948, 1.442695
      %v3033 = vpow.pop %v3032
      %v3034 = vmul.f32 %v2949, 1.442695
      %v3035 = vpow.pop %v3034
      %v3036 = vmul.f32 %v2950, 1.442695
      %v3037 = vpow.pop %v3036
      %v3038 = vmul.f32 %v2951, 1.442695
      %v3039 = vpow.pop %v3038
      %v3040 = vmul.f32 %v2952, 1.442695
      %v3041 = vpow.pop %v3040
      %v3042 = vmul.f32 %v2953, 1.442695
      %v3043 = vpow.pop %v3042
      %v3044 = vmul.f32 %v2954, 1.442695
      %v3045 = vpow.pop %v3044
      %v3046 = vmul.f32 %v2955, 1.442695
      %v3047 = vpow.pop %v3046
      %v3048 = vmul.f32 %v2956, 1.442695
      %v3049 = vpow.pop %v3048
      %v3050 = vmul.f32 %v2957, 1.442695
      %v3051 = vpow.pop %v3050
      %v3052 = vmul.f32 %v2958, 1.442695
      %v3053 = vpow.pop %v3052
      %v3054 = vmul.f32 %v2959, 1.442695
      %v3055 = vpow.pop %v3054
      %v3056 = vmul.f32 %v2960, 1.442695
      %v3057 = vpow.pop %v3056
      %v3058 = vmul.f32 %v2961, 1.442695
      %v3059 = vpow.pop %v3058
      %v3060 = vmul.f32 %v2962, 1.442695
      %v3061 = vpow.pop %v3060
      %v3062 = vmul.f32 %v2963, 1.442695
      %v3063 = vpow.pop %v3062
      %v3064 = vmul.f32 %v2964, 1.442695
      %v3065 = vpow.pop %v3064
      %v3066 = vmul.f32 %v2965, 1.442695
      %v3067 = vpow.pop %v3066
      %v3068 = vmul.f32 %v2966, 1.442695
      %v3069 = vpow.pop %v3068
      %v3070 = vmul.f32 %v2967, 1.442695
      %v3071 = vpow.pop %v3070
      %v3072 = vmul.f32 %v2968, 1.442695
      %v3073 = vpow.pop %v3072
      %v3074 = vmul.f32 %v2969, 1.442695
      %v3075 = vpow.pop %v3074
      %v3076 = vmul.f32 %v2970, 1.442695
      %v3077 = vpow.pop %v3076
      %v3078 = vmul.f32 %v2971, 1.442695
      %v3079 = vpow.pop %v3078
      %v3080 = vmul.f32 %v2972, 1.442695
      %v3081 = vpow.pop %v3080
      %v3082 = vmul.f32 %v2973, 1.442695
      %v3083 = vpow.pop %v3082
      %v3084 = vmul.f32 %v2974, 1.442695
      %v3085 = vpow.pop %v3084
      %v3086 = vmul.f32 %v2975, 1.442695
      %v3087 = vpow.pop %v3086
      %v3088 = vmul.f32 %v2976, 1.442695
      %v3089 = vpow.pop %v3088
      %v3090 = vmul.f32 %v2977, 1.442695
      %v3091 = vpow.pop %v3090
      %v3092 = vmul.f32 %v2978, 1.442695
      %v3093 = vpow.pop %v3092
      %v3094 = vmul.f32 %v2979, 1.442695
      %v3095 = vpow.pop %v3094
      %v3096 = vmul.f32 %v2980, 1.442695
      %v3097 = vpow.pop %v3096
      %v3098 = vmul.f32 %v2981, 1.442695
      %v3099 = vpow.pop %v3098
      %v3100 = vmul.f32 %v2982, 1.442695
      %v3101 = vpow.pop %v3100
      %v3102 = vmul.f32 %v2983, 1.442695
      %v3103 = vpow.pop %v3102
      %v3104 = vmul.f32 %v2984, 1.442695
      %v3105 = vpow.pop %v3104
      %v3106 = vmul.f32 %v2985, 1.442695
      %v3107 = vpow.pop %v3106
      %v3108 = vmul.f32 %v2986, 1.442695
      %v3109 = vpow.pop %v3108
      %v3110 = vmul.f32 %v2987, 1.442695
      %v3111 = vpow.pop %v3110
      %v3112 = vmul.f32 %v2988, 1.442695
      %v3113 = vpow.pop %v3112
      %v3114 = vmul.f32 %v2989, 1.442695
      %v3115 = vpow.pop %v3114
      %v3116 = vmul.f32 %v2990, 1.442695
      %v3117 = vpow.pop %v3116
      %v3118 = vmul.f32 %v2991, 1.442695
      %v3119 = vpow.pop %v3118
      %v3120 = vadd.f32 %v2993, %v2995
      %3121 = vadd.xlane.f32.xlu0 %v3120
      %v3122 = vpop.xlane.xlu0 %3121
      %v3123 = vadd.f32 %v2997, %v2999
      %3124 = vadd.xlane.f32.xlu0 %v3123
      %v3125 = vpop.xlane.xlu0 %3124
      %v3126 = vadd.f32 %v3001, %v3003
      %3127 = vadd.xlane.f32.xlu0 %v3126
      %v3128 = vpop.xlane.xlu0 %3127
      %v3129 = vadd.f32 %v3005, %v3007
      %3130 = vadd.xlane.f32.xlu0 %v3129
      %v3131 = vpop.xlane.xlu0 %3130
      %v3132 = vadd.f32 %v3009, %v3011
      %3133 = vadd.xlane.f32.xlu0 %v3132
      %v3134 = vpop.xlane.xlu0 %3133
      %v3135 = vadd.f32 %v3013, %v3015
      %3136 = vadd.xlane.f32.xlu0 %v3135
      %v3137 = vpop.xlane.xlu0 %3136
      %v3138 = vadd.f32 %v3017, %v3019
      %3139 = vadd.xlane.f32.xlu0 %v3138
      %v3140 = vpop.xlane.xlu0 %3139
      %v3141 = vadd.f32 %v3021, %v3023
      %3142 = vadd.xlane.f32.xlu0 %v3141
      %v3143 = vpop.xlane.xlu0 %3142
      %v3144 = vadd.f32 %v3025, %v3027
      %3145 = vadd.xlane.f32.xlu0 %v3144
      %v3146 = vpop.xlane.xlu0 %3145
      %v3147 = vadd.f32 %v3029, %v3031
      %3148 = vadd.xlane.f32.xlu0 %v3147
      %v3149 = vpop.xlane.xlu0 %3148
      %v3150 = vadd.f32 %v3033, %v3035
      %3151 = vadd.xlane.f32.xlu0 %v3150
      %v3152 = vpop.xlane.xlu0 %3151
      %v3153 = vadd.f32 %v3037, %v3039
      %3154 = vadd.xlane.f32.xlu0 %v3153
      %v3155 = vpop.xlane.xlu0 %3154
      %v3156 = vadd.f32 %v3041, %v3043
      %3157 = vadd.xlane.f32.xlu0 %v3156
      %v3158 = vpop.xlane.xlu0 %3157
      %v3159 = vadd.f32 %v3045, %v3047
      %3160 = vadd.xlane.f32.xlu0 %v3159
      %v3161 = vpop.xlane.xlu0 %3160
      %v3162 = vadd.f32 %v3049, %v3051
      %3163 = vadd.xlane.f32.xlu0 %v3162
      %v3164 = vpop.xlane.xlu0 %3163
      %v3165 = vadd.f32 %v3053, %v3055
      %3166 = vadd.xlane.f32.xlu0 %v3165
      %v3167 = vpop.xlane.xlu0 %3166
      %v3168 = vadd.f32 %v3057, %v3059
      %3169 = vadd.xlane.f32.xlu0 %v3168
      %v3170 = vpop.xlane.xlu0 %3169
      %v3171 = vadd.f32 %v3061, %v3063
      %3172 = vadd.xlane.f32.xlu0 %v3171
      %v3173 = vpop.xlane.xlu0 %3172
      %v3174 = vadd.f32 %v3065, %v3067
      %3175 = vadd.xlane.f32.xlu0 %v3174
      %v3176 = vpop.xlane.xlu0 %3175
      %v3177 = vadd.f32 %v3069, %v3071
      %3178 = vadd.xlane.f32.xlu0 %v3177
      %v3179 = vpop.xlane.xlu0 %3178
      %v3180 = vadd.f32 %v3073, %v3075
      %3181 = vadd.xlane.f32.xlu0 %v3180
      %v3182 = vpop.xlane.xlu0 %3181
      %v3183 = vadd.f32 %v3077, %v3079
      %3184 = vadd.xlane.f32.xlu0 %v3183
      %v3185 = vpop.xlane.xlu0 %3184
      %v3186 = vadd.f32 %v3081, %v3083
      %3187 = vadd.xlane.f32.xlu0 %v3186
      %v3188 = vpop.xlane.xlu0 %3187
      %v3189 = vadd.f32 %v3085, %v3087
      %3190 = vadd.xlane.f32.xlu0 %v3189
      %v3191 = vpop.xlane.xlu0 %3190
      %v3192 = vadd.f32 %v3089, %v3091
      %3193 = vadd.xlane.f32.xlu0 %v3192
      %v3194 = vpop.xlane.xlu0 %3193
      %v3195 = vadd.f32 %v3093, %v3095
      %3196 = vadd.xlane.f32.xlu0 %v3195
      %v3197 = vpop.xlane.xlu0 %3196
      %v3198 = vadd.f32 %v3097, %v3099
      %3199 = vadd.xlane.f32.xlu0 %v3198
      %v3200 = vpop.xlane.xlu0 %3199
      %v3201 = vadd.f32 %v3101, %v3103
      %3202 = vadd.xlane.f32.xlu0 %v3201
      %v3203 = vpop.xlane.xlu0 %3202
      %v3204 = vadd.f32 %v3105, %v3107
      %3205 = vadd.xlane.f32.xlu0 %v3204
      %v3206 = vpop.xlane.xlu0 %3205
      %v3207 = vadd.f32 %v3109, %v3111
      %3208 = vadd.xlane.f32.xlu0 %v3207
      %v3209 = vpop.xlane.xlu0 %3208
      %v3210 = vadd.f32 %v3113, %v3115
      %3211 = vadd.xlane.f32.xlu0 %v3210
      %v3212 = vpop.xlane.xlu0 %3211
      %v3213 = vadd.f32 %v3117, %v3119
      %3214 = vadd.xlane.f32.xlu0 %v3213
      %v3215 = vpop.xlane.xlu0 %3214
      %v3216 = vrcp.pop %v3122
      %v3217 = vrcp.pop %v3125
      %v3218 = vrcp.pop %v3128
      %v3219 = vrcp.pop %v3131
      %v3220 = vrcp.pop %v3134
      %v3221 = vrcp.pop %v3137
      %v3222 = vrcp.pop %v3140
      %v3223 = vrcp.pop %v3143
      %v3224 = vrcp.pop %v3146
      %v3225 = vrcp.pop %v3149
      %v3226 = vrcp.pop %v3152
      %v3227 = vrcp.pop %v3155
      %v3228 = vrcp.pop %v3158
      %v3229 = vrcp.pop %v3161
      %v3230 = vrcp.pop %v3164
      %v3231 = vrcp.pop %v3167
      %v3232 = vrcp.pop %v3170
      %v3233 = vrcp.pop %v3173
      %v3234 = vrcp.pop %v3176
      %v3235 = vrcp.pop %v3179
      %v3236 = vrcp.pop %v3182
      %v3237 = vrcp.pop %v3185
      %v3238 = vrcp.pop %v3188
      %v3239 = vrcp.pop %v3191
      %v3240 = vrcp.pop %v3194
      %v3241 = vrcp.pop %v3197
      %v3242 = vrcp.pop %v3200
      %v3243 = vrcp.pop %v3203
      %v3244 = vrcp.pop %v3206
      %v3245 = vrcp.pop %v3209
      %v3246 = vrcp.pop %v3212
      %v3247 = vrcp.pop %v3215
      %v3248 = vmul.f32 %v2993, %v3216
      %v3249 = vmul.f32 %v2995, %v3216
      %v3250 = vmul.f32 %v2997, %v3217
      %v3251 = vmul.f32 %v2999, %v3217
      %v3252 = vmul.f32 %v3001, %v3218
      %v3253 = vmul.f32 %v3003, %v3218
      %v3254 = vmul.f32 %v3005, %v3219
      %v3255 = vmul.f32 %v3007, %v3219
      %v3256 = vmul.f32 %v3009, %v3220
      %v3257 = vmul.f32 %v3011, %v3220
      %v3258 = vmul.f32 %v3013, %v3221
      %v3259 = vmul.f32 %v3015, %v3221
      %v3260 = vmul.f32 %v3017, %v3222
      %v3261 = vmul.f32 %v3019, %v3222
      %v3262 = vmul.f32 %v3021, %v3223
      %v3263 = vmul.f32 %v3023, %v3223
      %v3264 = vmul.f32 %v3025, %v3224
      %v3265 = vmul.f32 %v3027, %v3224
      %v3266 = vmul.f32 %v3029, %v3225
      %v3267 = vmul.f32 %v3031, %v3225
      %v3268 = vmul.f32 %v3033, %v3226
      %v3269 = vmul.f32 %v3035, %v3226
      %v3270 = vmul.f32 %v3037, %v3227
      %v3271 = vmul.f32 %v3039, %v3227
      %v3272 = vmul.f32 %v3041, %v3228
      %v3273 = vmul.f32 %v3043, %v3228
      %v3274 = vmul.f32 %v3045, %v3229
      %v3275 = vmul.f32 %v3047, %v3229
      %v3276 = vmul.f32 %v3049, %v3230
      %v3277 = vmul.f32 %v3051, %v3230
      %v3278 = vmul.f32 %v3053, %v3231
      %v3279 = vmul.f32 %v3055, %v3231
      %v3280 = vmul.f32 %v3057, %v3232
      %v3281 = vmul.f32 %v3059, %v3232
      %v3282 = vmul.f32 %v3061, %v3233
      %v3283 = vmul.f32 %v3063, %v3233
      %v3284 = vmul.f32 %v3065, %v3234
      %v3285 = vmul.f32 %v3067, %v3234
      %v3286 = vmul.f32 %v3069, %v3235
      %v3287 = vmul.f32 %v3071, %v3235
      %v3288 = vmul.f32 %v3073, %v3236
      %v3289 = vmul.f32 %v3075, %v3236
      %v3290 = vmul.f32 %v3077, %v3237
      %v3291 = vmul.f32 %v3079, %v3237
      %v3292 = vmul.f32 %v3081, %v3238
      %v3293 = vmul.f32 %v3083, %v3238
      %v3294 = vmul.f32 %v3085, %v3239
      %v3295 = vmul.f32 %v3087, %v3239
      %v3296 = vmul.f32 %v3089, %v3240
      %v3297 = vmul.f32 %v3091, %v3240
      %v3298 = vmul.f32 %v3093, %v3241
      %v3299 = vmul.f32 %v3095, %v3241
      %v3300 = vmul.f32 %v3097, %v3242
      %v3301 = vmul.f32 %v3099, %v3242
      %v3302 = vmul.f32 %v3101, %v3243
      %v3303 = vmul.f32 %v3103, %v3243
      %v3304 = vmul.f32 %v3105, %v3244
      %v3305 = vmul.f32 %v3107, %v3244
      %v3306 = vmul.f32 %v3109, %v3245
      %v3307 = vmul.f32 %v3111, %v3245
      %v3308 = vmul.f32 %v3113, %v3246
      %v3309 = vmul.f32 %v3115, %v3246
      %v3310 = vmul.f32 %v3117, %v3247
      %v3311 = vmul.f32 %v3119, %v3247
      %3312 = vmatprep.subr.mxu0 %v3249
      %3313 = vmatpush1.xpose.msra.mxu0 %v3248
      %3314 = vmatprep.subr.mxu0 %v3251
      %3315 = vmatpush1.xpose.msra.mxu0 %v3250
      %3316 = vmatprep.subr.mxu0 %v3253
      %3317 = vmatpush1.xpose.msra.mxu0 %v3252
      %3318 = vmatprep.subr.mxu0 %v3255
      %3319 = vmatpush1.xpose.msra.mxu0 %v3254
      %3320 = vmatprep.subr.mxu0 %v3257
      %3321 = vmatpush1.xpose.msra.mxu0 %v3256
      %3322 = vmatprep.subr.mxu0 %v3259
      %3323 = vmatpush1.xpose.msra.mxu0 %v3258
      %3324 = vmatprep.subr.mxu0 %v3261
      %3325 = vmatpush1.xpose.msra.mxu0 %v3260
      %3326 = vmatprep.subr.mxu0 %v3263
      %3327 = vmatpush1.xpose.msra.mxu0 %v3262
      %3328 = vmatprep.subr.mxu0 %v3265
      %3329 = vmatpush1.xpose.msra.mxu0 %v3264
      %3330 = vmatprep.subr.mxu0 %v3267
      %3331 = vmatpush1.xpose.msra.mxu0 %v3266
      %3332 = vmatprep.subr.mxu0 %v3269
      %3333 = vmatpush1.xpose.msra.mxu0 %v3268
      %3334 = vmatprep.subr.mxu0 %v3271
      %3335 = vmatpush1.xpose.msra.mxu0 %v3270
      %3336 = vmatprep.subr.mxu0 %v3273
      %3337 = vmatpush1.xpose.msra.mxu0 %v3272
      %3338 = vmatprep.subr.mxu0 %v3275
      %3339 = vmatpush1.xpose.msra.mxu0 %v3274
      %3340 = vmatprep.subr.mxu0 %v3277
      %3341 = vmatpush1.xpose.msra.mxu0 %v3276
      %3342 = vmatprep.subr.mxu0 %v3279
      %3343 = vmatpush1.xpose.msra.mxu0 %v3278
      %3344 = vmatprep.subr.mxu0 %v3281
      %3345 = vmatpush1.xpose.msra.mxu0 %v3280
      %3346 = vmatprep.subr.mxu0 %v3283
      %3347 = vmatpush1.xpose.msra.mxu0 %v3282
      %3348 = vmatprep.subr.mxu0 %v3285
      %3349 = vmatpush1.xpose.msra.mxu0 %v3284
      %3350 = vmatprep.subr.mxu0 %v3287
      %3351 = vmatpush1.xpose.msra.mxu0 %v3286
      %3352 = vmatprep.subr.mxu0 %v3289
      %3353 = vmatpush1.xpose.msra.mxu0 %v3288
      %3354 = vmatprep.subr.mxu0 %v3291
      %3355 = vmatpush1.xpose.msra.mxu0 %v3290
      %3356 = vmatprep.subr.mxu0 %v3293
      %3357 = vmatpush1.xpose.msra.mxu0 %v3292
      %3358 = vmatprep.subr.mxu0 %v3295
      %3359 = vmatpush1.xpose.msra.mxu0 %v3294
      %3360 = vmatprep.subr.mxu0 %v3297
      %3361 = vmatpush1.xpose.msra.mxu0 %v3296
      %3362 = vmatprep.subr.mxu0 %v3299
      %3363 = vmatpush1.xpose.msra.mxu0 %v3298
      %3364 = vmatprep.subr.mxu0 %v3301
      %3365 = vmatpush1.xpose.msra.mxu0 %v3300
      %3366 = vmatprep.subr.mxu0 %v3303
      %3367 = vmatpush1.xpose.msra.mxu0 %v3302
      %3368 = vmatprep.subr.mxu0 %v3305
      %3369 = vmatpush1.xpose.msra.mxu0 %v3304
      %3370 = vmatprep.subr.mxu0 %v3307
      %3371 = vmatpush1.xpose.msra.mxu0 %v3306
      %3372 = vmatprep.subr.mxu0 %v3309
      %3373 = vmatpush1.xpose.msra.mxu0 %v3308
      %3374 = vmatprep.subr.mxu0 %v3311
      %3375 = vmatpush1.xpose.msra.mxu0 %v3310
      %3376 = vmatprep.mubr.f32.mxu0 %v2414
      %3377 = vmatmul.mubr.f32.gmra.mrb[0].mxu0 %v2413
      %v3378 = vpop.f32.mrb[0].mxu0
      %v3379 = vadd.f32 0.0, %v3378
      %v3380 = vpop.f32.mrb[0].mxu0
      %v3381 = vadd.f32 0.0, %v3380
      %3382 = vdwg.mxu0
      %v3383 = vld [vmem:[#allocation2 + $0x70] sm:$0xff]
      %v3384 = vld [vmem:[#allocation2 + $0x78] sm:$0xff]
      %v3385 = vld [vmem:[#allocation2 + $0xb0] sm:$0xff]
      %v3386 = vld [vmem:[#allocation2 + $0xb8] sm:$0xff]
      %3387 = vxpose.xlu0.b32.start [1/16] %v454, 128
      %3388 = vxpose.xlu0.b32.cont [2/16] 0.0, 128
      %3389 = vxpose.xlu0.b32.cont [3/16] 0.0, 128
      %3390 = vxpose.xlu0.b32.cont [4/16] 0.0, 128
      %3391 = vxpose.xlu0.b32.cont [5/16] 0.0, 128
      %3392 = vxpose.xlu0.b32.cont [6/16] 0.0, 128
      %3393 = vxpose.xlu0.b32.cont [7/16] 0.0, 128
      %3394 = vxpose.xlu0.b32.cont [8/16] 0.0, 128
      %3395 = vxpose.xlu0.b32.cont [9/16] 0.0, 128
      %3396 = vxpose.xlu0.b32.cont [10/16] 0.0, 128
      %3397 = vxpose.xlu0.b32.cont [11/16] 0.0, 128
      %3398 = vxpose.xlu0.b32.cont [12/16] 0.0, 128
      %3399 = vxpose.xlu0.b32.cont [13/16] 0.0, 128
      %3400 = vxpose.xlu0.b32.cont [14/16] 0.0, 128
      %3401 = vxpose.xlu0.b32.cont [15/16] 0.0, 128
      %3402 = vxpose.xlu0.b32.end [16/16] 0.0, 128
      %v3403 = vpop.trf.xlu0
      %v3404 = vpop.trf.xlu0
      %v3405 = vpop.trf.xlu0
      %v3406 = vpop.trf.xlu0
      %v3407 = vpop.trf.xlu0
      %v3408 = vpop.trf.xlu0
      %v3409 = vpop.trf.xlu0
      %v3410 = vpop.trf.xlu0
      %v3411 = vpop.trf.xlu0
      %v3412 = vpop.trf.xlu0
      %v3413 = vpop.trf.xlu0
      %v3414 = vpop.trf.xlu0
      %v3415 = vpop.trf.xlu0
      %v3416 = vpop.trf.xlu0
      %v3417 = vpop.trf.xlu0
      %v3418 = vpop.trf.xlu0
      %3419 = vxpose.xlu0.b32.start [1/16] %v455, 128
      %3420 = vxpose.xlu0.b32.cont [2/16] 0.0, 128
      %3421 = vxpose.xlu0.b32.cont [3/16] 0.0, 128
      %3422 = vxpose.xlu0.b32.cont [4/16] 0.0, 128
      %3423 = vxpose.xlu0.b32.cont [5/16] 0.0, 128
      %3424 = vxpose.xlu0.b32.cont [6/16] 0.0, 128
      %3425 = vxpose.xlu0.b32.cont [7/16] 0.0, 128
      %3426 = vxpose.xlu0.b32.cont [8/16] 0.0, 128
      %3427 = vxpose.xlu0.b32.cont [9/16] 0.0, 128
      %3428 = vxpose.xlu0.b32.cont [10/16] 0.0, 128
      %3429 = vxpose.xlu0.b32.cont [11/16] 0.0, 128
      %3430 = vxpose.xlu0.b32.cont [12/16] 0.0, 128
      %3431 = vxpose.xlu0.b32.cont [13/16] 0.0, 128
      %3432 = vxpose.xlu0.b32.cont [14/16] 0.0, 128
      %3433 = vxpose.xlu0.b32.cont [15/16] 0.0, 128
      %3434 = vxpose.xlu0.b32.end [16/16] 0.0, 128
      %v3435 = vpop.trf.xlu0
      %v3436 = vpop.trf.xlu0
      %v3437 = vpop.trf.xlu0
      %v3438 = vpop.trf.xlu0
      %v3439 = vpop.trf.xlu0
      %v3440 = vpop.trf.xlu0
      %v3441 = vpop.trf.xlu0
      %v3442 = vpop.trf.xlu0
      %v3443 = vpop.trf.xlu0
      %v3444 = vpop.trf.xlu0
      %v3445 = vpop.trf.xlu0
      %v3446 = vpop.trf.xlu0
      %v3447 = vpop.trf.xlu0
      %v3448 = vpop.trf.xlu0
      %v3449 = vpop.trf.xlu0
      %v3450 = vpop.trf.xlu0
      %v3452 = vsel %vm534, %v3403, 0
      %v3455 = vsel %vm534, %v3404, 0
      %v3458 = vsel %vm534, %v3405, 0
      %v3461 = vsel %vm534, %v3406, 0
      %v3464 = vsel %vm534, %v3407, 0
      %v3467 = vsel %vm534, %v3408, 0
      %v3470 = vsel %vm534, %v3409, 0
      %v3473 = vsel %vm534, %v3410, 0
      %v3476 = vsel %vm534, %v3411, 0
      %v3479 = vsel %vm534, %v3412, 0
      %v3482 = vsel %vm534, %v3413, 0
      %v3485 = vsel %vm534, %v3414, 0
      %v3488 = vsel %vm534, %v3415, 0
      %v3491 = vsel %vm534, %v3416, 0
      %v3494 = vsel %vm534, %v3417, 0
      %v3497 = vsel %vm534, %v3418, 0
      %v3500 = vsel %vm534, %v3435, 0
      %v3503 = vsel %vm534, %v3436, 0
      %v3506 = vsel %vm534, %v3437, 0
      %v3509 = vsel %vm534, %v3438, 0
      %v3512 = vsel %vm534, %v3439, 0
      %v3515 = vsel %vm534, %v3440, 0
      %v3518 = vsel %vm534, %v3441, 0
      %v3521 = vsel %vm534, %v3442, 0
      %v3524 = vsel %vm534, %v3443, 0
      %v3527 = vsel %vm534, %v3444, 0
      %v3530 = vsel %vm534, %v3445, 0
      %v3533 = vsel %vm534, %v3446, 0
      %v3536 = vsel %vm534, %v3447, 0
      %v3539 = vsel %vm534, %v3448, 0
      %v3542 = vsel %vm534, %v3449, 0
      %v3545 = vsel %vm534, %v3450, 0
      %3547 = vmatprep.subr.mxu0 %v3384
      %3548 = vmatpush1.msra.mxu0 %v3383
      %3549 = vmatprep.subr.mxu0 0.0
      %3550 = vmatpush1.msra.mxu0 0.0
      %3551 = vmatprep.subr.mxu0 0.0
      %3552 = vmatpush1.msra.mxu0 0.0
      %3553 = vmatprep.subr.mxu0 0.0
      %3554 = vmatpush1.msra.mxu0 0.0
      %3555 = vmatprep.subr.mxu0 0.0
      %3556 = vmatpush1.msra.mxu0 0.0
      %3557 = vmatprep.subr.mxu0 0.0
      %3558 = vmatpush1.msra.mxu0 0.0
      %3559 = vmatprep.subr.mxu0 0.0
      %3560 = vmatpush1.msra.mxu0 0.0
      %3561 = vmatprep.subr.mxu0 0.0
      %3562 = vmatpush1.msra.mxu0 0.0
      %3563 = vmatprep.subr.mxu0 0.0
      %3564 = vmatpush1.msra.mxu0 0.0
      %3565 = vmatprep.subr.mxu0 0.0
      %3566 = vmatpush1.msra.mxu0 0.0
      %3567 = vmatprep.subr.mxu0 0.0
      %3568 = vmatpush1.msra.mxu0 0.0
      %3569 = vmatprep.subr.mxu0 0.0
      %3570 = vmatpush1.msra.mxu0 0.0
      %3571 = vmatprep.subr.mxu0 0.0
      %3572 = vmatpush1.msra.mxu0 0.0
      %3573 = vmatprep.subr.mxu0 0.0
      %3574 = vmatpush1.msra.mxu0 0.0
      %3575 = vmatprep.subr.mxu0 0.0
      %3576 = vmatpush1.msra.mxu0 0.0
      %3577 = vmatprep.subr.mxu0 0.0
      %3578 = vmatpush1.msra.mxu0 0.0
      %3579 = vmatprep.subr.mxu0 0.0
      %3580 = vmatpush1.msra.mxu0 0.0
      %3581 = vmatprep.subr.mxu0 0.0
      %3582 = vmatpush1.msra.mxu0 0.0
      %3583 = vmatprep.subr.mxu0 0.0
      %3584 = vmatpush1.msra.mxu0 0.0
      %3585 = vmatprep.subr.mxu0 0.0
      %3586 = vmatpush1.msra.mxu0 0.0
      %3587 = vmatprep.subr.mxu0 0.0
      %3588 = vmatpush1.msra.mxu0 0.0
      %3589 = vmatprep.subr.mxu0 0.0
      %3590 = vmatpush1.msra.mxu0 0.0
      %3591 = vmatprep.subr.mxu0 0.0
      %3592 = vmatpush1.msra.mxu0 0.0
      %3593 = vmatprep.subr.mxu0 0.0
      %3594 = vmatpush1.msra.mxu0 0.0
      %3595 = vmatprep.subr.mxu0 0.0
      %3596 = vmatpush1.msra.mxu0 0.0
      %3597 = vmatprep.subr.mxu0 0.0
      %3598 = vmatpush1.msra.mxu0 0.0
      %3599 = vmatprep.subr.mxu0 0.0
      %3600 = vmatpush1.msra.mxu0 0.0
      %3601 = vmatprep.subr.mxu0 0.0
      %3602 = vmatpush1.msra.mxu0 0.0
      %3603 = vmatprep.subr.mxu0 0.0
      %3604 = vmatpush1.msra.mxu0 0.0
      %3605 = vmatprep.subr.mxu0 0.0
      %3606 = vmatpush1.msra.mxu0 0.0
      %3607 = vmatprep.subr.mxu0 0.0
      %3608 = vmatpush1.msra.mxu0 0.0
      %3609 = vmatprep.subr.mxu0 0.0
      %3610 = vmatpush1.msra.mxu0 0.0
      %3611 = vmatprep.mubr.f32.mxu0 0.0
      %3612 = vmatmul.mubr.f32.gmra.mrb[0].mxu0 %v3452
      %v3613 = vpop.f32.mrb[0].mxu0
      %v3614 = vadd.f32 0.0, %v3613
      %v3615 = vpop.f32.mrb[0].mxu0
      %v3616 = vadd.f32 0.0, %v3615
      %3617 = vmatprep.mubr.f32.mxu0 0.0
      %3618 = vmatmul.mubr.f32.gmra.mrb[0].mxu0 %v3455
      %v3619 = vpop.f32.mrb[0].mxu0
      %v3620 = vadd.f32 0.0, %v3619
      %v3621 = vpop.f32.mrb[0].mxu0
      %v3622 = vadd.f32 0.0, %v3621
      %3623 = vmatprep.mubr.f32.mxu0 0.0
      %3624 = vmatmul.mubr.f32.gmra.mrb[0].mxu0 %v3458
      %v3625 = vpop.f32.mrb[0].mxu0
      %v3626 = vadd.f32 0.0, %v3625
      %v3627 = vpop.f32.mrb[0].mxu0
      %v3628 = vadd.f32 0.0, %v3627
      %3629 = vmatprep.mubr.f32.mxu0 0.0
      %3630 = vmatmul.mubr.f32.gmra.mrb[0].mxu0 %v3461
      %v3631 = vpop.f32.mrb[0].mxu0
      %v3632 = vadd.f32 0.0, %v3631
      %v3633 = vpop.f32.mrb[0].mxu0
      %v3634 = vadd.f32 0.0, %v3633
      %3635 = vmatprep.mubr.f32.mxu0 0.0
      %3636 = vmatmul.mubr.f32.gmra.mrb[0].mxu0 %v3464
      %v3637 = vpop.f32.mrb[0].mxu0
      %v3638 = vadd.f32 0.0, %v3637
      %v3639 = vpop.f32.mrb[0].mxu0
      %v3640 = vadd.f32 0.0, %v3639
      %3641 = vmatprep.mubr.f32.mxu0 0.0
      %3642 = vmatmul.mubr.f32.gmra.mrb[0].mxu0 %v3467
      %v3643 = vpop.f32.mrb[0].mxu0
      %v3644 = vadd.f32 0.0, %v3643
      %v3645 = vpop.f32.mrb[0].mxu0
      %v3646 = vadd.f32 0.0, %v3645
      %3647 = vmatprep.mubr.f32.mxu0 0.0
      %3648 = vmatmul.mubr.f32.gmra.mrb[0].mxu0 %v3470
      %v3649 = vpop.f32.mrb[0].mxu0
      %v3650 = vadd.f32 0.0, %v3649
      %v3651 = vpop.f32.mrb[0].mxu0
      %v3652 = vadd.f32 0.0, %v3651
      %3653 = vmatprep.mubr.f32.mxu0 0.0
      %3654 = vmatmul.mubr.f32.gmra.mrb[0].mxu0 %v3473
      %v3655 = vpop.f32.mrb[0].mxu0
      %v3656 = vadd.f32 0.0, %v3655
      %v3657 = vpop.f32.mrb[0].mxu0
      %v3658 = vadd.f32 0.0, %v3657
      %3659 = vmatprep.mubr.f32.mxu0 0.0
      %3660 = vmatmul.mubr.f32.gmra.mrb[0].mxu0 %v3476
      %v3661 = vpop.f32.mrb[0].mxu0
      %v3662 = vadd.f32 0.0, %v3661
      %v3663 = vpop.f32.mrb[0].mxu0
      %v3664 = vadd.f32 0.0, %v3663
      %3665 = vmatprep.mubr.f32.mxu0 0.0
      %3666 = vmatmul.mubr.f32.gmra.mrb[0].mxu0 %v3479
      %v3667 = vpop.f32.mrb[0].mxu0
      %v3668 = vadd.f32 0.0, %v3667
      %v3669 = vpop.f32.mrb[0].mxu0
      %v3670 = vadd.f32 0.0, %v3669
      %3671 = vmatprep.mubr.f32.mxu0 0.0
      %3672 = vmatmul.mubr.f32.gmra.mrb[0].mxu0 %v3482
      %v3673 = vpop.f32.mrb[0].mxu0
      %v3674 = vadd.f32 0.0, %v3673
      %v3675 = vpop.f32.mrb[0].mxu0
      %v3676 = vadd.f32 0.0, %v3675
      %3677 = vmatprep.mubr.f32.mxu0 0.0
      %3678 = vmatmul.mubr.f32.gmra.mrb[0].mxu0 %v3485
      %v3679 = vpop.f32.mrb[0].mxu0
      %v3680 = vadd.f32 0.0, %v3679
      %v3681 = vpop.f32.mrb[0].mxu0
      %v3682 = vadd.f32 0.0, %v3681
      %3683 = vmatprep.mubr.f32.mxu0 0.0
      %3684 = vmatmul.mubr.f32.gmra.mrb[0].mxu0 %v3488
      %v3685 = vpop.f32.mrb[0].mxu0
      %v3686 = vadd.f32 0.0, %v3685
      %v3687 = vpop.f32.mrb[0].mxu0
      %v3688 = vadd.f32 0.0, %v3687
      %3689 = vmatprep.mubr.f32.mxu0 0.0
      %3690 = vmatmul.mubr.f32.gmra.mrb[0].mxu0 %v3491
      %v3691 = vpop.f32.mrb[0].mxu0
      %v3692 = vadd.f32 0.0, %v3691
      %v3693 = vpop.f32.mrb[0].mxu0
      %v3694 = vadd.f32 0.0, %v3693
      %3695 = vmatprep.mubr.f32.mxu0 0.0
      %3696 = vmatmul.mubr.f32.gmra.mrb[0].mxu0 %v3494
      %v3697 = vpop.f32.mrb[0].mxu0
      %v3698 = vadd.f32 0.0, %v3697
      %v3699 = vpop.f32.mrb[0].mxu0
      %v3700 = vadd.f32 0.0, %v3699
      %3701 = vmatprep.mubr.f32.mxu0 0.0
      %3702 = vmatmul.mubr.f32.gmra.mrb[0].mxu0 %v3497
      %v3703 = vpop.f32.mrb[0].mxu0
      %v3704 = vadd.f32 0.0, %v3703
      %v3705 = vpop.f32.mrb[0].mxu0
      %v3706 = vadd.f32 0.0, %v3705
      %3707 = vmatprep.mubr.f32.mxu0 0.0
      %3708 = vmatmul.mubr.f32.gmra.mrb[0].mxu0 %v3500
      %v3709 = vpop.f32.mrb[0].mxu0
      %v3710 = vadd.f32 0.0, %v3709
      %v3711 = vpop.f32.mrb[0].mxu0
      %v3712 = vadd.f32 0.0, %v3711
      %3713 = vmatprep.mubr.f32.mxu0 0.0
      %3714 = vmatmul.mubr.f32.gmra.mrb[0].mxu0 %v3503
      %v3715 = vpop.f32.mrb[0].mxu0
      %v3716 = vadd.f32 0.0, %v3715
      %v3717 = vpop.f32.mrb[0].mxu0
      %v3718 = vadd.f32 0.0, %v3717
      %3719 = vmatprep.mubr.f32.mxu0 0.0
      %3720 = vmatmul.mubr.f32.gmra.mrb[0].mxu0 %v3506
      %v3721 = vpop.f32.mrb[0].mxu0
      %v3722 = vadd.f32 0.0, %v3721
      %v3723 = vpop.f32.mrb[0].mxu0
      %v3724 = vadd.f32 0.0, %v3723
      %3725 = vmatprep.mubr.f32.mxu0 0.0
      %3726 = vmatmul.mubr.f32.gmra.mrb[0].mxu0 %v3509
      %v3727 = vpop.f32.mrb[0].mxu0
      %v3728 = vadd.f32 0.0, %v3727
      %v3729 = vpop.f32.mrb[0].mxu0
      %v3730 = vadd.f32 0.0, %v3729
      %3731 = vmatprep.mubr.f32.mxu0 0.0
      %3732 = vmatmul.mubr.f32.gmra.mrb[0].mxu0 %v3512
      %v3733 = vpop.f32.mrb[0].mxu0
      %v3734 = vadd.f32 0.0, %v3733
      %v3735 = vpop.f32.mrb[0].mxu0
      %v3736 = vadd.f32 0.0, %v3735
      %3737 = vmatprep.mubr.f32.mxu0 0.0
      %3738 = vmatmul.mubr.f32.gmra.mrb[0].mxu0 %v3515
      %v3739 = vpop.f32.mrb[0].mxu0
      %v3740 = vadd.f32 0.0, %v3739
      %v3741 = vpop.f32.mrb[0].mxu0
      %v3742 = vadd.f32 0.0, %v3741
      %3743 = vmatprep.mubr.f32.mxu0 0.0
      %3744 = vmatmul.mubr.f32.gmra.mrb[0].mxu0 %v3518
      %v3745 = vpop.f32.mrb[0].mxu0
      %v3746 = vadd.f32 0.0, %v3745
      %v3747 = vpop.f32.mrb[0].mxu0
      %v3748 = vadd.f32 0.0, %v3747
      %3749 = vmatprep.mubr.f32.mxu0 0.0
      %3750 = vmatmul.mubr.f32.gmra.mrb[0].mxu0 %v3521
      %v3751 = vpop.f32.mrb[0].mxu0
      %v3752 = vadd.f32 0.0, %v3751
      %v3753 = vpop.f32.mrb[0].mxu0
      %v3754 = vadd.f32 0.0, %v3753
      %3755 = vmatprep.mubr.f32.mxu0 0.0
      %3756 = vmatmul.mubr.f32.gmra.mrb[0].mxu0 %v3524
      %v3757 = vpop.f32.mrb[0].mxu0
      %v3758 = vadd.f32 0.0, %v3757
      %v3759 = vpop.f32.mrb[0].mxu0
      %v3760 = vadd.f32 0.0, %v3759
      %3761 = vmatprep.mubr.f32.mxu0 0.0
      %3762 = vmatmul.mubr.f32.gmra.mrb[0].mxu0 %v3527
      %v3763 = vpop.f32.mrb[0].mxu0
      %v3764 = vadd.f32 0.0, %v3763
      %v3765 = vpop.f32.mrb[0].mxu0
      %v3766 = vadd.f32 0.0, %v3765
      %3767 = vmatprep.mubr.f32.mxu0 0.0
      %3768 = vmatmul.mubr.f32.gmra.mrb[0].mxu0 %v3530
      %v3769 = vpop.f32.mrb[0].mxu0
      %v3770 = vadd.f32 0.0, %v3769
      %v3771 = vpop.f32.mrb[0].mxu0
      %v3772 = vadd.f32 0.0, %v3771
      %3773 = vmatprep.mubr.f32.mxu0 0.0
      %3774 = vmatmul.mubr.f32.gmra.mrb[0].mxu0 %v3533
      %v3775 = vpop.f32.mrb[0].mxu0
      %v3776 = vadd.f32 0.0, %v3775
      %v3777 = vpop.f32.mrb[0].mxu0
      %v3778 = vadd.f32 0.0, %v3777
      %3779 = vmatprep.mubr.f32.mxu0 0.0
      %3780 = vmatmul.mubr.f32.gmra.mrb[0].mxu0 %v3536
      %v3781 = vpop.f32.mrb[0].mxu0
      %v3782 = vadd.f32 0.0, %v3781
      %v3783 = vpop.f32.mrb[0].mxu0
      %v3784 = vadd.f32 0.0, %v3783
      %3785 = vmatprep.mubr.f32.mxu0 0.0
      %3786 = vmatmul.mubr.f32.gmra.mrb[0].mxu0 %v3539
      %v3787 = vpop.f32.mrb[0].mxu0
      %v3788 = vadd.f32 0.0, %v3787
      %v3789 = vpop.f32.mrb[0].mxu0
      %v3790 = vadd.f32 0.0, %v3789
      %3791 = vmatprep.mubr.f32.mxu0 0.0
      %3792 = vmatmul.mubr.f32.gmra.mrb[0].mxu0 %v3542
      %v3793 = vpop.f32.mrb[0].mxu0
      %v3794 = vadd.f32 0.0, %v3793
      %v3795 = vpop.f32.mrb[0].mxu0
      %v3796 = vadd.f32 0.0, %v3795
      %3797 = vmatprep.mubr.f32.mxu0 0.0
      %3798 = vmatmul.mubr.f32.gmra.mrb[0].mxu0 %v3545
      %v3799 = vpop.f32.mrb[0].mxu0
      %v3800 = vadd.f32 0.0, %v3799
      %v3801 = vpop.f32.mrb[0].mxu0
      %v3802 = vadd.f32 0.0, %v3801
      %3803 = vdwg.mxu0
      %v3804 = vmax.f32 %v3614, %v3616
      %3805 = vmax.xlane.f32.xlu0 %v3804
      %v3806 = vpop.xlane.xlu0 %3805
      %v3807 = vmax.f32 %v3620, %v3622
      %3808 = vmax.xlane.f32.xlu0 %v3807
      %v3809 = vpop.xlane.xlu0 %3808
      %v3810 = vmax.f32 %v3626, %v3628
      %3811 = vmax.xlane.f32.xlu0 %v3810
      %v3812 = vpop.xlane.xlu0 %3811
      %v3813 = vmax.f32 %v3632, %v3634
      %3814 = vmax.xlane.f32.xlu0 %v3813
      %v3815 = vpop.xlane.xlu0 %3814
      %v3816 = vmax.f32 %v3638, %v3640
      %3817 = vmax.xlane.f32.xlu0 %v3816
      %v3818 = vpop.xlane.xlu0 %3817
      %v3819 = vmax.f32 %v3644, %v3646
      %3820 = vmax.xlane.f32.xlu0 %v3819
      %v3821 = vpop.xlane.xlu0 %3820
      %v3822 = vmax.f32 %v3650, %v3652
      %3823 = vmax.xlane.f32.xlu0 %v3822
      %v3824 = vpop.xlane.xlu0 %3823
      %v3825 = vmax.f32 %v3656, %v3658
      %3826 = vmax.xlane.f32.xlu0 %v3825
      %v3827 = vpop.xlane.xlu0 %3826
      %v3828 = vmax.f32 %v3662, %v3664
      %3829 = vmax.xlane.f32.xlu0 %v3828
      %v3830 = vpop.xlane.xlu0 %3829
      %v3831 = vmax.f32 %v3668, %v3670
      %3832 = vmax.xlane.f32.xlu0 %v3831
      %v3833 = vpop.xlane.xlu0 %3832
      %v3834 = vmax.f32 %v3674, %v3676
      %3835 = vmax.xlane.f32.xlu0 %v3834
      %v3836 = vpop.xlane.xlu0 %3835
      %v3837 = vmax.f32 %v3680, %v3682
      %3838 = vmax.xlane.f32.xlu0 %v3837
      %v3839 = vpop.xlane.xlu0 %3838
      %v3840 = vmax.f32 %v3686, %v3688
      %3841 = vmax.xlane.f32.xlu0 %v3840
      %v3842 = vpop.xlane.xlu0 %3841
      %v3843 = vmax.f32 %v3692, %v3694
      %3844 = vmax.xlane.f32.xlu0 %v3843
      %v3845 = vpop.xlane.xlu0 %3844
      %v3846 = vmax.f32 %v3698, %v3700
      %3847 = vmax.xlane.f32.xlu0 %v3846
      %v3848 = vpop.xlane.xlu0 %3847
      %v3849 = vmax.f32 %v3704, %v3706
      %3850 = vmax.xlane.f32.xlu0 %v3849
      %v3851 = vpop.xlane.xlu0 %3850
      %v3852 = vmax.f32 %v3710, %v3712
      %3853 = vmax.xlane.f32.xlu0 %v3852
      %v3854 = vpop.xlane.xlu0 %3853
      %v3855 = vmax.f32 %v3716, %v3718
      %3856 = vmax.xlane.f32.xlu0 %v3855
      %v3857 = vpop.xlane.xlu0 %3856
      %v3858 = vmax.f32 %v3722, %v3724
      %3859 = vmax.xlane.f32.xlu0 %v3858
      %v3860 = vpop.xlane.xlu0 %3859
      %v3861 = vmax.f32 %v3728, %v3730
      %3862 = vmax.xlane.f32.xlu0 %v3861
      %v3863 = vpop.xlane.xlu0 %3862
      %v3864 = vmax.f32 %v3734, %v3736
      %3865 = vmax.xlane.f32.xlu0 %v3864
      %v3866 = vpop.xlane.xlu0 %3865
      %v3867 = vmax.f32 %v3740, %v3742
      %3868 = vmax.xlane.f32.xlu0 %v3867
      %v3869 = vpop.xlane.xlu0 %3868
      %v3870 = vmax.f32 %v3746, %v3748
      %3871 = vmax.xlane.f32.xlu0 %v3870
      %v3872 = vpop.xlane.xlu0 %3871
      %v3873 = vmax.f32 %v3752, %v3754
      %3874 = vmax.xlane.f32.xlu0 %v3873
      %v3875 = vpop.xlane.xlu0 %3874
      %v3876 = vmax.f32 %v3758, %v3760
      %3877 = vmax.xlane.f32.xlu0 %v3876
      %v3878 = vpop.xlane.xlu0 %3877
      %v3879 = vmax.f32 %v3764, %v3766
      %3880 = vmax.xlane.f32.xlu0 %v3879
      %v3881 = vpop.xlane.xlu0 %3880
      %v3882 = vmax.f32 %v3770, %v3772
      %3883 = vmax.xlane.f32.xlu0 %v3882
      %v3884 = vpop.xlane.xlu0 %3883
      %v3885 = vmax.f32 %v3776, %v3778
      %3886 = vmax.xlane.f32.xlu0 %v3885
      %v3887 = vpop.xlane.xlu0 %3886
      %v3888 = vmax.f32 %v3782, %v3784
      %3889 = vmax.xlane.f32.xlu0 %v3888
      %v3890 = vpop.xlane.xlu0 %3889
      %v3891 = vmax.f32 %v3788, %v3790
      %3892 = vmax.xlane.f32.xlu0 %v3891
      %v3893 = vpop.xlane.xlu0 %3892
      %v3894 = vmax.f32 %v3794, %v3796
      %3895 = vmax.xlane.f32.xlu0 %v3894
      %v3896 = vpop.xlane.xlu0 %3895
      %v3897 = vmax.f32 %v3800, %v3802
      %3898 = vmax.xlane.f32.xlu0 %v3897
      %v3899 = vpop.xlane.xlu0 %3898
      %v3900 = vsub.f32 %v3614, %v3806
      %v3901 = vsub.f32 %v3616, %v3806
      %v3902 = vsub.f32 %v3620, %v3809
      %v3903 = vsub.f32 %v3622, %v3809
      %v3904 = vsub.f32 %v3626, %v3812
      %v3905 = vsub.f32 %v3628, %v3812
      %v3906 = vsub.f32 %v3632, %v3815
      %v3907 = vsub.f32 %v3634, %v3815
      %v3908 = vsub.f32 %v3638, %v3818
      %v3909 = vsub.f32 %v3640, %v3818
      %v3910 = vsub.f32 %v3644, %v3821
      %v3911 = vsub.f32 %v3646, %v3821
      %v3912 = vsub.f32 %v3650, %v3824
      %v3913 = vsub.f32 %v3652, %v3824
      %v3914 = vsub.f32 %v3656, %v3827
      %v3915 = vsub.f32 %v3658, %v3827
      %v3916 = vsub.f32 %v3662, %v3830
      %v3917 = vsub.f32 %v3664, %v3830
      %v3918 = vsub.f32 %v3668, %v3833
      %v3919 = vsub.f32 %v3670, %v3833
      %v3920 = vsub.f32 %v3674, %v3836
      %v3921 = vsub.f32 %v3676, %v3836
      %v3922 = vsub.f32 %v3680, %v3839
      %v3923 = vsub.f32 %v3682, %v3839
      %v3924 = vsub.f32 %v3686, %v3842
      %v3925 = vsub.f32 %v3688, %v3842
      %v3926 = vsub.f32 %v3692, %v3845
      %v3927 = vsub.f32 %v3694, %v3845
      %v3928 = vsub.f32 %v3698, %v3848
      %v3929 = vsub.f32 %v3700, %v3848
      %v3930 = vsub.f32 %v3704, %v3851
      %v3931 = vsub.f32 %v3706, %v3851
      %v3932 = vsub.f32 %v3710, %v3854
      %v3933 = vsub.f32 %v3712, %v3854
      %v3934 = vsub.f32 %v3716, %v3857
      %v3935 = vsub.f32 %v3718, %v3857
      %v3936 = vsub.f32 %v3722, %v3860
      %v3937 = vsub.f32 %v3724, %v3860
      %v3938 = vsub.f32 %v3728, %v3863
      %v3939 = vsub.f32 %v3730, %v3863
      %v3940 = vsub.f32 %v3734, %v3866
      %v3941 = vsub.f32 %v3736, %v3866
      %v3942 = vsub.f32 %v3740, %v3869
      %v3943 = vsub.f32 %v3742, %v3869
      %v3944 = vsub.f32 %v3746, %v3872
      %v3945 = vsub.f32 %v3748, %v3872
      %v3946 = vsub.f32 %v3752, %v3875
      %v3947 = vsub.f32 %v3754, %v3875
      %v3948 = vsub.f32 %v3758, %v3878
      %v3949 = vsub.f32 %v3760, %v3878
      %v3950 = vsub.f32 %v3764, %v3881
      %v3951 = vsub.f32 %v3766, %v3881
      %v3952 = vsub.f32 %v3770, %v3884
      %v3953 = vsub.f32 %v3772, %v3884
      %v3954 = vsub.f32 %v3776, %v3887
      %v3955 = vsub.f32 %v3778, %v3887
      %v3956 = vsub.f32 %v3782, %v3890
      %v3957 = vsub.f32 %v3784, %v3890
      %v3958 = vsub.f32 %v3788, %v3893
      %v3959 = vsub.f32 %v3790, %v3893
      %v3960 = vsub.f32 %v3794, %v3896
      %v3961 = vsub.f32 %v3796, %v3896
      %v3962 = vsub.f32 %v3800, %v3899
      %v3963 = vsub.f32 %v3802, %v3899
      %v3964 = vmul.f32 %v3900, 1.442695
      %v3965 = vpow.pop %v3964
      %v3966 = vmul.f32 %v3901, 1.442695
      %v3967 = vpow.pop %v3966
      %v3968 = vmul.f32 %v3902, 1.442695
      %v3969 = vpow.pop %v3968
      %v3970 = vmul.f32 %v3903, 1.442695
      %v3971 = vpow.pop %v3970
      %v3972 = vmul.f32 %v3904, 1.442695
      %v3973 = vpow.pop %v3972
      %v3974 = vmul.f32 %v3905, 1.442695
      %v3975 = vpow.pop %v3974
      %v3976 = vmul.f32 %v3906, 1.442695
      %v3977 = vpow.pop %v3976
      %v3978 = vmul.f32 %v3907, 1.442695
      %v3979 = vpow.pop %v3978
      %v3980 = vmul.f32 %v3908, 1.442695
      %v3981 = vpow.pop %v3980
      %v3982 = vmul.f32 %v3909, 1.442695
      %v3983 = vpow.pop %v3982
      %v3984 = vmul.f32 %v3910, 1.442695
      %v3985 = vpow.pop %v3984
      %v3986 = vmul.f32 %v3911, 1.442695
      %v3987 = vpow.pop %v3986
      %v3988 = vmul.f32 %v3912, 1.442695
      %v3989 = vpow.pop %v3988
      %v3990 = vmul.f32 %v3913, 1.442695
      %v3991 = vpow.pop %v3990
      %v3992 = vmul.f32 %v3914, 1.442695
      %v3993 = vpow.pop %v3992
      %v3994 = vmul.f32 %v3915, 1.442695
      %v3995 = vpow.pop %v3994
      %v3996 = vmul.f32 %v3916, 1.442695
      %v3997 = vpow.pop %v3996
      %v3998 = vmul.f32 %v3917, 1.442695
      %v3999 = vpow.pop %v3998
      %v4000 = vmul.f32 %v3918, 1.442695
      %v4001 = vpow.pop %v4000
      %v4002 = vmul.f32 %v3919, 1.442695
      %v4003 = vpow.pop %v4002
      %v4004 = vmul.f32 %v3920, 1.442695
      %v4005 = vpow.pop %v4004
      %v4006 = vmul.f32 %v3921, 1.442695
      %v4007 = vpow.pop %v4006
      %v4008 = vmul.f32 %v3922, 1.442695
      %v4009 = vpow.pop %v4008
      %v4010 = vmul.f32 %v3923, 1.442695
      %v4011 = vpow.pop %v4010
      %v4012 = vmul.f32 %v3924, 1.442695
      %v4013 = vpow.pop %v4012
      %v4014 = vmul.f32 %v3925, 1.442695
      %v4015 = vpow.pop %v4014
      %v4016 = vmul.f32 %v3926, 1.442695
      %v4017 = vpow.pop %v4016
      %v4018 = vmul.f32 %v3927, 1.442695
      %v4019 = vpow.pop %v4018
      %v4020 = vmul.f32 %v3928, 1.442695
      %v4021 = vpow.pop %v4020
      %v4022 = vmul.f32 %v3929, 1.442695
      %v4023 = vpow.pop %v4022
      %v4024 = vmul.f32 %v3930, 1.442695
      %v4025 = vpow.pop %v4024
      %v4026 = vmul.f32 %v3931, 1.442695
      %v4027 = vpow.pop %v4026
      %v4028 = vmul.f32 %v3932, 1.442695
      %v4029 = vpow.pop %v4028
      %v4030 = vmul.f32 %v3933, 1.442695
      %v4031 = vpow.pop %v4030
      %v4032 = vmul.f32 %v3934, 1.442695
      %v4033 = vpow.pop %v4032
      %v4034 = vmul.f32 %v3935, 1.442695
      %v4035 = vpow.pop %v4034
      %v4036 = vmul.f32 %v3936, 1.442695
      %v4037 = vpow.pop %v4036
      %v4038 = vmul.f32 %v3937, 1.442695
      %v4039 = vpow.pop %v4038
      %v4040 = vmul.f32 %v3938, 1.442695
      %v4041 = vpow.pop %v4040
      %v4042 = vmul.f32 %v3939, 1.442695
      %v4043 = vpow.pop %v4042
      %v4044 = vmul.f32 %v3940, 1.442695
      %v4045 = vpow.pop %v4044
      %v4046 = vmul.f32 %v3941, 1.442695
      %v4047 = vpow.pop %v4046
      %v4048 = vmul.f32 %v3942, 1.442695
      %v4049 = vpow.pop %v4048
      %v4050 = vmul.f32 %v3943, 1.442695
      %v4051 = vpow.pop %v4050
      %v4052 = vmul.f32 %v3944, 1.442695
      %v4053 = vpow.pop %v4052
      %v4054 = vmul.f32 %v3945, 1.442695
      %v4055 = vpow.pop %v4054
      %v4056 = vmul.f32 %v3946, 1.442695
      %v4057 = vpow.pop %v4056
      %v4058 = vmul.f32 %v3947, 1.442695
      %v4059 = vpow.pop %v4058
      %v4060 = vmul.f32 %v3948, 1.442695
      %v4061 = vpow.pop %v4060
      %v4062 = vmul.f32 %v3949, 1.442695
      %v4063 = vpow.pop %v4062
      %v4064 = vmul.f32 %v3950, 1.442695
      %v4065 = vpow.pop %v4064
      %v4066 = vmul.f32 %v3951, 1.442695
      %v4067 = vpow.pop %v4066
      %v4068 = vmul.f32 %v3952, 1.442695
      %v4069 = vpow.pop %v4068
      %v4070 = vmul.f32 %v3953, 1.442695
      %v4071 = vpow.pop %v4070
      %v4072 = vmul.f32 %v3954, 1.442695
      %v4073 = vpow.pop %v4072
      %v4074 = vmul.f32 %v3955, 1.442695
      %v4075 = vpow.pop %v4074
      %v4076 = vmul.f32 %v3956, 1.442695
      %v4077 = vpow.pop %v4076
      %v4078 = vmul.f32 %v3957, 1.442695
      %v4079 = vpow.pop %v4078
      %v4080 = vmul.f32 %v3958, 1.442695
      %v4081 = vpow.pop %v4080
      %v4082 = vmul.f32 %v3959, 1.442695
      %v4083 = vpow.pop %v4082
      %v4084 = vmul.f32 %v3960, 1.442695
      %v4085 = vpow.pop %v4084
      %v4086 = vmul.f32 %v3961, 1.442695
      %v4087 = vpow.pop %v4086
      %v4088 = vmul.f32 %v3962, 1.442695
      %v4089 = vpow.pop %v4088
      %v4090 = vmul.f32 %v3963, 1.442695
      %v4091 = vpow.pop %v4090
      %v4092 = vadd.f32 %v3965, %v3967
      %4093 = vadd.xlane.f32.xlu0 %v4092
      %v4094 = vpop.xlane.xlu0 %4093
      %v4095 = vadd.f32 %v3969, %v3971
      %4096 = vadd.xlane.f32.xlu0 %v4095
      %v4097 = vpop.xlane.xlu0 %4096
      %v4098 = vadd.f32 %v3973, %v3975
      %4099 = vadd.xlane.f32.xlu0 %v4098
      %v4100 = vpop.xlane.xlu0 %4099
      %v4101 = vadd.f32 %v3977, %v3979
      %4102 = vadd.xlane.f32.xlu0 %v4101
      %v4103 = vpop.xlane.xlu0 %4102
      %v4104 = vadd.f32 %v3981, %v3983
      %4105 = vadd.xlane.f32.xlu0 %v4104
      %v4106 = vpop.xlane.xlu0 %4105
      %v4107 = vadd.f32 %v3985, %v3987
      %4108 = vadd.xlane.f32.xlu0 %v4107
      %v4109 = vpop.xlane.xlu0 %4108
      %v4110 = vadd.f32 %v3989, %v3991
      %4111 = vadd.xlane.f32.xlu0 %v4110
      %v4112 = vpop.xlane.xlu0 %4111
      %v4113 = vadd.f32 %v3993, %v3995
      %4114 = vadd.xlane.f32.xlu0 %v4113
      %v4115 = vpop.xlane.xlu0 %4114
      %v4116 = vadd.f32 %v3997, %v3999
      %4117 = vadd.xlane.f32.xlu0 %v4116
      %v4118 = vpop.xlane.xlu0 %4117
      %v4119 = vadd.f32 %v4001, %v4003
      %4120 = vadd.xlane.f32.xlu0 %v4119
      %v4121 = vpop.xlane.xlu0 %4120
      %v4122 = vadd.f32 %v4005, %v4007
      %4123 = vadd.xlane.f32.xlu0 %v4122
      %v4124 = vpop.xlane.xlu0 %4123
      %v4125 = vadd.f32 %v4009, %v4011
      %4126 = vadd.xlane.f32.xlu0 %v4125
      %v4127 = vpop.xlane.xlu0 %4126
      %v4128 = vadd.f32 %v4013, %v4015
      %4129 = vadd.xlane.f32.xlu0 %v4128
      %v4130 = vpop.xlane.xlu0 %4129
      %v4131 = vadd.f32 %v4017, %v4019
      %4132 = vadd.xlane.f32.xlu0 %v4131
      %v4133 = vpop.xlane.xlu0 %4132
      %v4134 = vadd.f32 %v4021, %v4023
      %4135 = vadd.xlane.f32.xlu0 %v4134
      %v4136 = vpop.xlane.xlu0 %4135
      %v4137 = vadd.f32 %v4025, %v4027
      %4138 = vadd.xlane.f32.xlu0 %v4137
      %v4139 = vpop.xlane.xlu0 %4138
      %v4140 = vadd.f32 %v4029, %v4031
      %4141 = vadd.xlane.f32.xlu0 %v4140
      %v4142 = vpop.xlane.xlu0 %4141
      %v4143 = vadd.f32 %v4033, %v4035
      %4144 = vadd.xlane.f32.xlu0 %v4143
      %v4145 = vpop.xlane.xlu0 %4144
      %v4146 = vadd.f32 %v4037, %v4039
      %4147 = vadd.xlane.f32.xlu0 %v4146
      %v4148 = vpop.xlane.xlu0 %4147
      %v4149 = vadd.f32 %v4041, %v4043
      %4150 = vadd.xlane.f32.xlu0 %v4149
      %v4151 = vpop.xlane.xlu0 %4150
      %v4152 = vadd.f32 %v4045, %v4047
      %4153 = vadd.xlane.f32.xlu0 %v4152
      %v4154 = vpop.xlane.xlu0 %4153
      %v4155 = vadd.f32 %v4049, %v4051
      %4156 = vadd.xlane.f32.xlu0 %v4155
      %v4157 = vpop.xlane.xlu0 %4156
      %v4158 = vadd.f32 %v4053, %v4055
      %4159 = vadd.xlane.f32.xlu0 %v4158
      %v4160 = vpop.xlane.xlu0 %4159
      %v4161 = vadd.f32 %v4057, %v4059
      %4162 = vadd.xlane.f32.xlu0 %v4161
      %v4163 = vpop.xlane.xlu0 %4162
      %v4164 = vadd.f32 %v4061, %v4063
      %4165 = vadd.xlane.f32.xlu0 %v4164
      %v4166 = vpop.xlane.xlu0 %4165
      %v4167 = vadd.f32 %v4065, %v4067
      %4168 = vadd.xlane.f32.xlu0 %v4167
      %v4169 = vpop.xlane.xlu0 %4168
      %v4170 = vadd.f32 %v4069, %v4071
      %4171 = vadd.xlane.f32.xlu0 %v4170
      %v4172 = vpop.xlane.xlu0 %4171
      %v4173 = vadd.f32 %v4073, %v4075
      %4174 = vadd.xlane.f32.xlu0 %v4173
      %v4175 = vpop.xlane.xlu0 %4174
      %v4176 = vadd.f32 %v4077, %v4079
      %4177 = vadd.xlane.f32.xlu0 %v4176
      %v4178 = vpop.xlane.xlu0 %4177
      %v4179 = vadd.f32 %v4081, %v4083
      %4180 = vadd.xlane.f32.xlu0 %v4179
      %v4181 = vpop.xlane.xlu0 %4180
      %v4182 = vadd.f32 %v4085, %v4087
      %4183 = vadd.xlane.f32.xlu0 %v4182
      %v4184 = vpop.xlane.xlu0 %4183
      %v4185 = vadd.f32 %v4089, %v4091
      %4186 = vadd.xlane.f32.xlu0 %v4185
      %v4187 = vpop.xlane.xlu0 %4186
      %v4188 = vrcp.pop %v4094
      %v4189 = vrcp.pop %v4097
      %v4190 = vrcp.pop %v4100
      %v4191 = vrcp.pop %v4103
      %v4192 = vrcp.pop %v4106
      %v4193 = vrcp.pop %v4109
      %v4194 = vrcp.pop %v4112
      %v4195 = vrcp.pop %v4115
      %v4196 = vrcp.pop %v4118
      %v4197 = vrcp.pop %v4121
      %v4198 = vrcp.pop %v4124
      %v4199 = vrcp.pop %v4127
      %v4200 = vrcp.pop %v4130
      %v4201 = vrcp.pop %v4133
      %v4202 = vrcp.pop %v4136
      %v4203 = vrcp.pop %v4139
      %v4204 = vrcp.pop %v4142
      %v4205 = vrcp.pop %v4145
      %v4206 = vrcp.pop %v4148
      %v4207 = vrcp.pop %v4151
      %v4208 = vrcp.pop %v4154
      %v4209 = vrcp.pop %v4157
      %v4210 = vrcp.pop %v4160
      %v4211 = vrcp.pop %v4163
      %v4212 = vrcp.pop %v4166
      %v4213 = vrcp.pop %v4169
      %v4214 = vrcp.pop %v4172
      %v4215 = vrcp.pop %v4175
      %v4216 = vrcp.pop %v4178
      %v4217 = vrcp.pop %v4181
      %v4218 = vrcp.pop %v4184
      %v4219 = vrcp.pop %v4187
      %v4220 = vmul.f32 %v3965, %v4188
      %v4221 = vmul.f32 %v3967, %v4188
      %v4222 = vmul.f32 %v3969, %v4189
      %v4223 = vmul.f32 %v3971, %v4189
      %v4224 = vmul.f32 %v3973, %v4190
      %v4225 = vmul.f32 %v3975, %v4190
      %v4226 = vmul.f32 %v3977, %v4191
      %v4227 = vmul.f32 %v3979, %v4191
      %v4228 = vmul.f32 %v3981, %v4192
      %v4229 = vmul.f32 %v3983, %v4192
      %v4230 = vmul.f32 %v3985, %v4193
      %v4231 = vmul.f32 %v3987, %v4193
      %v4232 = vmul.f32 %v3989, %v4194
      %v4233 = vmul.f32 %v3991, %v4194
      %v4234 = vmul.f32 %v3993, %v4195
      %v4235 = vmul.f32 %v3995, %v4195
      %v4236 = vmul.f32 %v3997, %v4196
      %v4237 = vmul.f32 %v3999, %v4196
      %v4238 = vmul.f32 %v4001, %v4197
      %v4239 = vmul.f32 %v4003, %v4197
      %v4240 = vmul.f32 %v4005, %v4198
      %v4241 = vmul.f32 %v4007, %v4198
      %v4242 = vmul.f32 %v4009, %v4199
      %v4243 = vmul.f32 %v4011, %v4199
      %v4244 = vmul.f32 %v4013, %v4200
      %v4245 = vmul.f32 %v4015, %v4200
      %v4246 = vmul.f32 %v4017, %v4201
      %v4247 = vmul.f32 %v4019, %v4201
      %v4248 = vmul.f32 %v4021, %v4202
      %v4249 = vmul.f32 %v4023, %v4202
      %v4250 = vmul.f32 %v4025, %v4203
      %v4251 = vmul.f32 %v4027, %v4203
      %v4252 = vmul.f32 %v4029, %v4204
      %v4253 = vmul.f32 %v4031, %v4204
      %v4254 = vmul.f32 %v4033, %v4205
      %v4255 = vmul.f32 %v4035, %v4205
      %v4256 = vmul.f32 %v4037, %v4206
      %v4257 = vmul.f32 %v4039, %v4206
      %v4258 = vmul.f32 %v4041, %v4207
      %v4259 = vmul.f32 %v4043, %v4207
      %v4260 = vmul.f32 %v4045, %v4208
      %v4261 = vmul.f32 %v4047, %v4208
      %v4262 = vmul.f32 %v4049, %v4209
      %v4263 = vmul.f32 %v4051, %v4209
      %v4264 = vmul.f32 %v4053, %v4210
      %v4265 = vmul.f32 %v4055, %v4210
      %v4266 = vmul.f32 %v4057, %v4211
      %v4267 = vmul.f32 %v4059, %v4211
      %v4268 = vmul.f32 %v4061, %v4212
      %v4269 = vmul.f32 %v4063, %v4212
      %v4270 = vmul.f32 %v4065, %v4213
      %v4271 = vmul.f32 %v4067, %v4213
      %v4272 = vmul.f32 %v4069, %v4214
      %v4273 = vmul.f32 %v4071, %v4214
      %v4274 = vmul.f32 %v4073, %v4215
      %v4275 = vmul.f32 %v4075, %v4215
      %v4276 = vmul.f32 %v4077, %v4216
      %v4277 = vmul.f32 %v4079, %v4216
      %v4278 = vmul.f32 %v4081, %v4217
      %v4279 = vmul.f32 %v4083, %v4217
      %v4280 = vmul.f32 %v4085, %v4218
      %v4281 = vmul.f32 %v4087, %v4218
      %v4282 = vmul.f32 %v4089, %v4219
      %v4283 = vmul.f32 %v4091, %v4219
      %4284 = vmatprep.subr.mxu0 %v4221
      %4285 = vmatpush1.xpose.msra.mxu0 %v4220
      %4286 = vmatprep.subr.mxu0 %v4223
      %4287 = vmatpush1.xpose.msra.mxu0 %v4222
      %4288 = vmatprep.subr.mxu0 %v4225
      %4289 = vmatpush1.xpose.msra.mxu0 %v4224
      %4290 = vmatprep.subr.mxu0 %v4227
      %4291 = vmatpush1.xpose.msra.mxu0 %v4226
      %4292 = vmatprep.subr.mxu0 %v4229
      %4293 = vmatpush1.xpose.msra.mxu0 %v4228
      %4294 = vmatprep.subr.mxu0 %v4231
      %4295 = vmatpush1.xpose.msra.mxu0 %v4230
      %4296 = vmatprep.subr.mxu0 %v4233
      %4297 = vmatpush1.xpose.msra.mxu0 %v4232
      %4298 = vmatprep.subr.mxu0 %v4235
      %4299 = vmatpush1.xpose.msra.mxu0 %v4234
      %4300 = vmatprep.subr.mxu0 %v4237
      %4301 = vmatpush1.xpose.msra.mxu0 %v4236
      %4302 = vmatprep.subr.mxu0 %v4239
      %4303 = vmatpush1.xpose.msra.mxu0 %v4238
      %4304 = vmatprep.subr.mxu0 %v4241
      %4305 = vmatpush1.xpose.msra.mxu0 %v4240
      %4306 = vmatprep.subr.mxu0 %v4243
      %4307 = vmatpush1.xpose.msra.mxu0 %v4242
      %4308 = vmatprep.subr.mxu0 %v4245
      %4309 = vmatpush1.xpose.msra.mxu0 %v4244
      %4310 = vmatprep.subr.mxu0 %v4247
      %4311 = vmatpush1.xpose.msra.mxu0 %v4246
      %4312 = vmatprep.subr.mxu0 %v4249
      %4313 = vmatpush1.xpose.msra.mxu0 %v4248
      %4314 = vmatprep.subr.mxu0 %v4251
      %4315 = vmatpush1.xpose.msra.mxu0 %v4250
      %4316 = vmatprep.subr.mxu0 %v4253
      %4317 = vmatpush1.xpose.msra.mxu0 %v4252
      %4318 = vmatprep.subr.mxu0 %v4255
      %4319 = vmatpush1.xpose.msra.mxu0 %v4254
      %4320 = vmatprep.subr.mxu0 %v4257
      %4321 = vmatpush1.xpose.msra.mxu0 %v4256
      %4322 = vmatprep.subr.mxu0 %v4259
      %4323 = vmatpush1.xpose.msra.mxu0 %v4258
      %4324 = vmatprep.subr.mxu0 %v4261
      %4325 = vmatpush1.xpose.msra.mxu0 %v4260
      %4326 = vmatprep.subr.mxu0 %v4263
      %4327 = vmatpush1.xpose.msra.mxu0 %v4262
      %4328 = vmatprep.subr.mxu0 %v4265
      %4329 = vmatpush1.xpose.msra.mxu0 %v4264
      %4330 = vmatprep.subr.mxu0 %v4267
      %4331 = vmatpush1.xpose.msra.mxu0 %v4266
      %4332 = vmatprep.subr.mxu0 %v4269
      %4333 = vmatpush1.xpose.msra.mxu0 %v4268
      %4334 = vmatprep.subr.mxu0 %v4271
      %4335 = vmatpush1.xpose.msra.mxu0 %v4270
      %4336 = vmatprep.subr.mxu0 %v4273
      %4337 = vmatpush1.xpose.msra.mxu0 %v4272
      %4338 = vmatprep.subr.mxu0 %v4275
      %4339 = vmatpush1.xpose.msra.mxu0 %v4274
      %4340 = vmatprep.subr.mxu0 %v4277
      %4341 = vmatpush1.xpose.msra.mxu0 %v4276
      %4342 = vmatprep.subr.mxu0 %v4279
      %4343 = vmatpush1.xpose.msra.mxu0 %v4278
      %4344 = vmatprep.subr.mxu0 %v4281
      %4345 = vmatpush1.xpose.msra.mxu0 %v4280
      %4346 = vmatprep.subr.mxu0 %v4283
      %4347 = vmatpush1.xpose.msra.mxu0 %v4282
      %4348 = vmatprep.mubr.f32.mxu0 %v3386
      %4349 = vmatmul.mubr.f32.gmra.mrb[0].mxu0 %v3385
      %v4350 = vpop.f32.mrb[0].mxu0
      %v4351 = vadd.f32 0.0, %v4350
      %v4352 = vpop.f32.mrb[0].mxu0
      %v4353 = vadd.f32 0.0, %v4352
      %4354 = vdwg.mxu0
      %v4355 = vld [vmem:[%s2] sm:$0xff]
      %v4356 = vld [vmem:[%s2 + $0x8] sm:$0xff]
      %v4357 = vld [vmem:[%s2 + $0x10] sm:$0xff]
      %v4358 = vld [vmem:[%s2 + $0x18] sm:$0xff]
      %v4359 = vld [vmem:[%s3] sm:$0xff]
      %v4360 = vld [vmem:[%s3 + $0x8] sm:$0xff]
      %v4361 = vld [vmem:[%s3 + $0x10] sm:$0xff]
      %v4362 = vld [vmem:[%s3 + $0x18] sm:$0xff]
      %4364 = vset.pattern.permute.xlu0 0
      %4365 = vperm.xlu0 %4364, %v4359
      %v4366 = vpop.permute.xlu0 %4365
      %4369 = vset.pattern.permute.xlu0 0
      %4370 = vperm.xlu0 %4369, %v4360
      %v4371 = vpop.permute.xlu0 %4370
      %4374 = vset.pattern.permute.xlu0 0
      %4375 = vperm.xlu0 %4374, %v4361
      %v4376 = vpop.permute.xlu0 %4375
      %4379 = vset.pattern.permute.xlu0 0
      %4380 = vperm.xlu0 %4379, %v4362
      %v4381 = vpop.permute.xlu0 %4380
      %vm4383 = vcmask 261120
      %v4385 = vsel %vm4383, %v4355, 0
      %v4388 = vsel %vm4383, %v4356, 0
      %v4391 = vsel %vm4383, %v4357, 0
      %v4394 = vsel %vm4383, %v4358, 0
      %4396 = vmatprep.subr.mxu0 %v1437
      %4397 = vmatpush1.msra.mxu0 %v1435
      %4398 = vmatprep.subr.mxu0 %v2409
      %4399 = vmatpush1.msra.mxu0 %v2407
      %4400 = vmatprep.subr.mxu0 %v3381
      %4401 = vmatpush1.msra.mxu0 %v3379
      %4402 = vmatprep.subr.mxu0 %v4353
      %4403 = vmatpush1.msra.mxu0 %v4351
      %4404 = vmatprep.subr.mxu0 0.0
      %4405 = vmatpush1.msra.mxu0 0.0
      %4406 = vmatprep.subr.mxu0 0.0
      %4407 = vmatpush1.msra.mxu0 0.0
      %4408 = vmatprep.subr.mxu0 0.0
      %4409 = vmatpush1.msra.mxu0 0.0
      %4410 = vmatprep.subr.mxu0 0.0
      %4411 = vmatpush1.msra.mxu0 0.0
      %4412 = vmatprep.subr.mxu0 0.0
      %4413 = vmatpush1.msra.mxu0 0.0
      %4414 = vmatprep.subr.mxu0 0.0
      %4415 = vmatpush1.msra.mxu0 0.0
      %4416 = vmatprep.subr.mxu0 0.0
      %4417 = vmatpush1.msra.mxu0 0.0
      %4418 = vmatprep.subr.mxu0 0.0
      %4419 = vmatpush1.msra.mxu0 0.0
      %4420 = vmatprep.subr.mxu0 0.0
      %4421 = vmatpush1.msra.mxu0 0.0
      %4422 = vmatprep.subr.mxu0 0.0
      %4423 = vmatpush1.msra.mxu0 0.0
      %4424 = vmatprep.subr.mxu0 0.0
      %4425 = vmatpush1.msra.mxu0 0.0
      %4426 = vmatprep.subr.mxu0 0.0
      %4427 = vmatpush1.msra.mxu0 0.0
      %4428 = vmatprep.subr.mxu0 0.0
      %4429 = vmatpush1.msra.mxu0 0.0
      %4430 = vmatprep.subr.mxu0 0.0
      %4431 = vmatpush1.msra.mxu0 0.0
      %4432 = vmatprep.subr.mxu0 0.0
      %4433 = vmatpush1.msra.mxu0 0.0
      %4434 = vmatprep.subr.mxu0 0.0
      %4435 = vmatpush1.msra.mxu0 0.0
      %4436 = vmatprep.subr.mxu0 0.0
      %4437 = vmatpush1.msra.mxu0 0.0
      %4438 = vmatprep.subr.mxu0 0.0
      %4439 = vmatpush1.msra.mxu0 0.0
      %4440 = vmatprep.subr.mxu0 0.0
      %4441 = vmatpush1.msra.mxu0 0.0
      %4442 = vmatprep.subr.mxu0 0.0
      %4443 = vmatpush1.msra.mxu0 0.0
      %4444 = vmatprep.subr.mxu0 0.0
      %4445 = vmatpush1.msra.mxu0 0.0
      %4446 = vmatprep.subr.mxu0 0.0
      %4447 = vmatpush1.msra.mxu0 0.0
      %4448 = vmatprep.subr.mxu0 0.0
      %4449 = vmatpush1.msra.mxu0 0.0
      %4450 = vmatprep.subr.mxu0 0.0
      %4451 = vmatpush1.msra.mxu0 0.0
      %4452 = vmatprep.subr.mxu0 0.0
      %4453 = vmatpush1.msra.mxu0 0.0
      %4454 = vmatprep.subr.mxu0 0.0
      %4455 = vmatpush1.msra.mxu0 0.0
      %4456 = vmatprep.subr.mxu0 0.0
      %4457 = vmatpush1.msra.mxu0 0.0
      %4458 = vmatprep.subr.mxu0 0.0
      %4459 = vmatpush1.msra.mxu0 0.0
      %4460 = vmatprep.mubr.f32.mxu0 0.0
      %4461 = vmatmul.mubr.f32.gmra.mrb[0].mxu0 %v4385
      %v4462 = vpop.f32.mrb[0].mxu0
      %v4463 = vadd.f32 %v4366, %v4462
      %v4464 = vpop.f32.mrb[0].mxu0
      %v4465 = vadd.f32 %v4366, %v4464
      %4466 = vmatprep.mubr.f32.mxu0 0.0
      %4467 = vmatmul.mubr.f32.gmra.mrb[0].mxu0 %v4388
      %v4468 = vpop.f32.mrb[0].mxu0
      %v4469 = vadd.f32 %v4371, %v4468
      %v4470 = vpop.f32.mrb[0].mxu0
      %v4471 = vadd.f32 %v4371, %v4470
      %4472 = vmatprep.mubr.f32.mxu0 0.0
      %4473 = vmatmul.mubr.f32.gmra.mrb[0].mxu0 %v4391
      %v4474 = vpop.f32.mrb[0].mxu0
      %v4475 = vadd.f32 %v4376, %v4474
      %v4476 = vpop.f32.mrb[0].mxu0
      %v4477 = vadd.f32 %v4376, %v4476
      %4478 = vmatprep.mubr.f32.mxu0 0.0
      %4479 = vmatmul.mubr.f32.gmra.mrb[0].mxu0 %v4394
      %v4480 = vpop.f32.mrb[0].mxu0
      %v4481 = vadd.f32 %v4381, %v4480
      %v4482 = vpop.f32.mrb[0].mxu0
      %v4483 = vadd.f32 %v4381, %v4482
      %4484 = vdwg.mxu0
      %v4485 = vadd.f32 %v4463, %v458
      %v4486 = vadd.f32 %v4465, %v459
      %v4487 = vadd.f32 %v4469, %v460
      %v4488 = vadd.f32 %v4471, %v461
      %v4489 = vadd.f32 %v4475, %v462
      %v4490 = vadd.f32 %v4477, %v463
      %v4491 = vadd.f32 %v4481, %v464
      %v4492 = vadd.f32 %v4483, %v465
      %4493 = vst [vmem:[%s219] sm:$0xff] %v4485
      %4494 = vst [vmem:[%s219 + $0x8] sm:$0xff] %v4486
      %4495 = vst [vmem:[%s219 + $0x10] sm:$0xff] %v4487
      %4496 = vst [vmem:[%s219 + $0x18] sm:$0xff] %v4488
      %4497 = vst [vmem:[%s219 + $0x20] sm:$0xff] %v4489
      %4498 = vst [vmem:[%s219 + $0x28] sm:$0xff] %v4490
      %4499 = vst [vmem:[%s219 + $0x30] sm:$0xff] %v4491
      %4500 = vst [vmem:[%s219 + $0x38] sm:$0xff] %v4492
      %s4501 = smul.u32 2, %s20
      %p4502 = scmp.lt.s32.totalorder %s19, 1
      %s4503 = scalar_select %p4502, %s19, 1
      %p4504 = scmp.lt.s32.totalorder %s4501, 1
      %s4505 = scalar_select %p4504, %s4501, 1
      %s4506 = smul.addr %s4503, 8
      %s4507 = sadd.s32 %s4505, %s4506
      %s4508 = smul.addr %s4507, 8
      %s4509 = scalar_lea.vmem %s4, %s4508
      // Predicated region
      $region41: #{mhsa_forward.1} parent=35 // pred_check
        %p4510 = pneg %p136
      $region42: #{mhsa_forward.1} parent=35 // pred_check_branch
        %4512 = sbr.rel (%p4510) target = $region44
      $region43: #{mhsa_forward.1} parent=35 // pred_region
        %s4513 = smul.u32 2, %s20
      $region44: #{mhsa_forward.1} parent=35 // pred_fallthru
        _
    $region36: #{mhsa_forward.1} parent=5 // pred_fallthru
      _
    %p4514 = scmp.le.s32.totalorder 2, %s10
    // Predicated region
    $region45: #{mhsa_forward.1} parent=5 // pred_check
      %p4515 = pneg %p4514
    $region46: #{mhsa_forward.1} parent=5 // pred_check_branch
      %4517 = sbr.rel (%p4515) target = $region48
    $region47: #{mhsa_forward.1} parent=5 // pred_region
      %s4518 = ssub.s32 %s10, 2
      // Predicated region
      $region49: #{mhsa_forward.1} parent=47 // pred_check
        %p4519 = pneg %p142
      $region50: #{mhsa_forward.1} parent=47 // pred_check_branch
        %4521 = sbr.rel (%p4519) target = $region52
      $region51: #{mhsa_forward.1} parent=47 // pred_region
        %s4522 = smul.u32 2, %s22
        %p4523 = scmp.lt.s32.totalorder %s21, 1
        %s4524 = scalar_select %p4523, %s21, 1
        %p4525 = scmp.lt.s32.totalorder %s4522, 1
        %s4526 = scalar_select %p4525, %s4522, 1
        %s4527 = smul.addr %s4524, 8
        %s4528 = sadd.s32 %s4526, %s4527
        %s4529 = smul.addr %s4528, 8
        %s4530 = scalar_lea.vmem %s4, %s4529
      $region52: #{mhsa_forward.1} parent=47 // pred_fallthru
        _
    $region48: #{mhsa_forward.1} parent=5 // pred_fallthru
      _
  $region6: #{mhsa_forward.1} parent=0 // loop_footer
    %s14 = sadd.s32 1, %s10
  $region7: #{mhsa_forward.1} parent=0 // loop_footer_branch
    %9 = sbr.rel target = $region3
  $region8: #{mhsa_forward.1} parent=0 // loop_exit
    _

</llo_original>
